<compile_context>
chip_gen: v7x
topology: tpu7x:2x2x1
jax: 0.10.0
libtpu: 0.0.40
codegen_flags: <defaults>
</compile_context>

<pallas_src>
from functools import partial

import jax
import jax.numpy as jnp
from jax.experimental import pallas as pl
from jax.experimental.pallas import tpu as pltpu

LEAKY_RATE = 0.1


# ---------------------------------------------------------------------------
# Small helpers
# ---------------------------------------------------------------------------
def _round_up(x, m):
    return ((x + m - 1) // m) * m


def _vmem_budget_bytes():
    """~3/4 of physical VMEM (96 MiB on v5e/v6e, 48 MiB on v7x)."""
    try:
        cap = int(pltpu.get_tpu_info().vmem_capacity_bytes)
    except Exception:  # conservative fallback that is safe on every generation
        cap = 64 * 1024 * 1024
    return (3 * cap) // 4


def _pick_tile(n, *, unit_bytes, budget_bytes, cap=1024):
    """Largest 128-multiple divisor t of n (t <= cap) with t*unit_bytes <= budget."""
    if n % 128 != 0:
        # TODO(synk): pad irregular point counts to a multiple of 128 instead of
        # falling back to the full extent (oversized block risk for large odd N/S).
        return n
    best, t, limit = 128, 128, min(n, cap)
    while t <= limit:
        if n % t == 0 and t * unit_bytes <= budget_bytes:
            best = t
        t += 128
    return best


def _leaky(x):
    return jnp.where(x >= 0.0, x, LEAKY_RATE * x)


def _sigmoid(x):
    return 1.0 / (1.0 + jnp.exp(-x))


# ---------------------------------------------------------------------------
# Kernel 1: pairwise squared distance, coordinate-major & fully tiled.
#   d[q, n] = |q|^2 + |x|^2 - 2 q.x  computed as one augmented MXU matmul:
#   [-2q; |q|^2; 1]^T  @  [x; 1; |x|^2]   with the coord dim as the contraction.
# ---------------------------------------------------------------------------
def _sqdist_kernel(q_ref, x_ref, d_ref):
    q = q_ref[0]                                               # [3, TQ]  lane-dense
    x = x_ref[0]                                               # [3, TN]  lane-dense
    qq = jnp.sum(q * q, axis=0, keepdims=True)                 # [1, TQ]
    xx = jnp.sum(x * x, axis=0, keepdims=True)                 # [1, TN]
    q_aug = jnp.concatenate([-2.0 * q, qq, jnp.ones_like(qq)], axis=0)   # [5, TQ]
    x_aug = jnp.concatenate([x, jnp.ones_like(xx), xx], axis=0)          # [5, TN]
    d_ref[0] = jax.lax.dot_general(q_aug, x_aug, (((0,), (0,)), ((), ())),
                                   preferred_element_type=jnp.float32)   # [TQ, TN]


def square_distance_cm(src_cm, dst_cm):
    """src_cm: [B, 3, S] queries, dst_cm: [B, 3, N] keys -> [B, S, N] sq. distances."""
    B, C, S = src_cm.shape
    N = dst_cm.shape[2]
    budget = _vmem_budget_bytes()
    cpad = _round_up(C + 2, 8)  # augmented coord rows, padded to sublanes
    # keys tile: tiny per-lane footprint, just cap the lane width.
    TN = _pick_tile(N, unit_bytes=2 * cpad * 4, budget_bytes=budget // 8, cap=512)
    # query tile: dominated by the double-buffered [TQ, TN] output block.
    TQ = _pick_tile(S, unit_bytes=(2 * TN + 2 * cpad) * 4,
                    budget_bytes=(2 * budget) // 3, cap=512)

    return pl.pallas_call(
        _sqdist_kernel,
        out_shape=jax.ShapeDtypeStruct((B, S, N), jnp.float32),
        grid_spec=pltpu.PrefetchScalarGridSpec(
            num_scalar_prefetch=0,
            grid=(B, S // TQ, N // TN),
            in_specs=[pl.BlockSpec((1, C, TQ), lambda b, qi, ni: (b, 0, qi)),
                      pl.BlockSpec((1, C, TN), lambda b, qi, ni: (b, 0, ni))],
            out_specs=pl.BlockSpec((1, TQ, TN), lambda b, qi, ni: (b, qi, ni))),
        # Every grid step writes a distinct output block -> all axes parallel
        # (on v7x this also lets the two TensorCores split the grid).
        compiler_params=pltpu.CompilerParams(
            dimension_semantics=("parallel", "parallel", "parallel"),
            vmem_limit_bytes=budget),
    )(src_cm, dst_cm)


# ---------------------------------------------------------------------------
# Kernel 2: fused PointConvW core (everything after grouping), per (b, S-tile).
#   grouped features : [K, Cin, TS]   (points in lanes -> every op lane-dense)
#   weights (torch orientation [C_out, C_in], all bias-free 1x1 convs):
#     wk  [O, Cin]                         "kernel"  Conv2d
#     wcc [O, O], wcp [O, K],              "linear"  Conv1d, pre-split into blocks
#     wpc [K, O], wpp [K, K]
#     wwc [O, O]  weight_channel,  wwp [K, K]  weight_point
#   output: gated mean over K, written directly as [O, TS] (torch [B, O, S] layout).
# ---------------------------------------------------------------------------
def _pointconvw_core_kernel(x_ref, wk_ref, wcc_ref, wcp_ref, wpc_ref, wpp_ref,
                            wwc_ref, wwp_ref, out_ref, feat_scr):
    K, Cin, TS = x_ref.shape[1], x_ref.shape[2], x_ref.shape[3]
    O = wk_ref.shape[0]
    wk = wk_ref[...]                                           # [O, Cin]
    inv_k = 1.0 / K
    inv_o = 1.0 / O

    # Stage 1: 1x1 conv + LeakyReLU per neighbor slab (MXU), stash each [O, TS]
    # slab in VMEM scratch and accumulate the two means on the fly.
    ch_acc = jnp.zeros((O, TS), jnp.float32)
    pt_rows = []
    for k in range(K):                                         # K is a small static int
        f = _leaky(jnp.dot(wk, x_ref[0, k],
                           preferred_element_type=jnp.float32))            # [O, TS]
        feat_scr[k] = f
        ch_acc = ch_acc + f
        pt_rows.append(jnp.sum(f, axis=0, keepdims=True))                  # [1, TS]
    ch_avg = ch_acc * inv_k                                    # mean over K   [O, TS]
    pt_avg = jnp.concatenate(pt_rows, axis=0) * inv_o          # mean over O   [K, TS]

    # Stage 2: "linear" Conv1d(O+K -> O+K) + LeakyReLU with the weight pre-split
    # into blocks (no in-kernel concat), then both sigmoid gates.  All matmuls keep
    # TS in lanes.
    agg_c = _leaky(jnp.dot(wcc_ref[...], ch_avg, preferred_element_type=jnp.float32)
                   + jnp.dot(wcp_ref[...], pt_avg, preferred_element_type=jnp.float32))
    agg_p = _leaky(jnp.dot(wpc_ref[...], ch_avg, preferred_element_type=jnp.float32)
                   + jnp.dot(wpp_ref[...], pt_avg, preferred_element_type=jnp.float32))
    wc = _sigmoid(jnp.dot(wwc_ref[...], agg_c,
                          preferred_element_type=jnp.float32))             # [O, TS]
    wp = _sigmoid(jnp.dot(wwp_ref[...], agg_p,
                          preferred_element_type=jnp.float32))             # [K, TS]

    # Stage 3: gated mean over K:  out = wc * mean_k(feat_k * wp_k).
    acc = jnp.zeros((O, TS), jnp.float32)
    for k in range(K):
        acc = acc + feat_scr[k] * wp[k:k + 1, :]               # [1,TS] sublane bcast
    out_ref[0] = (wc * acc * inv_k).astype(out_ref.dtype)      # [O, TS] lane-dense


def pointconvw_core(grouped_cm, wk, wcc, wcp, wpc, wpp, wwc, wwp):
    """grouped_cm: [B, K, Cin, S] -> [B, O, S]."""
    B, K, Cin, S = grouped_cm.shape
    O = wk.shape[0]
    budget = _vmem_budget_bytes()
    # per-lane f32 words: input (double-buffered) + feat scratch + output (dbuf)
    # + rough headroom for live [O,TS]/[K,TS] temporaries.
    unit = (2 * K * _round_up(Cin, 8) + K * O + 2 * O + 4 * O + 4 * K) * 4
    TS = _pick_tile(S, unit_bytes=unit, budget_bytes=(2 * budget) // 3, cap=1024)

    const = lambda shp: pl.BlockSpec(shp, lambda b, s: (0, 0))
    return pl.pallas_call(
        _pointconvw_core_kernel,
        out_shape=jax.ShapeDtypeStruct((B, O, S), jnp.float32),
        grid_spec=pltpu.PrefetchScalarGridSpec(
            num_scalar_prefetch=0,
            grid=(B, S // TS),
            in_specs=[pl.BlockSpec((1, K, Cin, TS), lambda b, s: (b, 0, 0, s)),
                      const(wk.shape), const(wcc.shape), const(wcp.shape),
                      const(wpc.shape), const(wpp.shape),
                      const(wwc.shape), const(wwp.shape)],
            out_specs=pl.BlockSpec((1, O, TS), lambda b, s: (b, 0, s)),
            scratch_shapes=[pltpu.VMEM((K, O, TS), jnp.float32)]),
        compiler_params=pltpu.CompilerParams(
            dimension_semantics=("parallel", "parallel"),
            vmem_limit_bytes=budget),
    )(grouped_cm, wk, wcc, wcp, wpc, wpp, wwc, wwp)


# ---------------------------------------------------------------------------
# Plain-JAX glue: FPS, k-NN selection, gathers (data-dependent / sequential).
# ---------------------------------------------------------------------------
def farthest_point_sample_cm(xyz_cm, npoint):
    """xyz_cm: [B, 3, N] -> int32 indices [B, npoint] (first sample pinned to 0)."""
    # TODO(synk): FPS is an inherently sequential, data-dependent selection; kept as
    # a plain-JAX fori_loop (reference CUDA FPS seeds from a random point instead).
    B, C, N = xyz_cm.shape

    def one(pts):                                               # [3, N]
        def body(i, state):
            min_d, idxs, far = state
            idxs = idxs.at[i].set(far)
            cur = jax.lax.dynamic_slice_in_dim(pts, far, 1, axis=1)      # [3, 1]
            d = jnp.sum((pts - cur) ** 2, axis=0)                        # [N]
            min_d = jnp.minimum(min_d, d)
            far = jnp.argmax(min_d).astype(jnp.int32)
            return (min_d, idxs, far)

        init = (jnp.full((N,), 1e10, dtype=jnp.float32),
                jnp.zeros((npoint,), dtype=jnp.int32),
                jnp.int32(0))
        _, idxs, _ = jax.lax.fori_loop(0, npoint, body, init)
        return idxs

    return jax.vmap(one)(xyz_cm)


def pointconvw_forward(params, xyz_in, pts_in, *, npoint, nsample):
    """xyz_in: [B, 3, N], pts_in: [B, D, N]
       -> (new_xyz [B, 3, S], new_points [B, out_channel, S], fps_idx [B, S])"""
    B, _, N = xyz_in.shape
    D = pts_in.shape[1]

    # ---- downsample (stay coordinate-major throughout) ----
    fps_idx = farthest_point_sample_cm(xyz_in, npoint)           # [B, S]
    new_xyz_cm = jax.vmap(lambda d, i: d[:, i])(xyz_in, fps_idx)  # [B, 3, S]

    # ---- k-NN: Pallas distance kernel + top-k selection ----
    sqrdists = square_distance_cm(new_xyz_cm, xyz_in)            # Pallas  [B, S, N]
    # TODO(synk): fuse the k-smallest selection (streaming best-K scratch over the
    # N-tile axis) into the distance kernel to avoid the [B,S,N] HBM round trip.
    _, idx = jax.lax.top_k(-sqrdists, nsample)                   # [B, S, K]

    # ---- group + normalize, laid out lane-dense as [B, K, 3+D, S] ----
    # TODO(synk): gather neighbor features inside the core kernel (scalar-prefetched
    # idx + manual DMA) to avoid materializing the K-expanded tensor in HBM.
    feats_cm = jnp.concatenate([xyz_in, pts_in], axis=1)         # [B, 3+D, N]
    idx_t = jnp.transpose(idx, (0, 2, 1))                        # [B, K, S]
    g = jax.vmap(lambda d, i: d[:, i])(feats_cm, idx_t)          # [B, 3+D, K, S]
    g = jnp.transpose(g, (0, 2, 1, 3))                           # [B, K, 3+D, S]
    grouped_cm = jnp.concatenate(
        [g[:, :, :3, :] - new_xyz_cm[:, None, :, :],             # xyz normalized
         g[:, :, 3:, :]], axis=2)                                # point features

    # ---- fused kernel / means / linear / sigmoid gates / gated mean ----
    O = params['kernel_w'].shape[0]
    wl = params['linear_w']                                      # [O+K, O+K] (out, in)
    new_feat = pointconvw_core(
        grouped_cm, params['kernel_w'],
        wl[:O, :O], wl[:O, O:], wl[O:, :O], wl[O:, O:],
        params['wc_w'], params['wp_w'])                          # Pallas  [B, O, S]

    return new_xyz_cm, new_feat, fps_idx


# ---------------------------------------------------------------------------
# Deterministic parameter construction + demo
# ---------------------------------------------------------------------------
def make_params(key, in_channel, out_channel, nsample):
    ks = jax.random.split(key, 4)
    init = lambda k, shape: (0.2 * jax.random.normal(k, shape)).astype(jnp.float32)
    return {
        # torch orientation [C_out, C_in]; all convs in PointConvW are bias-free 1x1.
        'kernel_w': init(ks[0], (out_channel, in_channel)),                      # Conv2d
        'linear_w': init(ks[1], (out_channel + nsample, out_channel + nsample)),  # Conv1d
        'wp_w': init(ks[2], (nsample, nsample)),                                 # weight_point
        'wc_w': init(ks[3], (out_channel, out_channel)),                         # weight_channel
    }


if __name__ == "__main__":
    B, N = 2, 16
    NPOINT = 8                # S (downsampled points)
    NSAMPLE = 8               # K (neighbors)
    D = 5                     # point feature dim
    IN_CHANNEL = 3 + D        # kernel conv input channels
    OUT_CHANNEL = 32

    key = jax.random.PRNGKey(0)
    kx, kp, kw = jax.random.split(key, 3)
    xyz = jax.random.normal(kx, (B, 3, N), dtype=jnp.float32)       # [B, 3, N]
    points = jax.random.normal(kp, (B, D, N), dtype=jnp.float32)    # [B, D, N]
    params = make_params(kw, IN_CHANNEL, OUT_CHANNEL, NSAMPLE)

    fwd = jax.jit(partial(pointconvw_forward, npoint=NPOINT, nsample=NSAMPLE))
    new_xyz, new_points, fps_idx = fwd(params, xyz, points)
    jax.block_until_ready((new_xyz, new_points, fps_idx))

    assert new_xyz.shape == (B, 3, NPOINT), new_xyz.shape
    assert new_points.shape == (B, OUT_CHANNEL, NPOINT), new_points.shape
    assert fps_idx.shape == (B, NPOINT), fps_idx.shape
    assert bool(jnp.all(jnp.isfinite(new_xyz)))
    assert bool(jnp.all(jnp.isfinite(new_points)))
    print("KERNEL_OK")
</pallas_src>

<mosaic_0001>
module attributes {stable_mosaic.version = 11 : i64} {
  func.func @_sqdist_kernel(%arg0: i32, %arg1: i32, %arg2: i32, %arg3: memref<1x3x8xf32, #tpu.memory_space<vmem>>, %arg4: memref<1x3x16xf32, #tpu.memory_space<vmem>>, %arg5: memref<1x8x16xf32, #tpu.memory_space<vmem>>) attributes {dimension_semantics = [#tpu.dimension_semantics<parallel>, #tpu.dimension_semantics<parallel>, #tpu.dimension_semantics<parallel>], iteration_bounds = array<i64: 2, 1, 1>, scalar_prefetch = 0 : i64, scratch_operands = 0 : i64, tpu.core_type = #tpu.core_type<tc>, window_params = [{transform_indices = @transform_0, window_bounds = array<i64: 1, 3, 8>}, {transform_indices = @transform_1, window_bounds = array<i64: 1, 3, 16>}, {transform_indices = @transform_2, window_bounds = array<i64: 1, 8, 16>}]} {
    %c0 = arith.constant 0 : index
    %c0_0 = arith.constant 0 : index
    %c0_1 = arith.constant 0 : index
    %0 = vector.load %arg3[%c0, %c0_0, %c0_1] : memref<1x3x8xf32, #tpu.memory_space<vmem>>, vector<1x3x8xf32>
    %1 = vector.shape_cast %0 : vector<1x3x8xf32> to vector<3x8xf32>
    %c0_2 = arith.constant 0 : index
    %c0_3 = arith.constant 0 : index
    %c0_4 = arith.constant 0 : index
    %2 = vector.load %arg4[%c0_2, %c0_3, %c0_4] : memref<1x3x16xf32, #tpu.memory_space<vmem>>, vector<1x3x16xf32>
    %3 = vector.shape_cast %2 : vector<1x3x16xf32> to vector<3x16xf32>
    %4 = arith.mulf %1, %1 : vector<3x8xf32>
    %cst = arith.constant dense<0.000000e+00> : vector<8xf32>
    %5 = vector.multi_reduction <add>, %4, %cst [0] : vector<3x8xf32> to vector<8xf32>
    %6 = vector.shape_cast %5 : vector<8xf32> to vector<1x8xf32>
    %7 = arith.mulf %3, %3 : vector<3x16xf32>
    %cst_5 = arith.constant dense<0.000000e+00> : vector<16xf32>
    %8 = vector.multi_reduction <add>, %7, %cst_5 [0] : vector<3x16xf32> to vector<16xf32>
    %9 = vector.shape_cast %8 : vector<16xf32> to vector<1x16xf32>
    %cst_6 = arith.constant -2.000000e+00 : f32
    %10 = vector.broadcast %cst_6 : f32 to vector<3x8xf32>
    %11 = arith.mulf %10, %1 : vector<3x8xf32>
    %cst_7 = arith.constant 1.000000e+00 : f32
    %12 = vector.broadcast %cst_7 : f32 to vector<1x8xf32>
    %13 = tpu.concatenate %11, %6, %12 in 0 : vector<3x8xf32>, vector<1x8xf32>, vector<1x8xf32> -> vector<5x8xf32>
    %cst_8 = arith.constant 1.000000e+00 : f32
    %14 = vector.broadcast %cst_8 : f32 to vector<1x16xf32>
    %15 = tpu.concatenate %3, %14, %9 in 0 : vector<3x16xf32>, vector<1x16xf32>, vector<1x16xf32> -> vector<5x16xf32>
    %cst_9 = arith.constant dense<0.000000e+00> : vector<8x16xf32>
    %16 = tpu.matmul %13, %15, %cst_9 {dimension_numbers = #tpu.dot_dimension_numbers<[0], [0], [1], [1], [0, 1, 1, 1], [], []>} : vector<5x8xf32>, vector<5x16xf32>, vector<8x16xf32> -> vector<8x16xf32>
    %c0_10 = arith.constant 0 : index
    %c0_11 = arith.constant 0 : index
    %c0_12 = arith.constant 0 : index
    %17 = vector.load %arg5[%c0_10, %c0_11, %c0_12] : memref<1x8x16xf32, #tpu.memory_space<vmem>>, vector<1x8x16xf32>
    %18 = vector.shape_cast %17 : vector<1x8x16xf32> to vector<8x16xf32>
    %19 = vector.shape_cast %16 : vector<8x16xf32> to vector<1x8x16xf32>
    tpu.vector_store %arg5[%c0_10, %c0_11, %c0_12], %19 {strides = array<i32>} : memref<1x8x16xf32, #tpu.memory_space<vmem>>, vector<1x8x16xf32>,
    return
  }
  func.func @transform_0(%arg0: i32, %arg1: i32, %arg2: i32) -> (i32, i32, i32) {
    %c0_i32 = arith.constant 0 : i32
    %c0_i32_0 = arith.constant 0 : i32
    return %arg0, %c0_i32, %arg1 : i32, i32, i32
  }
  func.func @transform_1(%arg0: i32, %arg1: i32, %arg2: i32) -> (i32, i32, i32) {
    %c0_i32 = arith.constant 0 : i32
    %c0_i32_0 = arith.constant 0 : i32
    return %arg0, %c0_i32, %arg2 : i32, i32, i32
  }
  func.func @transform_2(%arg0: i32, %arg1: i32, %arg2: i32) -> (i32, i32, i32) {
    %c0_i32 = arith.constant 0 : i32
    return %arg0, %arg1, %arg2 : i32, i32, i32
  }
}

module attributes {stable_mosaic.version = 11 : i64} {
  func.func @_pointconvw_core_kernel(%arg0: i32, %arg1: i32, %arg2: memref<1x8x8x8xf32, #tpu.memory_space<vmem>>, %arg3: memref<32x8xf32, #tpu.memory_space<vmem>>, %arg4: memref<32x32xf32, #tpu.memory_space<vmem>>, %arg5: memref<32x8xf32, #tpu.memory_space<vmem>>, %arg6: memref<8x32xf32, #tpu.memory_space<vmem>>, %arg7: memref<8x8xf32, #tpu.memory_space<vmem>>, %arg8: memref<32x32xf32, #tpu.memory_space<vmem>>, %arg9: memref<8x8xf32, #tpu.memory_space<vmem>>, %arg10: memref<1x32x8xf32, #tpu.memory_space<vmem>>, %arg11: memref<8x32x8xf32, #tpu.memory_space<vmem>>) attributes {dimension_semantics = [#tpu.dimension_semantics<parallel>, #tpu.dimension_semantics<parallel>], iteration_bounds = array<i64: 2, 1>, scalar_prefetch = 0 : i64, scratch_operands = 1 : i64, tpu.core_type = #tpu.core_type<tc>, window_params = [{transform_indices = @transform_0, window_bounds = array<i64: 1, 8, 8, 8>}, {pipeline_mode = #tpu.pipeline_mode<synchronous>, transform_indices = @transform_1, window_bounds = array<i64: 32, 8>}, {pipeline_mode = #tpu.pipeline_mode<synchronous>, transform_indices = @transform_2, window_bounds = array<i64: 32, 32>}, {pipeline_mode = #tpu.pipeline_mode<synchronous>, transform_indices = @transform_3, window_bounds = array<i64: 32, 8>}, {pipeline_mode = #tpu.pipeline_mode<synchronous>, transform_indices = @transform_4, window_bounds = array<i64: 8, 32>}, {pipeline_mode = #tpu.pipeline_mode<synchronous>, transform_indices = @transform_5, window_bounds = array<i64: 8, 8>}, {pipeline_mode = #tpu.pipeline_mode<synchronous>, transform_indices = @transform_6, window_bounds = array<i64: 32, 32>}, {pipeline_mode = #tpu.pipeline_mode<synchronous>, transform_indices = @transform_7, window_bounds = array<i64: 8, 8>}, {transform_indices = @transform_8, window_bounds = array<i64: 1, 32, 8>}]} {
    %c0 = arith.constant 0 : index
    %c0_0 = arith.constant 0 : index
    %0 = vector.load %arg3[%c0, %c0_0] : memref<32x8xf32, #tpu.memory_space<vmem>>, vector<32x8xf32>
    %cst = arith.constant 0.000000e+00 : f32
    %1 = vector.broadcast %cst : f32 to vector<32x8xf32>
    %c0_1 = arith.constant 0 : index
    %c0_2 = arith.constant 0 : index
    %c0_3 = arith.constant 0 : index
    %c0_4 = arith.constant 0 : index
    %2 = vector.load %arg2[%c0_1, %c0_2, %c0_3, %c0_4] : memref<1x8x8x8xf32, #tpu.memory_space<vmem>>, vector<1x1x8x8xf32>
    %3 = vector.shape_cast %2 : vector<1x1x8x8xf32> to vector<8x8xf32>
    %cst_5 = arith.constant dense<0.000000e+00> : vector<32x8xf32>
    %4 = tpu.matmul %0, %3, %cst_5 {dimension_numbers = #tpu.dot_dimension_numbers<[1], [0], [0], [1], [0, 0, 1, 1], [], []>} : vector<32x8xf32>, vector<8x8xf32>, vector<32x8xf32> -> vector<32x8xf32>
    %cst_6 = arith.constant 0.000000e+00 : f32
    %5 = vector.broadcast %cst_6 : f32 to vector<32x8xf32>
    %6 = arith.cmpf oge, %4, %5 : vector<32x8xf32>
    %cst_7 = arith.constant 1.000000e-01 : f32
    %7 = vector.broadcast %cst_7 : f32 to vector<32x8xf32>
    %8 = arith.mulf %7, %4 : vector<32x8xf32>
    %9 = arith.select %6, %4, %8 : vector<32x8xi1>, vector<32x8xf32>
    %c0_8 = arith.constant 0 : index
    %c0_9 = arith.constant 0 : index
    %c0_10 = arith.constant 0 : index
    %10 = vector.load %arg11[%c0_8, %c0_9, %c0_10] : memref<8x32x8xf32, #tpu.memory_space<vmem>>, vector<1x32x8xf32>
    %11 = vector.shape_cast %10 : vector<1x32x8xf32> to vector<32x8xf32>
    %12 = vector.shape_cast %9 : vector<32x8xf32> to vector<1x32x8xf32>
    tpu.vector_store %arg11[%c0_8, %c0_9, %c0_10], %12 {strides = array<i32>} : memref<8x32x8xf32, #tpu.memory_space<vmem>>, vector<1x32x8xf32>,
    %13 = arith.addf %1, %9 : vector<32x8xf32>
    %cst_11 = arith.constant dense<0.000000e+00> : vector<8xf32>
    %14 = vector.multi_reduction <add>, %9, %cst_11 [0] : vector<32x8xf32> to vector<8xf32>
    %15 = vector.shape_cast %14 : vector<8xf32> to vector<1x8xf32>
    %c0_12 = arith.constant 0 : index
    %c1 = arith.constant 1 : index
    %c0_13 = arith.constant 0 : index
    %c0_14 = arith.constant 0 : index
    %16 = vector.load %arg2[%c0_12, %c1, %c0_13, %c0_14] : memref<1x8x8x8xf32, #tpu.memory_space<vmem>>, vector<1x1x8x8xf32>
    %17 = vector.shape_cast %16 : vector<1x1x8x8xf32> to vector<8x8xf32>
    %cst_15 = arith.constant dense<0.000000e+00> : vector<32x8xf32>
    %18 = tpu.matmul %0, %17, %cst_15 {dimension_numbers = #tpu.dot_dimension_numbers<[1], [0], [0], [1], [0, 0, 1, 1], [], []>} : vector<32x8xf32>, vector<8x8xf32>, vector<32x8xf32> -> vector<32x8xf32>
    %cst_16 = arith.constant 0.000000e+00 : f32
    %19 = vector.broadcast %cst_16 : f32 to vector<32x8xf32>
    %20 = arith.cmpf oge, %18, %19 : vector<32x8xf32>
    %cst_17 = arith.constant 1.000000e-01 : f32
    %21 = vector.broadcast %cst_17 : f32 to vector<32x8xf32>
    %22 = arith.mulf %21, %18 : vector<32x8xf32>
    %23 = arith.select %20, %18, %22 : vector<32x8xi1>, vector<32x8xf32>
    %c1_18 = arith.constant 1 : index
    %c0_19 = arith.constant 0 : index
    %c0_20 = arith.constant 0 : index
    %24 = vector.load %arg11[%c1_18, %c0_19, %c0_20] : memref<8x32x8xf32, #tpu.memory_space<vmem>>, vector<1x32x8xf32>
    %25 = vector.shape_cast %24 : vector<1x32x8xf32> to vector<32x8xf32>
    %26 = vector.shape_cast %23 : vector<32x8xf32> to vector<1x32x8xf32>
    tpu.vector_store %arg11[%c1_18, %c0_19, %c0_20], %26 {strides = array<i32>} : memref<8x32x8xf32, #tpu.memory_space<vmem>>, vector<1x32x8xf32>,
    %27 = arith.addf %13, %23 : vector<32x8xf32>
    %cst_21 = arith.constant dense<0.000000e+00> : vector<8xf32>
    %28 = vector.multi_reduction <add>, %23, %cst_21 [0] : vector<32x8xf32> to vector<8xf32>
    %29 = vector.shape_cast %28 : vector<8xf32> to vector<1x8xf32>
    %c0_22 = arith.constant 0 : index
    %c2 = arith.constant 2 : index
    %c0_23 = arith.constant 0 : index
    %c0_24 = arith.constant 0 : index
    %30 = vector.load %arg2[%c0_22, %c2, %c0_23, %c0_24] : memref<1x8x8x8xf32, #tpu.memory_space<vmem>>, vector<1x1x8x8xf32>
    %31 = vector.shape_cast %30 : vector<1x1x8x8xf32> to vector<8x8xf32>
    %cst_25 = arith.constant dense<0.000000e+00> : vector<32x8xf32>
    %32 = tpu.matmul %0, %31, %cst_25 {dimension_numbers = #tpu.dot_dimension_numbers<[1], [0], [0], [1], [0, 0, 1, 1], [], []>} : vector<32x8xf32>, vector<8x8xf32>, vector<32x8xf32> -> vector<32x8xf32>
    %cst_26 = arith.constant 0.000000e+00 : f32
    %33 = vector.broadcast %cst_26 : f32 to vector<32x8xf32>
    %34 = arith.cmpf oge, %32, %33 : vector<32x8xf32>
    %cst_27 = arith.constant 1.000000e-01 : f32
    %35 = vector.broadcast %cst_27 : f32 to vector<32x8xf32>
    %36 = arith.mulf %35, %32 : vector<32x8xf32>
    %37 = arith.select %34, %32, %36 : vector<32x8xi1>, vector<32x8xf32>
    %c2_28 = arith.constant 2 : index
    %c0_29 = arith.constant 0 : index
    %c0_30 = arith.constant 0 : index
    %38 = vector.load %arg11[%c2_28, %c0_29, %c0_30] : memref<8x32x8xf32, #tpu.memory_space<vmem>>, vector<1x32x8xf32>
    %39 = vector.shape_cast %38 : vector<1x32x8xf32> to vector<32x8xf32>
    %40 = vector.shape_cast %37 : vector<32x8xf32> to vector<1x32x8xf32>
    tpu.vector_store %arg11[%c2_28, %c0_29, %c0_30], %40 {strides = array<i32>} : memref<8x32x8xf32, #tpu.memory_space<vmem>>, vector<1x32x8xf32>,
    %41 = arith.addf %27, %37 : vector<32x8xf32>
    %cst_31 = arith.constant dense<0.000000e+00> : vector<8xf32>
    %42 = vector.multi_reduction <add>, %37, %cst_31 [0] : vector<32x8xf32> to vector<8xf32>
    %43 = vector.shape_cast %42 : vector<8xf32> to vector<1x8xf32>
    %c0_32 = arith.constant 0 : index
    %c3 = arith.constant 3 : index
    %c0_33 = arith.constant 0 : index
    %c0_34 = arith.constant 0 : index
    %44 = vector.load %arg2[%c0_32, %c3, %c0_33, %c0_34] : memref<1x8x8x8xf32, #tpu.memory_space<vmem>>, vector<1x1x8x8xf32>
    %45 = vector.shape_cast %44 : vector<1x1x8x8xf32> to vector<8x8xf32>
    %cst_35 = arith.constant dense<0.000000e+00> : vector<32x8xf32>
    %46 = tpu.matmul %0, %45, %cst_35 {dimension_numbers = #tpu.dot_dimension_numbers<[1], [0], [0], [1], [0, 0, 1, 1], [], []>} : vector<32x8xf32>, vector<8x8xf32>, vector<32x8xf32> -> vector<32x8xf32>
    %cst_36 = arith.constant 0.000000e+00 : f32
    %47 = vector.broadcast %cst_36 : f32 to vector<32x8xf32>
    %48 = arith.cmpf oge, %46, %47 : vector<32x8xf32>
    %cst_37 = arith.constant 1.000000e-01 : f32
    %49 = vector.broadcast %cst_37 : f32 to vector<32x8xf32>
    %50 = arith.mulf %49, %46 : vector<32x8xf32>
    %51 = arith.select %48, %46, %50 : vector<32x8xi1>, vector<32x8xf32>
    %c3_38 = arith.constant 3 : index
    %c0_39 = arith.constant 0 : index
    %c0_40 = arith.constant 0 : index
    %52 = vector.load %arg11[%c3_38, %c0_39, %c0_40] : memref<8x32x8xf32, #tpu.memory_space<vmem>>, vector<1x32x8xf32>
    %53 = vector.shape_cast %52 : vector<1x32x8xf32> to vector<32x8xf32>
    %54 = vector.shape_cast %51 : vector<32x8xf32> to vector<1x32x8xf32>
    tpu.vector_store %arg11[%c3_38, %c0_39, %c0_40], %54 {strides = array<i32>} : memref<8x32x8xf32, #tpu.memory_space<vmem>>, vector<1x32x8xf32>,
    %55 = arith.addf %41, %51 : vector<32x8xf32>
    %cst_41 = arith.constant dense<0.000000e+00> : vector<8xf32>
    %56 = vector.multi_reduction <add>, %51, %cst_41 [0] : vector<32x8xf32> to vector<8xf32>
    %57 = vector.shape_cast %56 : vector<8xf32> to vector<1x8xf32>
    %c0_42 = arith.constant 0 : index
    %c4 = arith.constant 4 : index
    %c0_43 = arith.constant 0 : index
    %c0_44 = arith.constant 0 : index
    %58 = vector.load %arg2[%c0_42, %c4, %c0_43, %c0_44] : memref<1x8x8x8xf32, #tpu.memory_space<vmem>>, vector<1x1x8x8xf32>
    %59 = vector.shape_cast %58 : vector<1x1x8x8xf32> to vector<8x8xf32>
    %cst_45 = arith.constant dense<0.000000e+00> : vector<32x8xf32>
    %60 = tpu.matmul %0, %59, %cst_45 {dimension_numbers = #tpu.dot_dimension_numbers<[1], [0], [0], [1], [0, 0, 1, 1], [], []>} : vector<32x8xf32>, vector<8x8xf32>, vector<32x8xf32> -> vector<32x8xf32>
    %cst_46 = arith.constant 0.000000e+00 : f32
    %61 = vector.broadcast %cst_46 : f32 to vector<32x8xf32>
    %62 = arith.cmpf oge, %60, %61 : vector<32x8xf32>
    %cst_47 = arith.constant 1.000000e-01 : f32
    %63 = vector.broadcast %cst_47 : f32 to vector<32x8xf32>
    %64 = arith.mulf %63, %60 : vector<32x8xf32>
    %65 = arith.select %62, %60, %64 : vector<32x8xi1>, vector<32x8xf32>
    %c4_48 = arith.constant 4 : index
    %c0_49 = arith.constant 0 : index
    %c0_50 = arith.constant 0 : index
    %66 = vector.load %arg11[%c4_48, %c0_49, %c0_50] : memref<8x32x8xf32, #tpu.memory_space<vmem>>, vector<1x32x8xf32>
    %67 = vector.shape_cast %66 : vector<1x32x8xf32> to vector<32x8xf32>
    %68 = vector.shape_cast %65 : vector<32x8xf32> to vector<1x32x8xf32>
    tpu.vector_store %arg11[%c4_48, %c0_49, %c0_50], %68 {strides = array<i32>} : memref<8x32x8xf32, #tpu.memory_space<vmem>>, vector<1x32x8xf32>,
    %69 = arith.addf %55, %65 : vector<32x8xf32>
    %cst_51 = arith.constant dense<0.000000e+00> : vector<8xf32>
    %70 = vector.multi_reduction <add>, %65, %cst_51 [0] : vector<32x8xf32> to vector<8xf32>
    %71 = vector.shape_cast %70 : vector<8xf32> to vector<1x8xf32>
    %c0_52 = arith.constant 0 : index
    %c5 = arith.constant 5 : index
    %c0_53 = arith.constant 0 : index
    %c0_54 = arith.constant 0 : index
    %72 = vector.load %arg2[%c0_52, %c5, %c0_53, %c0_54] : memref<1x8x8x8xf32, #tpu.memory_space<vmem>>, vector<1x1x8x8xf32>
    %73 = vector.shape_cast %72 : vector<1x1x8x8xf32> to vector<8x8xf32>
    %cst_55 = arith.constant dense<0.000000e+00> : vector<32x8xf32>
    %74 = tpu.matmul %0, %73, %cst_55 {dimension_numbers = #tpu.dot_dimension_numbers<[1], [0], [0], [1], [0, 0, 1, 1], [], []>} : vector<32x8xf32>, vector<8x8xf32>, vector<32x8xf32> -> vector<32x8xf32>
    %cst_56 = arith.constant 0.000000e+00 : f32
    %75 = vector.broadcast %cst_56 : f32 to vector<32x8xf32>
    %76 = arith.cmpf oge, %74, %75 : vector<32x8xf32>
    %cst_57 = arith.constant 1.000000e-01 : f32
    %77 = vector.broadcast %cst_57 : f32 to vector<32x8xf32>
    %78 = arith.mulf %77, %74 : vector<32x8xf32>
    %79 = arith.select %76, %74, %78 : vector<32x8xi1>, vector<32x8xf32>
    %c5_58 = arith.constant 5 : index
    %c0_59 = arith.constant 0 : index
    %c0_60 = arith.constant 0 : index
    %80 = vector.load %arg11[%c5_58, %c0_59, %c0_60] : memref<8x32x8xf32, #tpu.memory_space<vmem>>, vector<1x32x8xf32>
    %81 = vector.shape_cast %80 : vector<1x32x8xf32> to vector<32x8xf32>
    %82 = vector.shape_cast %79 : vector<32x8xf32> to vector<1x32x8xf32>
    tpu.vector_store %arg11[%c5_58, %c0_59, %c0_60], %82 {strides = array<i32>} : memref<8x32x8xf32, #tpu.memory_space<vmem>>, vector<1x32x8xf32>,
    %83 = arith.addf %69, %79 : vector<32x8xf32>
    %cst_61 = arith.constant dense<0.000000e+00> : vector<8xf32>
    %84 = vector.multi_reduction <add>, %79, %cst_61 [0] : vector<32x8xf32> to vector<8xf32>
    %85 = vector.shape_cast %84 : vector<8xf32> to vector<1x8xf32>
    %c0_62 = arith.constant 0 : index
    %c6 = arith.constant 6 : index
    %c0_63 = arith.constant 0 : index
    %c0_64 = arith.constant 0 : index
    %86 = vector.load %arg2[%c0_62, %c6, %c0_63, %c0_64] : memref<1x8x8x8xf32, #tpu.memory_space<vmem>>, vector<1x1x8x8xf32>
    %87 = vector.shape_cast %86 : vector<1x1x8x8xf32> to vector<8x8xf32>
    %cst_65 = arith.constant dense<0.000000e+00> : vector<32x8xf32>
    %88 = tpu.matmul %0, %87, %cst_65 {dimension_numbers = #tpu.dot_dimension_numbers<[1], [0], [0], [1], [0, 0, 1, 1], [], []>} : vector<32x8xf32>, vector<8x8xf32>, vector<32x8xf32> -> vector<32x8xf32>
    %cst_66 = arith.constant 0.000000e+00 : f32
    %89 = vector.broadcast %cst_66 : f32 to vector<32x8xf32>
    %90 = arith.cmpf oge, %88, %89 : vector<32x8xf32>
    %cst_67 = arith.constant 1.000000e-01 : f32
    %91 = vector.broadcast %cst_67 : f32 to vector<32x8xf32>
    %92 = arith.mulf %91, %88 : vector<32x8xf32>
    %93 = arith.select %90, %88, %92 : vector<32x8xi1>, vector<32x8xf32>
    %c6_68 = arith.constant 6 : index
    %c0_69 = arith.constant 0 : index
    %c0_70 = arith.constant 0 : index
    %94 = vector.load %arg11[%c6_68, %c0_69, %c0_70] : memref<8x32x8xf32, #tpu.memory_space<vmem>>, vector<1x32x8xf32>
    %95 = vector.shape_cast %94 : vector<1x32x8xf32> to vector<32x8xf32>
    %96 = vector.shape_cast %93 : vector<32x8xf32> to vector<1x32x8xf32>
    tpu.vector_store %arg11[%c6_68, %c0_69, %c0_70], %96 {strides = array<i32>} : memref<8x32x8xf32, #tpu.memory_space<vmem>>, vector<1x32x8xf32>,
    %97 = arith.addf %83, %93 : vector<32x8xf32>
    %cst_71 = arith.constant dense<0.000000e+00> : vector<8xf32>
    %98 = vector.multi_reduction <add>, %93, %cst_71 [0] : vector<32x8xf32> to vector<8xf32>
    %99 = vector.shape_cast %98 : vector<8xf32> to vector<1x8xf32>
    %c0_72 = arith.constant 0 : index
    %c7 = arith.constant 7 : index
    %c0_73 = arith.constant 0 : index
    %c0_74 = arith.constant 0 : index
    %100 = vector.load %arg2[%c0_72, %c7, %c0_73, %c0_74] : memref<1x8x8x8xf32, #tpu.memory_space<vmem>>, vector<1x1x8x8xf32>
    %101 = vector.shape_cast %100 : vector<1x1x8x8xf32> to vector<8x8xf32>
    %cst_75 = arith.constant dense<0.000000e+00> : vector<32x8xf32>
    %102 = tpu.matmul %0, %101, %cst_75 {dimension_numbers = #tpu.dot_dimension_numbers<[1], [0], [0], [1], [0, 0, 1, 1], [], []>} : vector<32x8xf32>, vector<8x8xf32>, vector<32x8xf32> -> vector<32x8xf32>
    %cst_76 = arith.constant 0.000000e+00 : f32
    %103 = vector.broadcast %cst_76 : f32 to vector<32x8xf32>
    %104 = arith.cmpf oge, %102, %103 : vector<32x8xf32>
    %cst_77 = arith.constant 1.000000e-01 : f32
    %105 = vector.broadcast %cst_77 : f32 to vector<32x8xf32>
    %106 = arith.mulf %105, %102 : vector<32x8xf32>
    %107 = arith.select %104, %102, %106 : vector<32x8xi1>, vector<32x8xf32>
    %c7_78 = arith.constant 7 : index
    %c0_79 = arith.constant 0 : index
    %c0_80 = arith.constant 0 : index
    %108 = vector.load %arg11[%c7_78, %c0_79, %c0_80] : memref<8x32x8xf32, #tpu.memory_space<vmem>>, vector<1x32x8xf32>
    %109 = vector.shape_cast %108 : vector<1x32x8xf32> to vector<32x8xf32>
    %110 = vector.shape_cast %107 : vector<32x8xf32> to vector<1x32x8xf32>
    tpu.vector_store %arg11[%c7_78, %c0_79, %c0_80], %110 {strides = array<i32>} : memref<8x32x8xf32, #tpu.memory_space<vmem>>, vector<1x32x8xf32>,
    %111 = arith.addf %97, %107 : vector<32x8xf32>
    %cst_81 = arith.constant dense<0.000000e+00> : vector<8xf32>
    %112 = vector.multi_reduction <add>, %107, %cst_81 [0] : vector<32x8xf32> to vector<8xf32>
    %113 = vector.shape_cast %112 : vector<8xf32> to vector<1x8xf32>
    %cst_82 = arith.constant 1.250000e-01 : f32
    %114 = vector.broadcast %cst_82 : f32 to vector<32x8xf32>
    %115 = arith.mulf %111, %114 : vector<32x8xf32>
    %116 = tpu.concatenate %15, %29, %43, %57, %71, %85, %99, %113 in 0 : vector<1x8xf32>, vector<1x8xf32>, vector<1x8xf32>, vector<1x8xf32>, vector<1x8xf32>, vector<1x8xf32>, vector<1x8xf32>, vector<1x8xf32> -> vector<8x8xf32>
    %cst_83 = arith.constant 3.125000e-02 : f32
    %117 = vector.broadcast %cst_83 : f32 to vector<8x8xf32>
    %118 = arith.mulf %116, %117 : vector<8x8xf32>
    %c0_84 = arith.constant 0 : index
    %c0_85 = arith.constant 0 : index
    %119 = vector.load %arg4[%c0_84, %c0_85] : memref<32x32xf32, #tpu.memory_space<vmem>>, vector<32x32xf32>
    %cst_86 = arith.constant dense<0.000000e+00> : vector<32x8xf32>
    %120 = tpu.matmul %119, %115, %cst_86 {dimension_numbers = #tpu.dot_dimension_numbers<[1], [0], [0], [1], [0, 0, 1, 1], [], []>} : vector<32x32xf32>, vector<32x8xf32>, vector<32x8xf32> -> vector<32x8xf32>
    %c0_87 = arith.constant 0 : index
    %c0_88 = arith.constant 0 : index
    %121 = vector.load %arg5[%c0_87, %c0_88] : memref<32x8xf32, #tpu.memory_space<vmem>>, vector<32x8xf32>
    %cst_89 = arith.constant dense<0.000000e+00> : vector<32x8xf32>
    %122 = tpu.matmul %121, %118, %cst_89 {dimension_numbers = #tpu.dot_dimension_numbers<[1], [0], [0], [1], [0, 0, 1, 1], [], []>} : vector<32x8xf32>, vector<8x8xf32>, vector<32x8xf32> -> vector<32x8xf32>
    %123 = arith.addf %120, %122 : vector<32x8xf32>
    %cst_90 = arith.constant 0.000000e+00 : f32
    %124 = vector.broadcast %cst_90 : f32 to vector<32x8xf32>
    %125 = arith.cmpf oge, %123, %124 : vector<32x8xf32>
    %cst_91 = arith.constant 1.000000e-01 : f32
    %126 = vector.broadcast %cst_91 : f32 to vector<32x8xf32>
    %127 = arith.mulf %126, %123 : vector<32x8xf32>
    %128 = arith.select %125, %123, %127 : vector<32x8xi1>, vector<32x8xf32>
    %c0_92 = arith.constant 0 : index
    %c0_93 = arith.constant 0 : index
    %129 = vector.load %arg6[%c0_92, %c0_93] : memref<8x32xf32, #tpu.memory_space<vmem>>, vector<8x32xf32>
    %cst_94 = arith.constant dense<0.000000e+00> : vector<8x8xf32>
    %130 = tpu.matmul %129, %115, %cst_94 {dimension_numbers = #tpu.dot_dimension_numbers<[1], [0], [0], [1], [0, 0, 1, 1], [], []>} : vector<8x32xf32>, vector<32x8xf32>, vector<8x8xf32> -> vector<8x8xf32>
    %c0_95 = arith.constant 0 : index
    %c0_96 = arith.constant 0 : index
    %131 = vector.load %arg7[%c0_95, %c0_96] : memref<8x8xf32, #tpu.memory_space<vmem>>, vector<8x8xf32>
    %cst_97 = arith.constant dense<0.000000e+00> : vector<8x8xf32>
    %132 = tpu.matmul %131, %118, %cst_97 {dimension_numbers = #tpu.dot_dimension_numbers<[1], [0], [0], [1], [0, 0, 1, 1], [], []>} : vector<8x8xf32>, vector<8x8xf32>, vector<8x8xf32> -> vector<8x8xf32>
    %133 = arith.addf %130, %132 : vector<8x8xf32>
    %cst_98 = arith.constant 0.000000e+00 : f32
    %134 = vector.broadcast %cst_98 : f32 to vector<8x8xf32>
    %135 = arith.cmpf oge, %133, %134 : vector<8x8xf32>
    %cst_99 = arith.constant 1.000000e-01 : f32
    %136 = vector.broadcast %cst_99 : f32 to vector<8x8xf32>
    %137 = arith.mulf %136, %133 : vector<8x8xf32>
    %138 = arith.select %135, %133, %137 : vector<8x8xi1>, vector<8x8xf32>
    %c0_100 = arith.constant 0 : index
    %c0_101 = arith.constant 0 : index
    %139 = vector.load %arg8[%c0_100, %c0_101] : memref<32x32xf32, #tpu.memory_space<vmem>>, vector<32x32xf32>
    %cst_102 = arith.constant dense<0.000000e+00> : vector<32x8xf32>
    %140 = tpu.matmul %139, %128, %cst_102 {dimension_numbers = #tpu.dot_dimension_numbers<[1], [0], [0], [1], [0, 0, 1, 1], [], []>} : vector<32x32xf32>, vector<32x8xf32>, vector<32x8xf32> -> vector<32x8xf32>
    %cst_103 = arith.constant 0.000000e+00 : f32
    %141 = vector.broadcast %cst_103 : f32 to vector<32x8xf32>
    %142 = arith.subf %141, %140 : vector<32x8xf32>
    %143 = math.exp %142 : vector<32x8xf32>
    %cst_104 = arith.constant 1.000000e+00 : f32
    %144 = vector.broadcast %cst_104 : f32 to vector<32x8xf32>
    %145 = arith.addf %144, %143 : vector<32x8xf32>
    %cst_105 = arith.constant 1.000000e+00 : f32
    %146 = vector.broadcast %cst_105 : f32 to vector<32x8xf32>
    %147 = arith.divf %146, %145 : vector<32x8xf32>
    %c0_106 = arith.constant 0 : index
    %c0_107 = arith.constant 0 : index
    %148 = vector.load %arg9[%c0_106, %c0_107] : memref<8x8xf32, #tpu.memory_space<vmem>>, vector<8x8xf32>
    %cst_108 = arith.constant dense<0.000000e+00> : vector<8x8xf32>
    %149 = tpu.matmul %148, %138, %cst_108 {dimension_numbers = #tpu.dot_dimension_numbers<[1], [0], [0], [1], [0, 0, 1, 1], [], []>} : vector<8x8xf32>, vector<8x8xf32>, vector<8x8xf32> -> vector<8x8xf32>
    %cst_109 = arith.constant 0.000000e+00 : f32
    %150 = vector.broadcast %cst_109 : f32 to vector<8x8xf32>
    %151 = arith.subf %150, %149 : vector<8x8xf32>
    %152 = math.exp %151 : vector<8x8xf32>
    %cst_110 = arith.constant 1.000000e+00 : f32
    %153 = vector.broadcast %cst_110 : f32 to vector<8x8xf32>
    %154 = arith.addf %153, %152 : vector<8x8xf32>
    %cst_111 = arith.constant 1.000000e+00 : f32
    %155 = vector.broadcast %cst_111 : f32 to vector<8x8xf32>
    %156 = arith.divf %155, %154 : vector<8x8xf32>
    %cst_112 = arith.constant 0.000000e+00 : f32
    %157 = vector.broadcast %cst_112 : f32 to vector<32x8xf32>
    %c0_113 = arith.constant 0 : index
    %c0_114 = arith.constant 0 : index
    %c0_115 = arith.constant 0 : index
    %158 = vector.load %arg11[%c0_113, %c0_114, %c0_115] : memref<8x32x8xf32, #tpu.memory_space<vmem>>, vector<1x32x8xf32>
    %159 = vector.shape_cast %158 : vector<1x32x8xf32> to vector<32x8xf32>
    %160 = vector.extract_strided_slice %156 {offsets = [0, 0], sizes = [1, 8], strides = [1, 1]} : vector<8x8xf32> to vector<1x8xf32>
    %161 = vector.broadcast %160 : vector<1x8xf32> to vector<32x8xf32>
    %162 = arith.mulf %159, %161 : vector<32x8xf32>
    %163 = arith.addf %157, %162 : vector<32x8xf32>
    %c1_116 = arith.constant 1 : index
    %c0_117 = arith.constant 0 : index
    %c0_118 = arith.constant 0 : index
    %164 = vector.load %arg11[%c1_116, %c0_117, %c0_118] : memref<8x32x8xf32, #tpu.memory_space<vmem>>, vector<1x32x8xf32>
    %165 = vector.shape_cast %164 : vector<1x32x8xf32> to vector<32x8xf32>
    %166 = vector.extract_strided_slice %156 {offsets = [1, 0], sizes = [1, 8], strides = [1, 1]} : vector<8x8xf32> to vector<1x8xf32>
    %167 = vector.broadcast %166 : vector<1x8xf32> to vector<32x8xf32>
    %168 = arith.mulf %165, %167 : vector<32x8xf32>
    %169 = arith.addf %163, %168 : vector<32x8xf32>
    %c2_119 = arith.constant 2 : index
    %c0_120 = arith.constant 0 : index
    %c0_121 = arith.constant 0 : index
    %170 = vector.load %arg11[%c2_119, %c0_120, %c0_121] : memref<8x32x8xf32, #tpu.memory_space<vmem>>, vector<1x32x8xf32>
    %171 = vector.shape_cast %170 : vector<1x32x8xf32> to vector<32x8xf32>
    %172 = vector.extract_strided_slice %156 {offsets = [2, 0], sizes = [1, 8], strides = [1, 1]} : vector<8x8xf32> to vector<1x8xf32>
    %173 = vector.broadcast %172 : vector<1x8xf32> to vector<32x8xf32>
    %174 = arith.mulf %171, %173 : vector<32x8xf32>
    %175 = arith.addf %169, %174 : vector<32x8xf32>
    %c3_122 = arith.constant 3 : index
    %c0_123 = arith.constant 0 : index
    %c0_124 = arith.constant 0 : index
    %176 = vector.load %arg11[%c3_122, %c0_123, %c0_124] : memref<8x32x8xf32, #tpu.memory_space<vmem>>, vector<1x32x8xf32>
    %177 = vector.shape_cast %176 : vector<1x32x8xf32> to vector<32x8xf32>
    %178 = vector.extract_strided_slice %156 {offsets = [3, 0], sizes = [1, 8], strides = [1, 1]} : vector<8x8xf32> to vector<1x8xf32>
    %179 = vector.broadcast %178 : vector<1x8xf32> to vector<32x8xf32>
    %180 = arith.mulf %177, %179 : vector<32x8xf32>
    %181 = arith.addf %175, %180 : vector<32x8xf32>
    %c4_125 = arith.constant 4 : index
    %c0_126 = arith.constant 0 : index
    %c0_127 = arith.constant 0 : index
    %182 = vector.load %arg11[%c4_125, %c0_126, %c0_127] : memref<8x32x8xf32, #tpu.memory_space<vmem>>, vector<1x32x8xf32>
    %183 = vector.shape_cast %182 : vector<1x32x8xf32> to vector<32x8xf32>
    %184 = vector.extract_strided_slice %156 {offsets = [4, 0], sizes = [1, 8], strides = [1, 1]} : vector<8x8xf32> to vector<1x8xf32>
    %185 = vector.broadcast %184 : vector<1x8xf32> to vector<32x8xf32>
    %186 = arith.mulf %183, %185 : vector<32x8xf32>
    %187 = arith.addf %181, %186 : vector<32x8xf32>
    %c5_128 = arith.constant 5 : index
    %c0_129 = arith.constant 0 : index
    %c0_130 = arith.constant 0 : index
    %188 = vector.load %arg11[%c5_128, %c0_129, %c0_130] : memref<8x32x8xf32, #tpu.memory_space<vmem>>, vector<1x32x8xf32>
    %189 = vector.shape_cast %188 : vector<1x32x8xf32> to vector<32x8xf32>
    %190 = vector.extract_strided_slice %156 {offsets = [5, 0], sizes = [1, 8], strides = [1, 1]} : vector<8x8xf32> to vector<1x8xf32>
    %191 = vector.broadcast %190 : vector<1x8xf32> to vector<32x8xf32>
    %192 = arith.mulf %189, %191 : vector<32x8xf32>
    %193 = arith.addf %187, %192 : vector<32x8xf32>
    %c6_131 = arith.constant 6 : index
    %c0_132 = arith.constant 0 : index
    %c0_133 = arith.constant 0 : index
    %194 = vector.load %arg11[%c6_131, %c0_132, %c0_133] : memref<8x32x8xf32, #tpu.memory_space<vmem>>, vector<1x32x8xf32>
    %195 = vector.shape_cast %194 : vector<1x32x8xf32> to vector<32x8xf32>
    %196 = vector.extract_strided_slice %156 {offsets = [6, 0], sizes = [1, 8], strides = [1, 1]} : vector<8x8xf32> to vector<1x8xf32>
    %197 = vector.broadcast %196 : vector<1x8xf32> to vector<32x8xf32>
    %198 = arith.mulf %195, %197 : vector<32x8xf32>
    %199 = arith.addf %193, %198 : vector<32x8xf32>
    %c7_134 = arith.constant 7 : index
    %c0_135 = arith.constant 0 : index
    %c0_136 = arith.constant 0 : index
    %200 = vector.load %arg11[%c7_134, %c0_135, %c0_136] : memref<8x32x8xf32, #tpu.memory_space<vmem>>, vector<1x32x8xf32>
    %201 = vector.shape_cast %200 : vector<1x32x8xf32> to vector<32x8xf32>
    %202 = vector.extract_strided_slice %156 {offsets = [7, 0], sizes = [1, 8], strides = [1, 1]} : vector<8x8xf32> to vector<1x8xf32>
    %203 = vector.broadcast %202 : vector<1x8xf32> to vector<32x8xf32>
    %204 = arith.mulf %201, %203 : vector<32x8xf32>
    %205 = arith.addf %199, %204 : vector<32x8xf32>
    %206 = arith.mulf %147, %205 : vector<32x8xf32>
    %cst_137 = arith.constant 1.250000e-01 : f32
    %207 = vector.broadcast %cst_137 : f32 to vector<32x8xf32>
    %208 = arith.mulf %206, %207 : vector<32x8xf32>
    %c0_138 = arith.constant 0 : index
    %c0_139 = arith.constant 0 : index
    %c0_140 = arith.constant 0 : index
    %209 = vector.load %arg10[%c0_138, %c0_139, %c0_140] : memref<1x32x8xf32, #tpu.memory_space<vmem>>, vector<1x32x8xf32>
    %210 = vector.shape_cast %209 : vector<1x32x8xf32> to vector<32x8xf32>
    %211 = vector.shape_cast %208 : vector<32x8xf32> to vector<1x32x8xf32>
    tpu.vector_store %arg10[%c0_138, %c0_139, %c0_140], %211 {strides = array<i32>} : memref<1x32x8xf32, #tpu.memory_space<vmem>>, vector<1x32x8xf32>,
    return
  }
  func.func @transform_0(%arg0: i32, %arg1: i32) -> (i32, i32, i32, i32) {
    %c0_i32 = arith.constant 0 : i32
    %c0_i32_0 = arith.constant 0 : i32
    %c0_i32_1 = arith.constant 0 : i32
    return %arg0, %c0_i32, %c0_i32_0, %arg1 : i32, i32, i32, i32
  }
  func.func @transform_1(%arg0: i32, %arg1: i32) -> (i32, i32) {
    %c0_i32 = arith.constant 0 : i32
    %c0_i32_0 = arith.constant 0 : i32
    %c0_i32_1 = arith.constant 0 : i32
    return %c0_i32, %c0_i32_0 : i32, i32
  }
  func.func @transform_2(%arg0: i32, %arg1: i32) -> (i32, i32) {
    %c0_i32 = arith.constant 0 : i32
    %c0_i32_0 = arith.constant 0 : i32
    %c0_i32_1 = arith.constant 0 : i32
    return %c0_i32, %c0_i32_0 : i32, i32
  }
  func.func @transform_3(%arg0: i32, %arg1: i32) -> (i32, i32) {
    %c0_i32 = arith.constant 0 : i32
    %c0_i32_0 = arith.constant 0 : i32
    %c0_i32_1 = arith.constant 0 : i32
    return %c0_i32, %c0_i32_0 : i32, i32
  }
  func.func @transform_4(%arg0: i32, %arg1: i32) -> (i32, i32) {
    %c0_i32 = arith.constant 0 : i32
    %c0_i32_0 = arith.constant 0 : i32
    %c0_i32_1 = arith.constant 0 : i32
    return %c0_i32, %c0_i32_0 : i32, i32
  }
  func.func @transform_5(%arg0: i32, %arg1: i32) -> (i32, i32) {
    %c0_i32 = arith.constant 0 : i32
    %c0_i32_0 = arith.constant 0 : i32
    %c0_i32_1 = arith.constant 0 : i32
    return %c0_i32, %c0_i32_0 : i32, i32
  }
  func.func @transform_6(%arg0: i32, %arg1: i32) -> (i32, i32) {
    %c0_i32 = arith.constant 0 : i32
    %c0_i32_0 = arith.constant 0 : i32
    %c0_i32_1 = arith.constant 0 : i32
    return %c0_i32, %c0_i32_0 : i32, i32
  }
  func.func @transform_7(%arg0: i32, %arg1: i32) -> (i32, i32) {
    %c0_i32 = arith.constant 0 : i32
    %c0_i32_0 = arith.constant 0 : i32
    %c0_i32_1 = arith.constant 0 : i32
    return %c0_i32, %c0_i32_0 : i32, i32
  }
  func.func @transform_8(%arg0: i32, %arg1: i32) -> (i32, i32, i32) {
    %c0_i32 = arith.constant 0 : i32
    %c0_i32_0 = arith.constant 0 : i32
    return %arg0, %c0_i32, %arg1 : i32, i32, i32
  }
}

</mosaic_0001>

<llo_original>
// kernel: custom-call.6
$region0: #{custom-call.6}
  %s0 = inlined_call_operand.vmem [shape: f32[2,16], index: 0, kind: output, shape index: {}]

// kernel: neg.1
$region0: #{neg.1}
  #allocation0 [shape = 's32[1]{0}', space=sflag, size = 0x4, scoped, tag = 'scoped memory for neg.1']
  %s0 = inlined_call_operand.vmem [shape: f32[2,8,16], index: 0, kind: input, shape index: {}]
  %s1 = inlined_call_operand.vmem [shape: f32[2,8,16], index: 1, kind: output, shape index: {}]
  %v2 = vld [vmem:[%s0] sm:$0xff]
  %3 = xla_tuple %v2
  %4 = xla_tuple %3
  %v5 = vxor.u32 %v2, 2147483648
  %6 = xla_tuple %v5
  %7 = vst [vmem:[%s1] sm:$0xff] %v5
  %s8 = scalar_lea.vmem %s0, 8
  %v9 = vld [vmem:[%s8] sm:$0xff]
  %10 = xla_tuple %v9
  %11 = xla_tuple %10
  %v12 = vxor.u32 %v9, 2147483648
  %13 = xla_tuple %v12
  %s14 = scalar_lea.vmem %s1, 8
  %15 = vst [vmem:[%s14] sm:$0xff] %v12

// kernel: pointconvw_forward.2
$region0: #{pointconvw_forward.2}
  #allocation0 [shape = 'u32[]', space=smem, size = 0x4, offset = 0x4, fixed_abs, tag = 'smem constant byte address 0x4 - core index']
  #allocation1 [shape = 'u32[144,128]{1,0:T(1,128)}', space=vmem, size = 0x12000, scoped, tag = 'internal scratch']
  %s0 = inlined_call_operand.vmem [shape: f32[2,3,8], index: 0, kind: input, shape index: {}]
  %s1 = inlined_call_operand.vmem [shape: f32[2,3,16], index: 1, kind: input, shape index: {}]
  %s2 = inlined_call_operand.vmem [shape: f32[2,8,16], index: 2, kind: output, shape index: {}]
  %s3 = sld [smem:[#allocation0]]
  $region41: #{pointconvw_forward.2} parent=0
    _
  %s5 = ssub.s32 1, %s3
  %s6 = scalar_select 0, %s5, %s3
  loop: start=0, step=1, limit=4
  $region2: #{pointconvw_forward.2} parent=0 // loop_pre_header
    _
  $region3: #{pointconvw_forward.2} parent=0 // loop_header
    %s8 = sphi 0, %s12
    %p9 = scmp.ge.s32.totalorder %s8, 4
    %s15 = sphi 0, %s34
    %s16 = sphi 0, %s30
    %s17 = sphi 0, %s26
    %s18 = sphi 0, %s15
    %s19 = sphi 0, %s16
    %s20 = sphi 0, %s17
    %s21 = sphi 0, %s18
    %s22 = sphi 0, %s19
    %s23 = sphi 0, %s20
    %s39 = sphi 0, %s41
    %s42 = sphi 0, %s39
    %s43 = sphi 0, %s42
    %s59 = sphi 0, %s43
    %s67 = sphi 0, %s69
    %s70 = sphi 0, %s67
    %s71 = sphi 0, %s70
    %s87 = sphi 0, %s71
    %s97 = sphi 0, %s99
    %s100 = sphi 0, %s97
    %s101 = sphi 0, %s100
    %s117 = sphi 0, %s101
  $region4: #{pointconvw_forward.2} parent=0 // loop_header_branch
    %11 = sbr.rel (%p9) target = $region8
  $region5: #{pointconvw_forward.2} parent=0 // loop_body
    %s13 = ssub.s32 %s8, 1
    %s14 = ssub.s32 %s8, 2
    %s24 = sadd.s32 1, %s17
    %p25 = scmp.ge.s32.totalorder %s24, 1
    %s26 = scalar_select %p25, 0, %s24
    %s27 = sadd.s32 1, %s16
    %s28 = scalar_select %p25, %s27, %s16
    %p29 = scmp.ge.s32.totalorder %s28, 1
    %s30 = scalar_select %p29, 0, %s28
    %s31 = sadd.s32 1, %s15
    %s32 = scalar_select %p29, %s31, %s15
    %p33 = scmp.ge.s32.totalorder %s32, 2
    %s34 = scalar_select %p33, 0, %s32
    %s35 = ssub.s32 %s15, %s34
    %s36 = ssub.s32 %s16, %s30
    %s37 = sor.u32 %s35, %s36
    %p38 = scmp.eq.s32.totalorder %s37, 0
    %s40 = sadd.s32 %s39, 1
    %s41 = scalar_select %p38, %s39, %s40
    %p44 = pneg %p38
    %p45 = scmp.eq.s32.totalorder %s8, 1
    %p46 = por %p44, %p45
    %p47 = scmp.ne.s32.totalorder %s39, %s42
    %p48 = scmp.eq.s32.totalorder %s8, 0
    %p49 = por %p47, %p48
    %p50 = scmp.ne.s32.totalorder %s39, %s42
    %p51 = scmp.eq.s32.totalorder %s13, 1
    %p52 = por %p50, %p51
    %p53 = scmp.ne.s32.totalorder %s42, %s43
    %p54 = scmp.eq.s32.totalorder %s13, 0
    %p55 = por %p53, %p54
    %p56 = scmp.ne.s32.totalorder %s42, %s43
    %p57 = scmp.eq.s32.totalorder %s14, 1
    %p58 = por %p56, %p57
    %p60 = scmp.ne.s32.totalorder %s43, %s59
    %p61 = scmp.eq.s32.totalorder %s14, 0
    %p62 = por %p60, %p61
    %s63 = ssub.s32 %s15, %s34
    %s64 = ssub.s32 %s17, %s26
    %s65 = sor.u32 %s63, %s64
    %p66 = scmp.eq.s32.totalorder %s65, 0
    %s68 = sadd.s32 %s67, 1
    %s69 = scalar_select %p66, %s67, %s68
    %p72 = pneg %p66
    %p73 = scmp.eq.s32.totalorder %s8, 1
    %p74 = por %p72, %p73
    %p75 = scmp.ne.s32.totalorder %s67, %s70
    %p76 = scmp.eq.s32.totalorder %s8, 0
    %p77 = por %p75, %p76
    %p78 = scmp.ne.s32.totalorder %s67, %s70
    %p79 = scmp.eq.s32.totalorder %s13, 1
    %p80 = por %p78, %p79
    %p81 = scmp.ne.s32.totalorder %s70, %s71
    %p82 = scmp.eq.s32.totalorder %s13, 0
    %p83 = por %p81, %p82
    %p84 = scmp.ne.s32.totalorder %s70, %s71
    %p85 = scmp.eq.s32.totalorder %s14, 1
    %p86 = por %p84, %p85
    %p88 = scmp.ne.s32.totalorder %s71, %s87
    %p89 = scmp.eq.s32.totalorder %s14, 0
    %p90 = por %p88, %p89
    %s91 = ssub.s32 %s15, %s34
    %s92 = ssub.s32 %s16, %s30
    %s93 = sor.u32 %s91, %s92
    %s94 = ssub.s32 %s17, %s26
    %s95 = sor.u32 %s93, %s94
    %p96 = scmp.eq.s32.totalorder %s95, 0
    %s98 = sadd.s32 %s97, 1
    %s99 = scalar_select %p96, %s97, %s98
    %p102 = pneg %p96
    %p103 = scmp.eq.s32.totalorder %s8, 1
    %p104 = por %p102, %p103
    %p105 = scmp.ne.s32.totalorder %s97, %s100
    %p106 = scmp.eq.s32.totalorder %s8, 0
    %p107 = por %p105, %p106
    %p108 = scmp.ne.s32.totalorder %s97, %s100
    %p109 = scmp.eq.s32.totalorder %s13, 1
    %p110 = por %p108, %p109
    %p111 = scmp.ne.s32.totalorder %s100, %s101
    %p112 = scmp.eq.s32.totalorder %s13, 0
    %p113 = por %p111, %p112
    %p114 = scmp.ne.s32.totalorder %s100, %s101
    %p115 = scmp.eq.s32.totalorder %s14, 1
    %p116 = por %p114, %p115
    %p118 = scmp.ne.s32.totalorder %s101, %s117
    %p119 = scmp.eq.s32.totalorder %s14, 0
    %p120 = por %p118, %p119
    %p121 = scmp.le.s32.totalorder 1, %s8
    %p122 = scmp.lt.s32.totalorder %s8, 3
    %p123 = pnand %p121, %p122
    %p124 = pneg %p123
    // Predicated region
    $region9: #{pointconvw_forward.2} parent=5 // pred_check
      _
    $region10: #{pointconvw_forward.2} parent=5 // pred_check_branch
      %126 = sbr.rel (%p123) target = $region12
    $region11: #{pointconvw_forward.2} parent=5 // pred_region
      %s127 = ssub.s32 %s8, 1
    $region12: #{pointconvw_forward.2} parent=5 // pred_fallthru
      _
    %p128 = scmp.lt.s32.totalorder %s8, 2
    // Predicated region
    $region13: #{pointconvw_forward.2} parent=5 // pred_check
      %p129 = pneg %p128
    $region14: #{pointconvw_forward.2} parent=5 // pred_check_branch
      %131 = sbr.rel (%p129) target = $region16
    $region15: #{pointconvw_forward.2} parent=5 // pred_region
      // Predicated region
      $region17: #{pointconvw_forward.2} parent=15 // pred_check
        %p132 = pneg %p49
      $region18: #{pointconvw_forward.2} parent=15 // pred_check_branch
        %134 = sbr.rel (%p132) target = $region20
      $region19: #{pointconvw_forward.2} parent=15 // pred_region
        %p135 = scmp.lt.s32.totalorder %s15, 1
        %s136 = scalar_select %p135, %s15, 1
        %p137 = scmp.lt.s32.totalorder %s16, 0
        %s138 = scalar_select %p137, %s16, 0
        %s139 = sadd.s32 %s138, %s136
        %s140 = smul.addr %s139, 4
        %s141 = scalar_lea.vmem %s0, %s140
      $region20: #{pointconvw_forward.2} parent=15 // pred_fallthru
        _
      // Predicated region
      $region21: #{pointconvw_forward.2} parent=15 // pred_check
        %p142 = pneg %p77
      $region22: #{pointconvw_forward.2} parent=15 // pred_check_branch
        %144 = sbr.rel (%p142) target = $region24
      $region23: #{pointconvw_forward.2} parent=15 // pred_region
        %p145 = scmp.lt.s32.totalorder %s15, 1
        %s146 = scalar_select %p145, %s15, 1
        %p147 = scmp.lt.s32.totalorder %s17, 0
        %s148 = scalar_select %p147, %s17, 0
        %s149 = sadd.s32 %s148, %s146
        %s150 = smul.addr %s149, 4
        %s151 = scalar_lea.vmem %s1, %s150
      $region24: #{pointconvw_forward.2} parent=15 // pred_fallthru
        _
    $region16: #{pointconvw_forward.2} parent=5 // pred_fallthru
      _
    %p152 = scmp.le.s32.totalorder 1, %s8
    %p153 = scmp.lt.s32.totalorder %s8, 3
    %p154 = pnand %p152, %p153
    %p155 = pneg %p154
    // Predicated region
    $region25: #{pointconvw_forward.2} parent=5 // pred_check
      _
    $region26: #{pointconvw_forward.2} parent=5 // pred_check_branch
      %157 = sbr.rel (%p154) target = $region28
    $region27: #{pointconvw_forward.2} parent=5 // pred_region
      %s158 = ssub.s32 %s8, 1
      %p159 = scmp.lt.s32.totalorder %s18, 1
      %s160 = scalar_select %p159, %s18, 1
      %p161 = scmp.lt.s32.totalorder %s19, 0
      %s162 = scalar_select %p161, %s19, 0
      %s163 = sadd.s32 %s162, %s160
      %s164 = smul.addr %s163, 4
      %s165 = scalar_lea.vmem %s0, %s164
      %p166 = pneg %p55
      %p167 = pneg %p52
      %p168 = scmp.lt.s32.totalorder %s18, 1
      %s169 = scalar_select %p168, %s18, 1
      %p170 = scmp.lt.s32.totalorder %s20, 0
      %s171 = scalar_select %p170, %s20, 0
      %s172 = sadd.s32 %s171, %s169
      %s173 = smul.addr %s172, 4
      %s174 = scalar_lea.vmem %s1, %s173
      %p175 = pneg %p83
      %p176 = pneg %p80
      %p177 = pneg %p113
      %p178 = pneg %p110
      %p179 = scmp.lt.s32.totalorder %s18, 1
      %s180 = scalar_select %p179, %s18, 1
      %p181 = scmp.lt.s32.totalorder %s19, 0
      %s182 = scalar_select %p181, %s19, 0
      %p183 = scmp.lt.s32.totalorder %s20, 0
      %s184 = scalar_select %p183, %s20, 0
      %s185 = sadd.s32 %s184, %s182
      %s186 = sadd.s32 %s185, %s180
      %s187 = smul.addr %s186, 8
      %s188 = scalar_lea.vmem %s2, %s187
      %p189 = scmp.lt.s32.totalorder %s18, 1
      %s190 = scalar_select %p189, %s18, 1
      %p191 = scmp.lt.s32.totalorder %s19, 0
      %s192 = scalar_select %p191, %s19, 0
      %s193 = sadd.s32 %s192, %s190
      %s194 = smul.addr %s193, 4
      %s195 = scalar_lea.vmem %s0, %s194
      %p196 = scmp.lt.s32.totalorder %s18, 1
      %s197 = scalar_select %p196, %s18, 1
      %p198 = scmp.lt.s32.totalorder %s20, 0
      %s199 = scalar_select %p198, %s20, 0
      %s200 = sadd.s32 %s199, %s197
      %s201 = smul.addr %s200, 4
      %s202 = scalar_lea.vmem %s1, %s201
      %p203 = scmp.lt.s32.totalorder %s18, 1
      %s204 = scalar_select %p203, %s18, 1
      %p205 = scmp.lt.s32.totalorder %s19, 0
      %s206 = scalar_select %p205, %s19, 0
      %p207 = scmp.lt.s32.totalorder %s20, 0
      %s208 = scalar_select %p207, %s20, 0
      %s209 = sadd.s32 %s208, %s206
      %s210 = sadd.s32 %s209, %s204
      %s211 = smul.addr %s210, 8
      %s212 = scalar_lea.vmem %s2, %s211
      %v213 = vld [vmem:[%s195] sm:$0x7]
      %v214 = vld [vmem:[%s202] sm:$0x7]
      %v215 = vmul.f32 %v213, %v213
      %vm216 = vcmask 59392
      %v217 = vsel %vm216, %v215, 0.0
      %v218 = vrot.slane %v217, 4
      %v219 = vadd.f32 %v217, %v218
      %v220 = vrot.slane %v219, 2
      %v221 = vadd.f32 %v219, %v220
      %v222 = vrot.slane %v221, 1
      %v223 = vadd.f32 %v221, %v222
      %v224 = vmul.f32 %v214, %v214
      %vm225 = vcmask 124928
      %v226 = vsel %vm225, %v224, 0.0
      %v227 = vrot.slane %v226, 4
      %v228 = vadd.f32 %v226, %v227
      %v229 = vrot.slane %v228, 2
      %v230 = vadd.f32 %v228, %v229
      %v231 = vrot.slane %v230, 1
      %v232 = vadd.f32 %v230, %v231
      %v233 = vmul.f32 %v213, -2.0
      %vm234 = vcmask 1042432
      %v235 = vsel %vm234, %v233, %v223
      %vm236 = vcmask 1043456
      %v237 = vsel %vm236, %v235, 1.0
      %v238 = vsel %vm234, %v214, 1.0
      %v239 = vsel %vm236, %v238, %v232
      %240 = vxpose.xlu0.b32.start [1/16] %v237, 128
      %241 = vxpose.xlu0.b32.cont [2/16] 0.0, 128
      %242 = vxpose.xlu0.b32.cont [3/16] 0.0, 128
      %243 = vxpose.xlu0.b32.cont [4/16] 0.0, 128
      %244 = vxpose.xlu0.b32.cont [5/16] 0.0, 128
      %245 = vxpose.xlu0.b32.cont [6/16] 0.0, 128
      %246 = vxpose.xlu0.b32.cont [7/16] 0.0, 128
      %247 = vxpose.xlu0.b32.cont [8/16] 0.0, 128
      %248 = vxpose.xlu0.b32.cont [9/16] 0.0, 128
      %249 = vxpose.xlu0.b32.cont [10/16] 0.0, 128
      %250 = vxpose.xlu0.b32.cont [11/16] 0.0, 128
      %251 = vxpose.xlu0.b32.cont [12/16] 0.0, 128
      %252 = vxpose.xlu0.b32.cont [13/16] 0.0, 128
      %253 = vxpose.xlu0.b32.cont [14/16] 0.0, 128
      %254 = vxpose.xlu0.b32.cont [15/16] 0.0, 128
      %255 = vxpose.xlu0.b32.end [16/16] 0.0, 128
      %v256 = vpop.trf.xlu0
      %v257 = vpop.trf.xlu0
      %v258 = vpop.trf.xlu0
      %v259 = vpop.trf.xlu0
      %v260 = vpop.trf.xlu0
      %v261 = vpop.trf.xlu0
      %v262 = vpop.trf.xlu0
      %v263 = vpop.trf.xlu0
      %v264 = vpop.trf.xlu0
      %v265 = vpop.trf.xlu0
      %v266 = vpop.trf.xlu0
      %v267 = vpop.trf.xlu0
      %v268 = vpop.trf.xlu0
      %v269 = vpop.trf.xlu0
      %v270 = vpop.trf.xlu0
      %v271 = vpop.trf.xlu0
      %vm272 = vcmask 39936
      %v274 = vsel %vm272, %v256, 0
      %vm276 = vcmask 1044480
      %v278 = vsel %vm276, %v239, 0
      %280 = vmatprep.subr.mxu0 0.0
      %281 = vmatpush1.msra.mxu0 %v278
      %282 = vmatprep.subr.mxu0 0.0
      %283 = vmatpush1.msra.mxu0 0.0
      %284 = vmatprep.subr.mxu0 0.0
      %285 = vmatpush1.msra.mxu0 0.0
      %286 = vmatprep.subr.mxu0 0.0
      %287 = vmatpush1.msra.mxu0 0.0
      %288 = vmatprep.subr.mxu0 0.0
      %289 = vmatpush1.msra.mxu0 0.0
      %290 = vmatprep.subr.mxu0 0.0
      %291 = vmatpush1.msra.mxu0 0.0
      %292 = vmatprep.subr.mxu0 0.0
      %293 = vmatpush1.msra.mxu0 0.0
      %294 = vmatprep.subr.mxu0 0.0
      %295 = vmatpush1.msra.mxu0 0.0
      %296 = vmatprep.subr.mxu0 0.0
      %297 = vmatpush1.msra.mxu0 0.0
      %298 = vmatprep.subr.mxu0 0.0
      %299 = vmatpush1.msra.mxu0 0.0
      %300 = vmatprep.subr.mxu0 0.0
      %301 = vmatpush1.msra.mxu0 0.0
      %302 = vmatprep.subr.mxu0 0.0
      %303 = vmatpush1.msra.mxu0 0.0
      %304 = vmatprep.subr.mxu0 0.0
      %305 = vmatpush1.msra.mxu0 0.0
      %306 = vmatprep.subr.mxu0 0.0
      %307 = vmatpush1.msra.mxu0 0.0
      %308 = vmatprep.subr.mxu0 0.0
      %309 = vmatpush1.msra.mxu0 0.0
      %310 = vmatprep.subr.mxu0 0.0
      %311 = vmatpush1.msra.mxu0 0.0
      %312 = vmatprep.subr.mxu0 0.0
      %313 = vmatpush1.msra.mxu0 0.0
      %314 = vmatprep.subr.mxu0 0.0
      %315 = vmatpush1.msra.mxu0 0.0
      %316 = vmatprep.subr.mxu0 0.0
      %317 = vmatpush1.msra.mxu0 0.0
      %318 = vmatprep.subr.mxu0 0.0
      %319 = vmatpush1.msra.mxu0 0.0
      %320 = vmatprep.subr.mxu0 0.0
      %321 = vmatpush1.msra.mxu0 0.0
      %322 = vmatprep.subr.mxu0 0.0
      %323 = vmatpush1.msra.mxu0 0.0
      %324 = vmatprep.subr.mxu0 0.0
      %325 = vmatpush1.msra.mxu0 0.0
      %326 = vmatprep.subr.mxu0 0.0
      %327 = vmatpush1.msra.mxu0 0.0
      %328 = vmatprep.subr.mxu0 0.0
      %329 = vmatpush1.msra.mxu0 0.0
      %330 = vmatprep.subr.mxu0 0.0
      %331 = vmatpush1.msra.mxu0 0.0
      %332 = vmatprep.subr.mxu0 0.0
      %333 = vmatpush1.msra.mxu0 0.0
      %334 = vmatprep.subr.mxu0 0.0
      %335 = vmatpush1.msra.mxu0 0.0
      %336 = vmatprep.subr.mxu0 0.0
      %337 = vmatpush1.msra.mxu0 0.0
      %338 = vmatprep.subr.mxu0 0.0
      %339 = vmatpush1.msra.mxu0 0.0
      %340 = vmatprep.subr.mxu0 0.0
      %341 = vmatpush1.msra.mxu0 0.0
      %342 = vmatprep.subr.mxu0 0.0
      %343 = vmatpush1.msra.mxu0 0.0
      %344 = vmatprep.mubr.f32.mxu0 0.0
      %345 = vmatmul.mubr.f32.gmra.mrb[0].mxu0 %v274
      %v346 = vpop.f32.mrb[0].mxu0
      %v347 = vadd.f32 0.0, %v346
      %v348 = vpop.f32.mrb[0].mxu0
      %349 = vdwg.mxu0
      %vm350 = vcmask 130048
      %351 = vst.msk [vmem:[%s212] sm:$0xff] %vm350, %v347
      %p352 = scmp.lt.s32.totalorder %s18, 1
      %s353 = scalar_select %p352, %s18, 1
      %p354 = scmp.lt.s32.totalorder %s19, 0
      %s355 = scalar_select %p354, %s19, 0
      %p356 = scmp.lt.s32.totalorder %s20, 0
      %s357 = scalar_select %p356, %s20, 0
      %s358 = sadd.s32 %s357, %s355
      %s359 = sadd.s32 %s358, %s353
      %s360 = smul.addr %s359, 8
      %s361 = scalar_lea.vmem %s2, %s360
      // Predicated region
      $region29: #{pointconvw_forward.2} parent=27 // pred_check
        %p362 = pneg %p110
      $region30: #{pointconvw_forward.2} parent=27 // pred_check_branch
        %364 = sbr.rel (%p362) target = $region32
      $region31: #{pointconvw_forward.2} parent=27 // pred_region
        _
      $region32: #{pointconvw_forward.2} parent=27 // pred_fallthru
        _
    $region28: #{pointconvw_forward.2} parent=5 // pred_fallthru
      _
    %p365 = scmp.le.s32.totalorder 2, %s8
    // Predicated region
    $region33: #{pointconvw_forward.2} parent=5 // pred_check
      %p366 = pneg %p365
    $region34: #{pointconvw_forward.2} parent=5 // pred_check_branch
      %368 = sbr.rel (%p366) target = $region36
    $region35: #{pointconvw_forward.2} parent=5 // pred_region
      %s369 = ssub.s32 %s8, 2
      // Predicated region
      $region37: #{pointconvw_forward.2} parent=35 // pred_check
        %p370 = pneg %p116
      $region38: #{pointconvw_forward.2} parent=35 // pred_check_branch
        %372 = sbr.rel (%p370) target = $region40
      $region39: #{pointconvw_forward.2} parent=35 // pred_region
        %p373 = scmp.lt.s32.totalorder %s21, 1
        %s374 = scalar_select %p373, %s21, 1
        %p375 = scmp.lt.s32.totalorder %s22, 0
        %s376 = scalar_select %p375, %s22, 0
        %p377 = scmp.lt.s32.totalorder %s23, 0
        %s378 = scalar_select %p377, %s23, 0
        %s379 = sadd.s32 %s378, %s376
        %s380 = sadd.s32 %s379, %s374
        %s381 = smul.addr %s380, 8
        %s382 = scalar_lea.vmem %s2, %s381
      $region40: #{pointconvw_forward.2} parent=35 // pred_fallthru
        _
    $region36: #{pointconvw_forward.2} parent=5 // pred_fallthru
      _
  $region6: #{pointconvw_forward.2} parent=0 // loop_footer
    %s12 = sadd.s32 1, %s8
  $region7: #{pointconvw_forward.2} parent=0 // loop_footer_branch
    %7 = sbr.rel target = $region3
  $region8: #{pointconvw_forward.2} parent=0 // loop_exit
    _

// kernel: pointconvw_forward.3
$region0: #{pointconvw_forward.3}
  #allocation0 [shape = 'u32[]', space=smem, size = 0x4, offset = 0x4, fixed_abs, tag = 'smem constant byte address 0x4 - core index']
  #allocation1 [shape = 'u32[144,128]{1,0:T(1,128)}', space=vmem, size = 0x12000, scoped, tag = 'internal scratch']
  #allocation2 [shape = 'f32[8,32,8]{2,1,0:T(8,128)}', space=vmem, size = 0x20000, scoped, tag = 'scratch operand']
  %s0 = inlined_call_operand.vmem [shape: f32[2,8,8,8], index: 0, kind: input, shape index: {}]
  %s1 = inlined_call_operand.vmem [shape: f32[32,8], index: 1, kind: input, shape index: {}]
  %s2 = inlined_call_operand.vmem [shape: f32[32,32], index: 2, kind: input, shape index: {}]
  %s3 = inlined_call_operand.vmem [shape: f32[32,8], index: 3, kind: input, shape index: {}]
  %s4 = inlined_call_operand.vmem [shape: f32[8,32], index: 4, kind: input, shape index: {}]
  %s5 = inlined_call_operand.vmem [shape: f32[8,8], index: 5, kind: input, shape index: {}]
  %s6 = inlined_call_operand.vmem [shape: f32[32,32], index: 6, kind: input, shape index: {}]
  %s7 = inlined_call_operand.vmem [shape: f32[8,8], index: 7, kind: input, shape index: {}]
  %s8 = inlined_call_operand.vmem [shape: f32[2,32,8], index: 8, kind: output, shape index: {}]
  %s9 = sld [smem:[#allocation0]]
  $region65: #{pointconvw_forward.3} parent=0
    _
  %s11 = ssub.s32 1, %s9
  %s12 = scalar_select 0, %s11, %s9
  loop: start=0, step=1, limit=4
  $region2: #{pointconvw_forward.3} parent=0 // loop_pre_header
    _
  $region3: #{pointconvw_forward.3} parent=0 // loop_header
    %s14 = sphi 0, %s18
    %p15 = scmp.ge.s32.totalorder %s14, 4
    %s21 = sphi 0, %s33
    %s22 = sphi 0, %s29
    %s23 = sphi 0, %s21
    %s24 = sphi 0, %s22
    %s25 = sphi 0, %s23
    %s26 = sphi 0, %s24
    %s38 = sphi 0, %s40
    %s41 = sphi 0, %s38
    %s42 = sphi 0, %s41
    %s58 = sphi 0, %s42
    %s62 = sphi 0, %s62
    %s64 = sphi 0, %s62
    %s65 = sphi 0, %s64
    %s79 = sphi 0, %s65
    %s83 = sphi 0, %s83
    %s85 = sphi 0, %s83
    %s86 = sphi 0, %s85
    %s100 = sphi 0, %s86
    %s104 = sphi 0, %s104
    %s106 = sphi 0, %s104
    %s107 = sphi 0, %s106
    %s121 = sphi 0, %s107
    %s125 = sphi 0, %s125
    %s127 = sphi 0, %s125
    %s128 = sphi 0, %s127
    %s142 = sphi 0, %s128
    %s146 = sphi 0, %s146
    %s148 = sphi 0, %s146
    %s149 = sphi 0, %s148
    %s163 = sphi 0, %s149
    %s167 = sphi 0, %s167
    %s169 = sphi 0, %s167
    %s170 = sphi 0, %s169
    %s184 = sphi 0, %s170
    %s188 = sphi 0, %s188
    %s190 = sphi 0, %s188
    %s191 = sphi 0, %s190
    %s205 = sphi 0, %s191
    %s213 = sphi 0, %s215
    %s216 = sphi 0, %s213
    %s217 = sphi 0, %s216
    %s233 = sphi 0, %s217
  $region4: #{pointconvw_forward.3} parent=0 // loop_header_branch
    %17 = sbr.rel (%p15) target = $region8
  $region5: #{pointconvw_forward.3} parent=0 // loop_body
    %s19 = ssub.s32 %s14, 1
    %s20 = ssub.s32 %s14, 2
    %s27 = sadd.s32 1, %s22
    %p28 = scmp.ge.s32.totalorder %s27, 1
    %s29 = scalar_select %p28, 0, %s27
    %s30 = sadd.s32 1, %s21
    %s31 = scalar_select %p28, %s30, %s21
    %p32 = scmp.ge.s32.totalorder %s31, 2
    %s33 = scalar_select %p32, 0, %s31
    %s34 = ssub.s32 %s21, %s33
    %s35 = ssub.s32 %s22, %s29
    %s36 = sor.u32 %s34, %s35
    %p37 = scmp.eq.s32.totalorder %s36, 0
    %s39 = sadd.s32 %s38, 1
    %s40 = scalar_select %p37, %s38, %s39
    %p43 = pneg %p37
    %p44 = scmp.eq.s32.totalorder %s14, 1
    %p45 = por %p43, %p44
    %p46 = scmp.ne.s32.totalorder %s38, %s41
    %p47 = scmp.eq.s32.totalorder %s14, 0
    %p48 = por %p46, %p47
    %p49 = scmp.ne.s32.totalorder %s38, %s41
    %p50 = scmp.eq.s32.totalorder %s19, 1
    %p51 = por %p49, %p50
    %p52 = scmp.ne.s32.totalorder %s41, %s42
    %p53 = scmp.eq.s32.totalorder %s19, 0
    %p54 = por %p52, %p53
    %p55 = scmp.ne.s32.totalorder %s41, %s42
    %p56 = scmp.eq.s32.totalorder %s20, 1
    %p57 = por %p55, %p56
    %p59 = scmp.ne.s32.totalorder %s42, %s58
    %p60 = scmp.eq.s32.totalorder %s20, 0
    %p61 = por %p59, %p60
    %s63 = sadd.s32 %s62, 1
    %p66 = scmp.eq.s32.totalorder %s14, 1
    %p67 = scmp.ne.s32.totalorder %s62, %s64
    %p68 = scmp.eq.s32.totalorder %s14, 0
    %p69 = por %p67, %p68
    %p70 = scmp.ne.s32.totalorder %s62, %s64
    %p71 = scmp.eq.s32.totalorder %s19, 1
    %p72 = por %p70, %p71
    %p73 = scmp.ne.s32.totalorder %s64, %s65
    %p74 = scmp.eq.s32.totalorder %s19, 0
    %p75 = por %p73, %p74
    %p76 = scmp.ne.s32.totalorder %s64, %s65
    %p77 = scmp.eq.s32.totalorder %s20, 1
    %p78 = por %p76, %p77
    %p80 = scmp.ne.s32.totalorder %s65, %s79
    %p81 = scmp.eq.s32.totalorder %s20, 0
    %p82 = por %p80, %p81
    %s84 = sadd.s32 %s83, 1
    %p87 = scmp.eq.s32.totalorder %s14, 1
    %p88 = scmp.ne.s32.totalorder %s83, %s85
    %p89 = scmp.eq.s32.totalorder %s14, 0
    %p90 = por %p88, %p89
    %p91 = scmp.ne.s32.totalorder %s83, %s85
    %p92 = scmp.eq.s32.totalorder %s19, 1
    %p93 = por %p91, %p92
    %p94 = scmp.ne.s32.totalorder %s85, %s86
    %p95 = scmp.eq.s32.totalorder %s19, 0
    %p96 = por %p94, %p95
    %p97 = scmp.ne.s32.totalorder %s85, %s86
    %p98 = scmp.eq.s32.totalorder %s20, 1
    %p99 = por %p97, %p98
    %p101 = scmp.ne.s32.totalorder %s86, %s100
    %p102 = scmp.eq.s32.totalorder %s20, 0
    %p103 = por %p101, %p102
    %s105 = sadd.s32 %s104, 1
    %p108 = scmp.eq.s32.totalorder %s14, 1
    %p109 = scmp.ne.s32.totalorder %s104, %s106
    %p110 = scmp.eq.s32.totalorder %s14, 0
    %p111 = por %p109, %p110
    %p112 = scmp.ne.s32.totalorder %s104, %s106
    %p113 = scmp.eq.s32.totalorder %s19, 1
    %p114 = por %p112, %p113
    %p115 = scmp.ne.s32.totalorder %s106, %s107
    %p116 = scmp.eq.s32.totalorder %s19, 0
    %p117 = por %p115, %p116
    %p118 = scmp.ne.s32.totalorder %s106, %s107
    %p119 = scmp.eq.s32.totalorder %s20, 1
    %p120 = por %p118, %p119
    %p122 = scmp.ne.s32.totalorder %s107, %s121
    %p123 = scmp.eq.s32.totalorder %s20, 0
    %p124 = por %p122, %p123
    %s126 = sadd.s32 %s125, 1
    %p129 = scmp.eq.s32.totalorder %s14, 1
    %p130 = scmp.ne.s32.totalorder %s125, %s127
    %p131 = scmp.eq.s32.totalorder %s14, 0
    %p132 = por %p130, %p131
    %p133 = scmp.ne.s32.totalorder %s125, %s127
    %p134 = scmp.eq.s32.totalorder %s19, 1
    %p135 = por %p133, %p134
    %p136 = scmp.ne.s32.totalorder %s127, %s128
    %p137 = scmp.eq.s32.totalorder %s19, 0
    %p138 = por %p136, %p137
    %p139 = scmp.ne.s32.totalorder %s127, %s128
    %p140 = scmp.eq.s32.totalorder %s20, 1
    %p141 = por %p139, %p140
    %p143 = scmp.ne.s32.totalorder %s128, %s142
    %p144 = scmp.eq.s32.totalorder %s20, 0
    %p145 = por %p143, %p144
    %s147 = sadd.s32 %s146, 1
    %p150 = scmp.eq.s32.totalorder %s14, 1
    %p151 = scmp.ne.s32.totalorder %s146, %s148
    %p152 = scmp.eq.s32.totalorder %s14, 0
    %p153 = por %p151, %p152
    %p154 = scmp.ne.s32.totalorder %s146, %s148
    %p155 = scmp.eq.s32.totalorder %s19, 1
    %p156 = por %p154, %p155
    %p157 = scmp.ne.s32.totalorder %s148, %s149
    %p158 = scmp.eq.s32.totalorder %s19, 0
    %p159 = por %p157, %p158
    %p160 = scmp.ne.s32.totalorder %s148, %s149
    %p161 = scmp.eq.s32.totalorder %s20, 1
    %p162 = por %p160, %p161
    %p164 = scmp.ne.s32.totalorder %s149, %s163
    %p165 = scmp.eq.s32.totalorder %s20, 0
    %p166 = por %p164, %p165
    %s168 = sadd.s32 %s167, 1
    %p171 = scmp.eq.s32.totalorder %s14, 1
    %p172 = scmp.ne.s32.totalorder %s167, %s169
    %p173 = scmp.eq.s32.totalorder %s14, 0
    %p174 = por %p172, %p173
    %p175 = scmp.ne.s32.totalorder %s167, %s169
    %p176 = scmp.eq.s32.totalorder %s19, 1
    %p177 = por %p175, %p176
    %p178 = scmp.ne.s32.totalorder %s169, %s170
    %p179 = scmp.eq.s32.totalorder %s19, 0
    %p180 = por %p178, %p179
    %p181 = scmp.ne.s32.totalorder %s169, %s170
    %p182 = scmp.eq.s32.totalorder %s20, 1
    %p183 = por %p181, %p182
    %p185 = scmp.ne.s32.totalorder %s170, %s184
    %p186 = scmp.eq.s32.totalorder %s20, 0
    %p187 = por %p185, %p186
    %s189 = sadd.s32 %s188, 1
    %p192 = scmp.eq.s32.totalorder %s14, 1
    %p193 = scmp.ne.s32.totalorder %s188, %s190
    %p194 = scmp.eq.s32.totalorder %s14, 0
    %p195 = por %p193, %p194
    %p196 = scmp.ne.s32.totalorder %s188, %s190
    %p197 = scmp.eq.s32.totalorder %s19, 1
    %p198 = por %p196, %p197
    %p199 = scmp.ne.s32.totalorder %s190, %s191
    %p200 = scmp.eq.s32.totalorder %s19, 0
    %p201 = por %p199, %p200
    %p202 = scmp.ne.s32.totalorder %s190, %s191
    %p203 = scmp.eq.s32.totalorder %s20, 1
    %p204 = por %p202, %p203
    %p206 = scmp.ne.s32.totalorder %s191, %s205
    %p207 = scmp.eq.s32.totalorder %s20, 0
    %p208 = por %p206, %p207
    %s209 = ssub.s32 %s21, %s33
    %s210 = ssub.s32 %s22, %s29
    %s211 = sor.u32 %s209, %s210
    %p212 = scmp.eq.s32.totalorder %s211, 0
    %s214 = sadd.s32 %s213, 1
    %s215 = scalar_select %p212, %s213, %s214
    %p218 = pneg %p212
    %p219 = scmp.eq.s32.totalorder %s14, 1
    %p220 = por %p218, %p219
    %p221 = scmp.ne.s32.totalorder %s213, %s216
    %p222 = scmp.eq.s32.totalorder %s14, 0
    %p223 = por %p221, %p222
    %p224 = scmp.ne.s32.totalorder %s213, %s216
    %p225 = scmp.eq.s32.totalorder %s19, 1
    %p226 = por %p224, %p225
    %p227 = scmp.ne.s32.totalorder %s216, %s217
    %p228 = scmp.eq.s32.totalorder %s19, 0
    %p229 = por %p227, %p228
    %p230 = scmp.ne.s32.totalorder %s216, %s217
    %p231 = scmp.eq.s32.totalorder %s20, 1
    %p232 = por %p230, %p231
    %p234 = scmp.ne.s32.totalorder %s217, %s233
    %p235 = scmp.eq.s32.totalorder %s20, 0
    %p236 = por %p234, %p235
    %p237 = scmp.le.s32.totalorder 1, %s14
    %p238 = scmp.lt.s32.totalorder %s14, 3
    %p239 = pnand %p237, %p238
    %p240 = pneg %p239
    // Predicated region
    $region9: #{pointconvw_forward.3} parent=5 // pred_check
      _
    $region10: #{pointconvw_forward.3} parent=5 // pred_check_branch
      %242 = sbr.rel (%p239) target = $region12
    $region11: #{pointconvw_forward.3} parent=5 // pred_region
      %s243 = ssub.s32 %s14, 1
      // Predicated region
      $region13: #{pointconvw_forward.3} parent=11 // pred_check
        %p244 = pneg %p75
      $region14: #{pointconvw_forward.3} parent=11 // pred_check_branch
        %246 = sbr.rel (%p244) target = $region16
      $region15: #{pointconvw_forward.3} parent=11 // pred_region
        _
      $region16: #{pointconvw_forward.3} parent=11 // pred_fallthru
        _
      // Predicated region
      $region17: #{pointconvw_forward.3} parent=11 // pred_check
        %p247 = pneg %p96
      $region18: #{pointconvw_forward.3} parent=11 // pred_check_branch
        %249 = sbr.rel (%p247) target = $region20
      $region19: #{pointconvw_forward.3} parent=11 // pred_region
        _
      $region20: #{pointconvw_forward.3} parent=11 // pred_fallthru
        _
      // Predicated region
      $region21: #{pointconvw_forward.3} parent=11 // pred_check
        %p250 = pneg %p117
      $region22: #{pointconvw_forward.3} parent=11 // pred_check_branch
        %252 = sbr.rel (%p250) target = $region24
      $region23: #{pointconvw_forward.3} parent=11 // pred_region
        _
      $region24: #{pointconvw_forward.3} parent=11 // pred_fallthru
        _
      // Predicated region
      $region25: #{pointconvw_forward.3} parent=11 // pred_check
        %p253 = pneg %p138
      $region26: #{pointconvw_forward.3} parent=11 // pred_check_branch
        %255 = sbr.rel (%p253) target = $region28
      $region27: #{pointconvw_forward.3} parent=11 // pred_region
        _
      $region28: #{pointconvw_forward.3} parent=11 // pred_fallthru
        _
      // Predicated region
      $region29: #{pointconvw_forward.3} parent=11 // pred_check
        %p256 = pneg %p159
      $region30: #{pointconvw_forward.3} parent=11 // pred_check_branch
        %258 = sbr.rel (%p256) target = $region32
      $region31: #{pointconvw_forward.3} parent=11 // pred_region
        _
      $region32: #{pointconvw_forward.3} parent=11 // pred_fallthru
        _
      // Predicated region
      $region33: #{pointconvw_forward.3} parent=11 // pred_check
        %p259 = pneg %p180
      $region34: #{pointconvw_forward.3} parent=11 // pred_check_branch
        %261 = sbr.rel (%p259) target = $region36
      $region35: #{pointconvw_forward.3} parent=11 // pred_region
        _
      $region36: #{pointconvw_forward.3} parent=11 // pred_fallthru
        _
      // Predicated region
      $region37: #{pointconvw_forward.3} parent=11 // pred_check
        %p262 = pneg %p201
      $region38: #{pointconvw_forward.3} parent=11 // pred_check_branch
        %264 = sbr.rel (%p262) target = $region40
      $region39: #{pointconvw_forward.3} parent=11 // pred_region
        _
      $region40: #{pointconvw_forward.3} parent=11 // pred_fallthru
        _
    $region12: #{pointconvw_forward.3} parent=5 // pred_fallthru
      _
    %p265 = scmp.lt.s32.totalorder %s14, 2
    // Predicated region
    $region41: #{pointconvw_forward.3} parent=5 // pred_check
      %p266 = pneg %p265
    $region42: #{pointconvw_forward.3} parent=5 // pred_check_branch
      %268 = sbr.rel (%p266) target = $region44
    $region43: #{pointconvw_forward.3} parent=5 // pred_region
      // Predicated region
      $region45: #{pointconvw_forward.3} parent=43 // pred_check
        %p269 = pneg %p48
      $region46: #{pointconvw_forward.3} parent=43 // pred_check_branch
        %271 = sbr.rel (%p269) target = $region48
      $region47: #{pointconvw_forward.3} parent=43 // pred_region
        %p272 = scmp.lt.s32.totalorder %s21, 1
        %s273 = scalar_select %p272, %s21, 1
        %p274 = scmp.lt.s32.totalorder %s22, 0
        %s275 = scalar_select %p274, %s22, 0
        %s276 = smul.addr %s273, 8
        %s277 = sadd.s32 %s275, %s276
        %s278 = smul.addr %s277, 8
        %s279 = scalar_lea.vmem %s0, %s278
      $region48: #{pointconvw_forward.3} parent=43 // pred_fallthru
        _
    $region44: #{pointconvw_forward.3} parent=5 // pred_fallthru
      _
    %p280 = scmp.le.s32.totalorder 1, %s14
    %p281 = scmp.lt.s32.totalorder %s14, 3
    %p282 = pnand %p280, %p281
    %p283 = pneg %p282
    // Predicated region
    $region49: #{pointconvw_forward.3} parent=5 // pred_check
      _
    $region50: #{pointconvw_forward.3} parent=5 // pred_check_branch
      %285 = sbr.rel (%p282) target = $region52
    $region51: #{pointconvw_forward.3} parent=5 // pred_region
      %s286 = ssub.s32 %s14, 1
      %p287 = scmp.lt.s32.totalorder %s23, 1
      %s288 = scalar_select %p287, %s23, 1
      %p289 = scmp.lt.s32.totalorder %s24, 0
      %s290 = scalar_select %p289, %s24, 0
      %s291 = smul.addr %s288, 8
      %s292 = sadd.s32 %s290, %s291
      %s293 = smul.addr %s292, 8
      %s294 = scalar_lea.vmem %s0, %s293
      %p295 = pneg %p54
      %p296 = pneg %p51
      %p297 = pneg %p75
      %p298 = pneg %p72
      %p299 = pneg %p96
      %p300 = pneg %p93
      %p301 = pneg %p117
      %p302 = pneg %p114
      %p303 = pneg %p138
      %p304 = pneg %p135
      %p305 = pneg %p159
      %p306 = pneg %p156
      %p307 = pneg %p180
      %p308 = pneg %p177
      %p309 = pneg %p201
      %p310 = pneg %p198
      %p311 = pneg %p229
      %p312 = pneg %p226
      %p313 = scmp.lt.s32.totalorder %s23, 1
      %s314 = scalar_select %p313, %s23, 1
      %p315 = scmp.lt.s32.totalorder %s24, 0
      %s316 = scalar_select %p315, %s24, 0
      %s317 = smul.addr %s314, 4
      %s318 = sadd.s32 %s316, %s317
      %s319 = smul.addr %s318, 8
      %s320 = scalar_lea.vmem %s8, %s319
      %p321 = scmp.lt.s32.totalorder %s23, 1
      %s322 = scalar_select %p321, %s23, 1
      %p323 = scmp.lt.s32.totalorder %s24, 0
      %s324 = scalar_select %p323, %s24, 0
      %s325 = smul.addr %s322, 8
      %s326 = sadd.s32 %s324, %s325
      %s327 = smul.addr %s326, 8
      %s328 = scalar_lea.vmem %s0, %s327
      %p329 = scmp.lt.s32.totalorder %s23, 1
      %s330 = scalar_select %p329, %s23, 1
      %p331 = scmp.lt.s32.totalorder %s24, 0
      %s332 = scalar_select %p331, %s24, 0
      %s333 = smul.addr %s330, 4
      %s334 = sadd.s32 %s332, %s333
      %s335 = smul.addr %s334, 8
      %s336 = scalar_lea.vmem %s8, %s335
      %v337 = vld [vmem:[%s1] sm:$0xff]
      %v338 = vld [vmem:[%s1 + $0x8] sm:$0xff]
      %v339 = vld [vmem:[%s1 + $0x10] sm:$0xff]
      %v340 = vld [vmem:[%s1 + $0x18] sm:$0xff]
      %v341 = vld [vmem:[%s328] sm:$0xff]
      %vm342 = vcmask 64512
      %v344 = vsel %vm342, %v337, 0
      %v347 = vsel %vm342, %v338, 0
      %v350 = vsel %vm342, %v339, 0
      %v353 = vsel %vm342, %v340, 0
      %355 = vmatprep.subr.mxu0 0.0
      %356 = vmatpush1.msra.mxu0 %v341
      %357 = vmatprep.subr.mxu0 0.0
      %358 = vmatpush1.msra.mxu0 0.0
      %359 = vmatprep.subr.mxu0 0.0
      %360 = vmatpush1.msra.mxu0 0.0
      %361 = vmatprep.subr.mxu0 0.0
      %362 = vmatpush1.msra.mxu0 0.0
      %363 = vmatprep.subr.mxu0 0.0
      %364 = vmatpush1.msra.mxu0 0.0
      %365 = vmatprep.subr.mxu0 0.0
      %366 = vmatpush1.msra.mxu0 0.0
      %367 = vmatprep.subr.mxu0 0.0
      %368 = vmatpush1.msra.mxu0 0.0
      %369 = vmatprep.subr.mxu0 0.0
      %370 = vmatpush1.msra.mxu0 0.0
      %371 = vmatprep.subr.mxu0 0.0
      %372 = vmatpush1.msra.mxu0 0.0
      %373 = vmatprep.subr.mxu0 0.0
      %374 = vmatpush1.msra.mxu0 0.0
      %375 = vmatprep.subr.mxu0 0.0
      %376 = vmatpush1.msra.mxu0 0.0
      %377 = vmatprep.subr.mxu0 0.0
      %378 = vmatpush1.msra.mxu0 0.0
      %379 = vmatprep.subr.mxu0 0.0
      %380 = vmatpush1.msra.mxu0 0.0
      %381 = vmatprep.subr.mxu0 0.0
      %382 = vmatpush1.msra.mxu0 0.0
      %383 = vmatprep.subr.mxu0 0.0
      %384 = vmatpush1.msra.mxu0 0.0
      %385 = vmatprep.subr.mxu0 0.0
      %386 = vmatpush1.msra.mxu0 0.0
      %387 = vmatprep.subr.mxu0 0.0
      %388 = vmatpush1.msra.mxu0 0.0
      %389 = vmatprep.subr.mxu0 0.0
      %390 = vmatpush1.msra.mxu0 0.0
      %391 = vmatprep.subr.mxu0 0.0
      %392 = vmatpush1.msra.mxu0 0.0
      %393 = vmatprep.subr.mxu0 0.0
      %394 = vmatpush1.msra.mxu0 0.0
      %395 = vmatprep.subr.mxu0 0.0
      %396 = vmatpush1.msra.mxu0 0.0
      %397 = vmatprep.subr.mxu0 0.0
      %398 = vmatpush1.msra.mxu0 0.0
      %399 = vmatprep.subr.mxu0 0.0
      %400 = vmatpush1.msra.mxu0 0.0
      %401 = vmatprep.subr.mxu0 0.0
      %402 = vmatpush1.msra.mxu0 0.0
      %403 = vmatprep.subr.mxu0 0.0
      %404 = vmatpush1.msra.mxu0 0.0
      %405 = vmatprep.subr.mxu0 0.0
      %406 = vmatpush1.msra.mxu0 0.0
      %407 = vmatprep.subr.mxu0 0.0
      %408 = vmatpush1.msra.mxu0 0.0
      %409 = vmatprep.subr.mxu0 0.0
      %410 = vmatpush1.msra.mxu0 0.0
      %411 = vmatprep.subr.mxu0 0.0
      %412 = vmatpush1.msra.mxu0 0.0
      %413 = vmatprep.subr.mxu0 0.0
      %414 = vmatpush1.msra.mxu0 0.0
      %415 = vmatprep.subr.mxu0 0.0
      %416 = vmatpush1.msra.mxu0 0.0
      %417 = vmatprep.subr.mxu0 0.0
      %418 = vmatpush1.msra.mxu0 0.0
      %419 = vmatprep.mubr.f32.mxu0 0.0
      %420 = vmatmul.mubr.f32.gmra.mrb[0].mxu0 %v344
      %v421 = vpop.f32.mrb[0].mxu0
      %v422 = vadd.f32 0.0, %v421
      %v423 = vpop.f32.mrb[0].mxu0
      %424 = vmatprep.mubr.f32.mxu0 0.0
      %425 = vmatmul.mubr.f32.gmra.mrb[0].mxu0 %v347
      %v426 = vpop.f32.mrb[0].mxu0
      %v427 = vadd.f32 0.0, %v426
      %v428 = vpop.f32.mrb[0].mxu0
      %429 = vmatprep.mubr.f32.mxu0 0.0
      %430 = vmatmul.mubr.f32.gmra.mrb[0].mxu0 %v350
      %v431 = vpop.f32.mrb[0].mxu0
      %v432 = vadd.f32 0.0, %v431
      %v433 = vpop.f32.mrb[0].mxu0
      %434 = vmatprep.mubr.f32.mxu0 0.0
      %435 = vmatmul.mubr.f32.gmra.mrb[0].mxu0 %v353
      %v436 = vpop.f32.mrb[0].mxu0
      %v437 = vadd.f32 0.0, %v436
      %v438 = vpop.f32.mrb[0].mxu0
      %439 = vdwg.mxu0
      %vm440 = vcmp.ge.f32.partialorder %v422, 0.0
      %vm441 = vcmp.ge.f32.partialorder %v427, 0.0
      %vm442 = vcmp.ge.f32.partialorder %v432, 0.0
      %vm443 = vcmp.ge.f32.partialorder %v437, 0.0
      %v444 = vmul.f32 %v422, 0.1
      %v445 = vmul.f32 %v427, 0.1
      %v446 = vmul.f32 %v432, 0.1
      %v447 = vmul.f32 %v437, 0.1
      %v448 = vsel %vm440, %v422, %v444
      %v449 = vsel %vm441, %v427, %v445
      %v450 = vsel %vm442, %v432, %v446
      %v451 = vsel %vm443, %v437, %v447
      %452 = vst.msk [vmem:[#allocation2] sm:$0xff] %vm342, %v448
      %453 = vst.msk [vmem:[#allocation2 + $0x8] sm:$0xff] %vm342, %v449
      %454 = vst.msk [vmem:[#allocation2 + $0x10] sm:$0xff] %vm342, %v450
      %455 = vst.msk [vmem:[#allocation2 + $0x18] sm:$0xff] %vm342, %v451
      %v456 = vadd.f32 %v448, 0.0
      %v457 = vadd.f32 %v449, 0.0
      %v458 = vadd.f32 %v450, 0.0
      %v459 = vadd.f32 %v451, 0.0
      %v460 = vsel %vm342, %v448, 0.0
      %v461 = vsel %vm342, %v449, 0.0
      %v462 = vadd.f32 %v460, %v461
      %v463 = vsel %vm342, %v450, 0.0
      %v464 = vadd.f32 %v462, %v463
      %v465 = vsel %vm342, %v451, 0.0
      %v466 = vadd.f32 %v464, %v465
      %v467 = vrot.slane %v466, 4
      %v468 = vadd.f32 %v466, %v467
      %v469 = vrot.slane %v468, 2
      %v470 = vadd.f32 %v468, %v469
      %v471 = vrot.slane %v470, 1
      %v472 = vadd.f32 %v470, %v471
      %s473 = scalar_lea.vmem %s328, 8
      %v474 = vld [vmem:[%s473] sm:$0xff]
      %475 = vmatprep.subr.mxu0 0.0
      %476 = vmatpush1.msra.mxu0 %v474
      %477 = vmatprep.subr.mxu0 0.0
      %478 = vmatpush1.msra.mxu0 0.0
      %479 = vmatprep.subr.mxu0 0.0
      %480 = vmatpush1.msra.mxu0 0.0
      %481 = vmatprep.subr.mxu0 0.0
      %482 = vmatpush1.msra.mxu0 0.0
      %483 = vmatprep.subr.mxu0 0.0
      %484 = vmatpush1.msra.mxu0 0.0
      %485 = vmatprep.subr.mxu0 0.0
      %486 = vmatpush1.msra.mxu0 0.0
      %487 = vmatprep.subr.mxu0 0.0
      %488 = vmatpush1.msra.mxu0 0.0
      %489 = vmatprep.subr.mxu0 0.0
      %490 = vmatpush1.msra.mxu0 0.0
      %491 = vmatprep.subr.mxu0 0.0
      %492 = vmatpush1.msra.mxu0 0.0
      %493 = vmatprep.subr.mxu0 0.0
      %494 = vmatpush1.msra.mxu0 0.0
      %495 = vmatprep.subr.mxu0 0.0
      %496 = vmatpush1.msra.mxu0 0.0
      %497 = vmatprep.subr.mxu0 0.0
      %498 = vmatpush1.msra.mxu0 0.0
      %499 = vmatprep.subr.mxu0 0.0
      %500 = vmatpush1.msra.mxu0 0.0
      %501 = vmatprep.subr.mxu0 0.0
      %502 = vmatpush1.msra.mxu0 0.0
      %503 = vmatprep.subr.mxu0 0.0
      %504 = vmatpush1.msra.mxu0 0.0
      %505 = vmatprep.subr.mxu0 0.0
      %506 = vmatpush1.msra.mxu0 0.0
      %507 = vmatprep.subr.mxu0 0.0
      %508 = vmatpush1.msra.mxu0 0.0
      %509 = vmatprep.subr.mxu0 0.0
      %510 = vmatpush1.msra.mxu0 0.0
      %511 = vmatprep.subr.mxu0 0.0
      %512 = vmatpush1.msra.mxu0 0.0
      %513 = vmatprep.subr.mxu0 0.0
      %514 = vmatpush1.msra.mxu0 0.0
      %515 = vmatprep.subr.mxu0 0.0
      %516 = vmatpush1.msra.mxu0 0.0
      %517 = vmatprep.subr.mxu0 0.0
      %518 = vmatpush1.msra.mxu0 0.0
      %519 = vmatprep.subr.mxu0 0.0
      %520 = vmatpush1.msra.mxu0 0.0
      %521 = vmatprep.subr.mxu0 0.0
      %522 = vmatpush1.msra.mxu0 0.0
      %523 = vmatprep.subr.mxu0 0.0
      %524 = vmatpush1.msra.mxu0 0.0
      %525 = vmatprep.subr.mxu0 0.0
      %526 = vmatpush1.msra.mxu0 0.0
      %527 = vmatprep.subr.mxu0 0.0
      %528 = vmatpush1.msra.mxu0 0.0
      %529 = vmatprep.subr.mxu0 0.0
      %530 = vmatpush1.msra.mxu0 0.0
      %531 = vmatprep.subr.mxu0 0.0
      %532 = vmatpush1.msra.mxu0 0.0
      %533 = vmatprep.subr.mxu0 0.0
      %534 = vmatpush1.msra.mxu0 0.0
      %535 = vmatprep.subr.mxu0 0.0
      %536 = vmatpush1.msra.mxu0 0.0
      %537 = vmatprep.subr.mxu0 0.0
      %538 = vmatpush1.msra.mxu0 0.0
      %539 = vmatprep.mubr.f32.mxu0 0.0
      %540 = vmatmul.mubr.f32.gmra.mrb[0].mxu0 %v344
      %v541 = vpop.f32.mrb[0].mxu0
      %v542 = vadd.f32 0.0, %v541
      %v543 = vpop.f32.mrb[0].mxu0
      %544 = vmatprep.mubr.f32.mxu0 0.0
      %545 = vmatmul.mubr.f32.gmra.mrb[0].mxu0 %v347
      %v546 = vpop.f32.mrb[0].mxu0
      %v547 = vadd.f32 0.0, %v546
      %v548 = vpop.f32.mrb[0].mxu0
      %549 = vmatprep.mubr.f32.mxu0 0.0
      %550 = vmatmul.mubr.f32.gmra.mrb[0].mxu0 %v350
      %v551 = vpop.f32.mrb[0].mxu0
      %v552 = vadd.f32 0.0, %v551
      %v553 = vpop.f32.mrb[0].mxu0
      %554 = vmatprep.mubr.f32.mxu0 0.0
      %555 = vmatmul.mubr.f32.gmra.mrb[0].mxu0 %v353
      %v556 = vpop.f32.mrb[0].mxu0
      %v557 = vadd.f32 0.0, %v556
      %v558 = vpop.f32.mrb[0].mxu0
      %559 = vdwg.mxu0
      %vm560 = vcmp.ge.f32.partialorder %v542, 0.0
      %vm561 = vcmp.ge.f32.partialorder %v547, 0.0
      %vm562 = vcmp.ge.f32.partialorder %v552, 0.0
      %vm563 = vcmp.ge.f32.partialorder %v557, 0.0
      %v564 = vmul.f32 %v542, 0.1
      %v565 = vmul.f32 %v547, 0.1
      %v566 = vmul.f32 %v552, 0.1
      %v567 = vmul.f32 %v557, 0.1
      %v568 = vsel %vm560, %v542, %v564
      %v569 = vsel %vm561, %v547, %v565
      %v570 = vsel %vm562, %v552, %v566
      %v571 = vsel %vm563, %v557, %v567
      %s572 = scalar_lea.vmem [#allocation2], 32
      %573 = vst.msk [vmem:[%s572] sm:$0xff] %vm342, %v568
      %574 = vst.msk [vmem:[%s572 + $0x8] sm:$0xff] %vm342, %v569
      %575 = vst.msk [vmem:[%s572 + $0x10] sm:$0xff] %vm342, %v570
      %576 = vst.msk [vmem:[%s572 + $0x18] sm:$0xff] %vm342, %v571
      %v577 = vadd.f32 %v456, %v568
      %v578 = vadd.f32 %v457, %v569
      %v579 = vadd.f32 %v458, %v570
      %v580 = vadd.f32 %v459, %v571
      %v581 = vsel %vm342, %v568, 0.0
      %v582 = vsel %vm342, %v569, 0.0
      %v583 = vadd.f32 %v581, %v582
      %v584 = vsel %vm342, %v570, 0.0
      %v585 = vadd.f32 %v583, %v584
      %v586 = vsel %vm342, %v571, 0.0
      %v587 = vadd.f32 %v585, %v586
      %v588 = vrot.slane %v587, 4
      %v589 = vadd.f32 %v587, %v588
      %v590 = vrot.slane %v589, 2
      %v591 = vadd.f32 %v589, %v590
      %v592 = vrot.slane %v591, 1
      %v593 = vadd.f32 %v591, %v592
      %s594 = scalar_lea.vmem %s328, 16
      %v595 = vld [vmem:[%s594] sm:$0xff]
      %596 = vmatprep.subr.mxu0 0.0
      %597 = vmatpush1.msra.mxu0 %v595
      %598 = vmatprep.subr.mxu0 0.0
      %599 = vmatpush1.msra.mxu0 0.0
      %600 = vmatprep.subr.mxu0 0.0
      %601 = vmatpush1.msra.mxu0 0.0
      %602 = vmatprep.subr.mxu0 0.0
      %603 = vmatpush1.msra.mxu0 0.0
      %604 = vmatprep.subr.mxu0 0.0
      %605 = vmatpush1.msra.mxu0 0.0
      %606 = vmatprep.subr.mxu0 0.0
      %607 = vmatpush1.msra.mxu0 0.0
      %608 = vmatprep.subr.mxu0 0.0
      %609 = vmatpush1.msra.mxu0 0.0
      %610 = vmatprep.subr.mxu0 0.0
      %611 = vmatpush1.msra.mxu0 0.0
      %612 = vmatprep.subr.mxu0 0.0
      %613 = vmatpush1.msra.mxu0 0.0
      %614 = vmatprep.subr.mxu0 0.0
      %615 = vmatpush1.msra.mxu0 0.0
      %616 = vmatprep.subr.mxu0 0.0
      %617 = vmatpush1.msra.mxu0 0.0
      %618 = vmatprep.subr.mxu0 0.0
      %619 = vmatpush1.msra.mxu0 0.0
      %620 = vmatprep.subr.mxu0 0.0
      %621 = vmatpush1.msra.mxu0 0.0
      %622 = vmatprep.subr.mxu0 0.0
      %623 = vmatpush1.msra.mxu0 0.0
      %624 = vmatprep.subr.mxu0 0.0
      %625 = vmatpush1.msra.mxu0 0.0
      %626 = vmatprep.subr.mxu0 0.0
      %627 = vmatpush1.msra.mxu0 0.0
      %628 = vmatprep.subr.mxu0 0.0
      %629 = vmatpush1.msra.mxu0 0.0
      %630 = vmatprep.subr.mxu0 0.0
      %631 = vmatpush1.msra.mxu0 0.0
      %632 = vmatprep.subr.mxu0 0.0
      %633 = vmatpush1.msra.mxu0 0.0
      %634 = vmatprep.subr.mxu0 0.0
      %635 = vmatpush1.msra.mxu0 0.0
      %636 = vmatprep.subr.mxu0 0.0
      %637 = vmatpush1.msra.mxu0 0.0
      %638 = vmatprep.subr.mxu0 0.0
      %639 = vmatpush1.msra.mxu0 0.0
      %640 = vmatprep.subr.mxu0 0.0
      %641 = vmatpush1.msra.mxu0 0.0
      %642 = vmatprep.subr.mxu0 0.0
      %643 = vmatpush1.msra.mxu0 0.0
      %644 = vmatprep.subr.mxu0 0.0
      %645 = vmatpush1.msra.mxu0 0.0
      %646 = vmatprep.subr.mxu0 0.0
      %647 = vmatpush1.msra.mxu0 0.0
      %648 = vmatprep.subr.mxu0 0.0
      %649 = vmatpush1.msra.mxu0 0.0
      %650 = vmatprep.subr.mxu0 0.0
      %651 = vmatpush1.msra.mxu0 0.0
      %652 = vmatprep.subr.mxu0 0.0
      %653 = vmatpush1.msra.mxu0 0.0
      %654 = vmatprep.subr.mxu0 0.0
      %655 = vmatpush1.msra.mxu0 0.0
      %656 = vmatprep.subr.mxu0 0.0
      %657 = vmatpush1.msra.mxu0 0.0
      %658 = vmatprep.subr.mxu0 0.0
      %659 = vmatpush1.msra.mxu0 0.0
      %660 = vmatprep.mubr.f32.mxu0 0.0
      %661 = vmatmul.mubr.f32.gmra.mrb[0].mxu0 %v344
      %v662 = vpop.f32.mrb[0].mxu0
      %v663 = vadd.f32 0.0, %v662
      %v664 = vpop.f32.mrb[0].mxu0
      %665 = vmatprep.mubr.f32.mxu0 0.0
      %666 = vmatmul.mubr.f32.gmra.mrb[0].mxu0 %v347
      %v667 = vpop.f32.mrb[0].mxu0
      %v668 = vadd.f32 0.0, %v667
      %v669 = vpop.f32.mrb[0].mxu0
      %670 = vmatprep.mubr.f32.mxu0 0.0
      %671 = vmatmul.mubr.f32.gmra.mrb[0].mxu0 %v350
      %v672 = vpop.f32.mrb[0].mxu0
      %v673 = vadd.f32 0.0, %v672
      %v674 = vpop.f32.mrb[0].mxu0
      %675 = vmatprep.mubr.f32.mxu0 0.0
      %676 = vmatmul.mubr.f32.gmra.mrb[0].mxu0 %v353
      %v677 = vpop.f32.mrb[0].mxu0
      %v678 = vadd.f32 0.0, %v677
      %v679 = vpop.f32.mrb[0].mxu0
      %680 = vdwg.mxu0
      %vm681 = vcmp.ge.f32.partialorder %v663, 0.0
      %vm682 = vcmp.ge.f32.partialorder %v668, 0.0
      %vm683 = vcmp.ge.f32.partialorder %v673, 0.0
      %vm684 = vcmp.ge.f32.partialorder %v678, 0.0
      %v685 = vmul.f32 %v663, 0.1
      %v686 = vmul.f32 %v668, 0.1
      %v687 = vmul.f32 %v673, 0.1
      %v688 = vmul.f32 %v678, 0.1
      %v689 = vsel %vm681, %v663, %v685
      %v690 = vsel %vm682, %v668, %v686
      %v691 = vsel %vm683, %v673, %v687
      %v692 = vsel %vm684, %v678, %v688
      %s693 = scalar_lea.vmem [#allocation2], 64
      %694 = vst.msk [vmem:[%s693] sm:$0xff] %vm342, %v689
      %695 = vst.msk [vmem:[%s693 + $0x8] sm:$0xff] %vm342, %v690
      %696 = vst.msk [vmem:[%s693 + $0x10] sm:$0xff] %vm342, %v691
      %697 = vst.msk [vmem:[%s693 + $0x18] sm:$0xff] %vm342, %v692
      %v698 = vadd.f32 %v577, %v689
      %v699 = vadd.f32 %v578, %v690
      %v700 = vadd.f32 %v579, %v691
      %v701 = vadd.f32 %v580, %v692
      %v702 = vsel %vm342, %v689, 0.0
      %v703 = vsel %vm342, %v690, 0.0
      %v704 = vadd.f32 %v702, %v703
      %v705 = vsel %vm342, %v691, 0.0
      %v706 = vadd.f32 %v704, %v705
      %v707 = vsel %vm342, %v692, 0.0
      %v708 = vadd.f32 %v706, %v707
      %v709 = vrot.slane %v708, 4
      %v710 = vadd.f32 %v708, %v709
      %v711 = vrot.slane %v710, 2
      %v712 = vadd.f32 %v710, %v711
      %v713 = vrot.slane %v712, 1
      %v714 = vadd.f32 %v712, %v713
      %s715 = scalar_lea.vmem %s328, 24
      %v716 = vld [vmem:[%s715] sm:$0xff]
      %717 = vmatprep.subr.mxu0 0.0
      %718 = vmatpush1.msra.mxu0 %v716
      %719 = vmatprep.subr.mxu0 0.0
      %720 = vmatpush1.msra.mxu0 0.0
      %721 = vmatprep.subr.mxu0 0.0
      %722 = vmatpush1.msra.mxu0 0.0
      %723 = vmatprep.subr.mxu0 0.0
      %724 = vmatpush1.msra.mxu0 0.0
      %725 = vmatprep.subr.mxu0 0.0
      %726 = vmatpush1.msra.mxu0 0.0
      %727 = vmatprep.subr.mxu0 0.0
      %728 = vmatpush1.msra.mxu0 0.0
      %729 = vmatprep.subr.mxu0 0.0
      %730 = vmatpush1.msra.mxu0 0.0
      %731 = vmatprep.subr.mxu0 0.0
      %732 = vmatpush1.msra.mxu0 0.0
      %733 = vmatprep.subr.mxu0 0.0
      %734 = vmatpush1.msra.mxu0 0.0
      %735 = vmatprep.subr.mxu0 0.0
      %736 = vmatpush1.msra.mxu0 0.0
      %737 = vmatprep.subr.mxu0 0.0
      %738 = vmatpush1.msra.mxu0 0.0
      %739 = vmatprep.subr.mxu0 0.0
      %740 = vmatpush1.msra.mxu0 0.0
      %741 = vmatprep.subr.mxu0 0.0
      %742 = vmatpush1.msra.mxu0 0.0
      %743 = vmatprep.subr.mxu0 0.0
      %744 = vmatpush1.msra.mxu0 0.0
      %745 = vmatprep.subr.mxu0 0.0
      %746 = vmatpush1.msra.mxu0 0.0
      %747 = vmatprep.subr.mxu0 0.0
      %748 = vmatpush1.msra.mxu0 0.0
      %749 = vmatprep.subr.mxu0 0.0
      %750 = vmatpush1.msra.mxu0 0.0
      %751 = vmatprep.subr.mxu0 0.0
      %752 = vmatpush1.msra.mxu0 0.0
      %753 = vmatprep.subr.mxu0 0.0
      %754 = vmatpush1.msra.mxu0 0.0
      %755 = vmatprep.subr.mxu0 0.0
      %756 = vmatpush1.msra.mxu0 0.0
      %757 = vmatprep.subr.mxu0 0.0
      %758 = vmatpush1.msra.mxu0 0.0
      %759 = vmatprep.subr.mxu0 0.0
      %760 = vmatpush1.msra.mxu0 0.0
      %761 = vmatprep.subr.mxu0 0.0
      %762 = vmatpush1.msra.mxu0 0.0
      %763 = vmatprep.subr.mxu0 0.0
      %764 = vmatpush1.msra.mxu0 0.0
      %765 = vmatprep.subr.mxu0 0.0
      %766 = vmatpush1.msra.mxu0 0.0
      %767 = vmatprep.subr.mxu0 0.0
      %768 = vmatpush1.msra.mxu0 0.0
      %769 = vmatprep.subr.mxu0 0.0
      %770 = vmatpush1.msra.mxu0 0.0
      %771 = vmatprep.subr.mxu0 0.0
      %772 = vmatpush1.msra.mxu0 0.0
      %773 = vmatprep.subr.mxu0 0.0
      %774 = vmatpush1.msra.mxu0 0.0
      %775 = vmatprep.subr.mxu0 0.0
      %776 = vmatpush1.msra.mxu0 0.0
      %777 = vmatprep.subr.mxu0 0.0
      %778 = vmatpush1.msra.mxu0 0.0
      %779 = vmatprep.subr.mxu0 0.0
      %780 = vmatpush1.msra.mxu0 0.0
      %781 = vmatprep.mubr.f32.mxu0 0.0
      %782 = vmatmul.mubr.f32.gmra.mrb[0].mxu0 %v344
      %v783 = vpop.f32.mrb[0].mxu0
      %v784 = vadd.f32 0.0, %v783
      %v785 = vpop.f32.mrb[0].mxu0
      %786 = vmatprep.mubr.f32.mxu0 0.0
      %787 = vmatmul.mubr.f32.gmra.mrb[0].mxu0 %v347
      %v788 = vpop.f32.mrb[0].mxu0
      %v789 = vadd.f32 0.0, %v788
      %v790 = vpop.f32.mrb[0].mxu0
      %791 = vmatprep.mubr.f32.mxu0 0.0
      %792 = vmatmul.mubr.f32.gmra.mrb[0].mxu0 %v350
      %v793 = vpop.f32.mrb[0].mxu0
      %v794 = vadd.f32 0.0, %v793
      %v795 = vpop.f32.mrb[0].mxu0
      %796 = vmatprep.mubr.f32.mxu0 0.0
      %797 = vmatmul.mubr.f32.gmra.mrb[0].mxu0 %v353
      %v798 = vpop.f32.mrb[0].mxu0
      %v799 = vadd.f32 0.0, %v798
      %v800 = vpop.f32.mrb[0].mxu0
      %801 = vdwg.mxu0
      %vm802 = vcmp.ge.f32.partialorder %v784, 0.0
      %vm803 = vcmp.ge.f32.partialorder %v789, 0.0
      %vm804 = vcmp.ge.f32.partialorder %v794, 0.0
      %vm805 = vcmp.ge.f32.partialorder %v799, 0.0
      %v806 = vmul.f32 %v784, 0.1
      %v807 = vmul.f32 %v789, 0.1
      %v808 = vmul.f32 %v794, 0.1
      %v809 = vmul.f32 %v799, 0.1
      %v810 = vsel %vm802, %v784, %v806
      %v811 = vsel %vm803, %v789, %v807
      %v812 = vsel %vm804, %v794, %v808
      %v813 = vsel %vm805, %v799, %v809
      %s814 = scalar_lea.vmem [#allocation2], 96
      %815 = vst.msk [vmem:[%s814] sm:$0xff] %vm342, %v810
      %816 = vst.msk [vmem:[%s814 + $0x8] sm:$0xff] %vm342, %v811
      %817 = vst.msk [vmem:[%s814 + $0x10] sm:$0xff] %vm342, %v812
      %818 = vst.msk [vmem:[%s814 + $0x18] sm:$0xff] %vm342, %v813
      %v819 = vadd.f32 %v698, %v810
      %v820 = vadd.f32 %v699, %v811
      %v821 = vadd.f32 %v700, %v812
      %v822 = vadd.f32 %v701, %v813
      %v823 = vsel %vm342, %v810, 0.0
      %v824 = vsel %vm342, %v811, 0.0
      %v825 = vadd.f32 %v823, %v824
      %v826 = vsel %vm342, %v812, 0.0
      %v827 = vadd.f32 %v825, %v826
      %v828 = vsel %vm342, %v813, 0.0
      %v829 = vadd.f32 %v827, %v828
      %v830 = vrot.slane %v829, 4
      %v831 = vadd.f32 %v829, %v830
      %v832 = vrot.slane %v831, 2
      %v833 = vadd.f32 %v831, %v832
      %v834 = vrot.slane %v833, 1
      %v835 = vadd.f32 %v833, %v834
      %s836 = scalar_lea.vmem %s328, 32
      %v837 = vld [vmem:[%s836] sm:$0xff]
      %838 = vmatprep.subr.mxu0 0.0
      %839 = vmatpush1.msra.mxu0 %v837
      %840 = vmatprep.subr.mxu0 0.0
      %841 = vmatpush1.msra.mxu0 0.0
      %842 = vmatprep.subr.mxu0 0.0
      %843 = vmatpush1.msra.mxu0 0.0
      %844 = vmatprep.subr.mxu0 0.0
      %845 = vmatpush1.msra.mxu0 0.0
      %846 = vmatprep.subr.mxu0 0.0
      %847 = vmatpush1.msra.mxu0 0.0
      %848 = vmatprep.subr.mxu0 0.0
      %849 = vmatpush1.msra.mxu0 0.0
      %850 = vmatprep.subr.mxu0 0.0
      %851 = vmatpush1.msra.mxu0 0.0
      %852 = vmatprep.subr.mxu0 0.0
      %853 = vmatpush1.msra.mxu0 0.0
      %854 = vmatprep.subr.mxu0 0.0
      %855 = vmatpush1.msra.mxu0 0.0
      %856 = vmatprep.subr.mxu0 0.0
      %857 = vmatpush1.msra.mxu0 0.0
      %858 = vmatprep.subr.mxu0 0.0
      %859 = vmatpush1.msra.mxu0 0.0
      %860 = vmatprep.subr.mxu0 0.0
      %861 = vmatpush1.msra.mxu0 0.0
      %862 = vmatprep.subr.mxu0 0.0
      %863 = vmatpush1.msra.mxu0 0.0
      %864 = vmatprep.subr.mxu0 0.0
      %865 = vmatpush1.msra.mxu0 0.0
      %866 = vmatprep.subr.mxu0 0.0
      %867 = vmatpush1.msra.mxu0 0.0
      %868 = vmatprep.subr.mxu0 0.0
      %869 = vmatpush1.msra.mxu0 0.0
      %870 = vmatprep.subr.mxu0 0.0
      %871 = vmatpush1.msra.mxu0 0.0
      %872 = vmatprep.subr.mxu0 0.0
      %873 = vmatpush1.msra.mxu0 0.0
      %874 = vmatprep.subr.mxu0 0.0
      %875 = vmatpush1.msra.mxu0 0.0
      %876 = vmatprep.subr.mxu0 0.0
      %877 = vmatpush1.msra.mxu0 0.0
      %878 = vmatprep.subr.mxu0 0.0
      %879 = vmatpush1.msra.mxu0 0.0
      %880 = vmatprep.subr.mxu0 0.0
      %881 = vmatpush1.msra.mxu0 0.0
      %882 = vmatprep.subr.mxu0 0.0
      %883 = vmatpush1.msra.mxu0 0.0
      %884 = vmatprep.subr.mxu0 0.0
      %885 = vmatpush1.msra.mxu0 0.0
      %886 = vmatprep.subr.mxu0 0.0
      %887 = vmatpush1.msra.mxu0 0.0
      %888 = vmatprep.subr.mxu0 0.0
      %889 = vmatpush1.msra.mxu0 0.0
      %890 = vmatprep.subr.mxu0 0.0
      %891 = vmatpush1.msra.mxu0 0.0
      %892 = vmatprep.subr.mxu0 0.0
      %893 = vmatpush1.msra.mxu0 0.0
      %894 = vmatprep.subr.mxu0 0.0
      %895 = vmatpush1.msra.mxu0 0.0
      %896 = vmatprep.subr.mxu0 0.0
      %897 = vmatpush1.msra.mxu0 0.0
      %898 = vmatprep.subr.mxu0 0.0
      %899 = vmatpush1.msra.mxu0 0.0
      %900 = vmatprep.subr.mxu0 0.0
      %901 = vmatpush1.msra.mxu0 0.0
      %902 = vmatprep.mubr.f32.mxu0 0.0
      %903 = vmatmul.mubr.f32.gmra.mrb[0].mxu0 %v344
      %v904 = vpop.f32.mrb[0].mxu0
      %v905 = vadd.f32 0.0, %v904
      %v906 = vpop.f32.mrb[0].mxu0
      %907 = vmatprep.mubr.f32.mxu0 0.0
      %908 = vmatmul.mubr.f32.gmra.mrb[0].mxu0 %v347
      %v909 = vpop.f32.mrb[0].mxu0
      %v910 = vadd.f32 0.0, %v909
      %v911 = vpop.f32.mrb[0].mxu0
      %912 = vmatprep.mubr.f32.mxu0 0.0
      %913 = vmatmul.mubr.f32.gmra.mrb[0].mxu0 %v350
      %v914 = vpop.f32.mrb[0].mxu0
      %v915 = vadd.f32 0.0, %v914
      %v916 = vpop.f32.mrb[0].mxu0
      %917 = vmatprep.mubr.f32.mxu0 0.0
      %918 = vmatmul.mubr.f32.gmra.mrb[0].mxu0 %v353
      %v919 = vpop.f32.mrb[0].mxu0
      %v920 = vadd.f32 0.0, %v919
      %v921 = vpop.f32.mrb[0].mxu0
      %922 = vdwg.mxu0
      %vm923 = vcmp.ge.f32.partialorder %v905, 0.0
      %vm924 = vcmp.ge.f32.partialorder %v910, 0.0
      %vm925 = vcmp.ge.f32.partialorder %v915, 0.0
      %vm926 = vcmp.ge.f32.partialorder %v920, 0.0
      %v927 = vmul.f32 %v905, 0.1
      %v928 = vmul.f32 %v910, 0.1
      %v929 = vmul.f32 %v915, 0.1
      %v930 = vmul.f32 %v920, 0.1
      %v931 = vsel %vm923, %v905, %v927
      %v932 = vsel %vm924, %v910, %v928
      %v933 = vsel %vm925, %v915, %v929
      %v934 = vsel %vm926, %v920, %v930
      %s935 = scalar_lea.vmem [#allocation2], 128
      %936 = vst.msk [vmem:[%s935] sm:$0xff] %vm342, %v931
      %937 = vst.msk [vmem:[%s935 + $0x8] sm:$0xff] %vm342, %v932
      %938 = vst.msk [vmem:[%s935 + $0x10] sm:$0xff] %vm342, %v933
      %939 = vst.msk [vmem:[%s935 + $0x18] sm:$0xff] %vm342, %v934
      %v940 = vadd.f32 %v819, %v931
      %v941 = vadd.f32 %v820, %v932
      %v942 = vadd.f32 %v821, %v933
      %v943 = vadd.f32 %v822, %v934
      %v944 = vsel %vm342, %v931, 0.0
      %v945 = vsel %vm342, %v932, 0.0
      %v946 = vadd.f32 %v944, %v945
      %v947 = vsel %vm342, %v933, 0.0
      %v948 = vadd.f32 %v946, %v947
      %v949 = vsel %vm342, %v934, 0.0
      %v950 = vadd.f32 %v948, %v949
      %v951 = vrot.slane %v950, 4
      %v952 = vadd.f32 %v950, %v951
      %v953 = vrot.slane %v952, 2
      %v954 = vadd.f32 %v952, %v953
      %v955 = vrot.slane %v954, 1
      %v956 = vadd.f32 %v954, %v955
      %s957 = scalar_lea.vmem %s328, 40
      %v958 = vld [vmem:[%s957] sm:$0xff]
      %959 = vmatprep.subr.mxu0 0.0
      %960 = vmatpush1.msra.mxu0 %v958
      %961 = vmatprep.subr.mxu0 0.0
      %962 = vmatpush1.msra.mxu0 0.0
      %963 = vmatprep.subr.mxu0 0.0
      %964 = vmatpush1.msra.mxu0 0.0
      %965 = vmatprep.subr.mxu0 0.0
      %966 = vmatpush1.msra.mxu0 0.0
      %967 = vmatprep.subr.mxu0 0.0
      %968 = vmatpush1.msra.mxu0 0.0
      %969 = vmatprep.subr.mxu0 0.0
      %970 = vmatpush1.msra.mxu0 0.0
      %971 = vmatprep.subr.mxu0 0.0
      %972 = vmatpush1.msra.mxu0 0.0
      %973 = vmatprep.subr.mxu0 0.0
      %974 = vmatpush1.msra.mxu0 0.0
      %975 = vmatprep.subr.mxu0 0.0
      %976 = vmatpush1.msra.mxu0 0.0
      %977 = vmatprep.subr.mxu0 0.0
      %978 = vmatpush1.msra.mxu0 0.0
      %979 = vmatprep.subr.mxu0 0.0
      %980 = vmatpush1.msra.mxu0 0.0
      %981 = vmatprep.subr.mxu0 0.0
      %982 = vmatpush1.msra.mxu0 0.0
      %983 = vmatprep.subr.mxu0 0.0
      %984 = vmatpush1.msra.mxu0 0.0
      %985 = vmatprep.subr.mxu0 0.0
      %986 = vmatpush1.msra.mxu0 0.0
      %987 = vmatprep.subr.mxu0 0.0
      %988 = vmatpush1.msra.mxu0 0.0
      %989 = vmatprep.subr.mxu0 0.0
      %990 = vmatpush1.msra.mxu0 0.0
      %991 = vmatprep.subr.mxu0 0.0
      %992 = vmatpush1.msra.mxu0 0.0
      %993 = vmatprep.subr.mxu0 0.0
      %994 = vmatpush1.msra.mxu0 0.0
      %995 = vmatprep.subr.mxu0 0.0
      %996 = vmatpush1.msra.mxu0 0.0
      %997 = vmatprep.subr.mxu0 0.0
      %998 = vmatpush1.msra.mxu0 0.0
      %999 = vmatprep.subr.mxu0 0.0
      %1000 = vmatpush1.msra.mxu0 0.0
      %1001 = vmatprep.subr.mxu0 0.0
      %1002 = vmatpush1.msra.mxu0 0.0
      %1003 = vmatprep.subr.mxu0 0.0
      %1004 = vmatpush1.msra.mxu0 0.0
      %1005 = vmatprep.subr.mxu0 0.0
      %1006 = vmatpush1.msra.mxu0 0.0
      %1007 = vmatprep.subr.mxu0 0.0
      %1008 = vmatpush1.msra.mxu0 0.0
      %1009 = vmatprep.subr.mxu0 0.0
      %1010 = vmatpush1.msra.mxu0 0.0
      %1011 = vmatprep.subr.mxu0 0.0
      %1012 = vmatpush1.msra.mxu0 0.0
      %1013 = vmatprep.subr.mxu0 0.0
      %1014 = vmatpush1.msra.mxu0 0.0
      %1015 = vmatprep.subr.mxu0 0.0
      %1016 = vmatpush1.msra.mxu0 0.0
      %1017 = vmatprep.subr.mxu0 0.0
      %1018 = vmatpush1.msra.mxu0 0.0
      %1019 = vmatprep.subr.mxu0 0.0
      %1020 = vmatpush1.msra.mxu0 0.0
      %1021 = vmatprep.subr.mxu0 0.0
      %1022 = vmatpush1.msra.mxu0 0.0
      %1023 = vmatprep.mubr.f32.mxu0 0.0
      %1024 = vmatmul.mubr.f32.gmra.mrb[0].mxu0 %v344
      %v1025 = vpop.f32.mrb[0].mxu0
      %v1026 = vadd.f32 0.0, %v1025
      %v1027 = vpop.f32.mrb[0].mxu0
      %1028 = vmatprep.mubr.f32.mxu0 0.0
      %1029 = vmatmul.mubr.f32.gmra.mrb[0].mxu0 %v347
      %v1030 = vpop.f32.mrb[0].mxu0
      %v1031 = vadd.f32 0.0, %v1030
      %v1032 = vpop.f32.mrb[0].mxu0
      %1033 = vmatprep.mubr.f32.mxu0 0.0
      %1034 = vmatmul.mubr.f32.gmra.mrb[0].mxu0 %v350
      %v1035 = vpop.f32.mrb[0].mxu0
      %v1036 = vadd.f32 0.0, %v1035
      %v1037 = vpop.f32.mrb[0].mxu0
      %1038 = vmatprep.mubr.f32.mxu0 0.0
      %1039 = vmatmul.mubr.f32.gmra.mrb[0].mxu0 %v353
      %v1040 = vpop.f32.mrb[0].mxu0
      %v1041 = vadd.f32 0.0, %v1040
      %v1042 = vpop.f32.mrb[0].mxu0
      %1043 = vdwg.mxu0
      %vm1044 = vcmp.ge.f32.partialorder %v1026, 0.0
      %vm1045 = vcmp.ge.f32.partialorder %v1031, 0.0
      %vm1046 = vcmp.ge.f32.partialorder %v1036, 0.0
      %vm1047 = vcmp.ge.f32.partialorder %v1041, 0.0
      %v1048 = vmul.f32 %v1026, 0.1
      %v1049 = vmul.f32 %v1031, 0.1
      %v1050 = vmul.f32 %v1036, 0.1
      %v1051 = vmul.f32 %v1041, 0.1
      %v1052 = vsel %vm1044, %v1026, %v1048
      %v1053 = vsel %vm1045, %v1031, %v1049
      %v1054 = vsel %vm1046, %v1036, %v1050
      %v1055 = vsel %vm1047, %v1041, %v1051
      %s1056 = scalar_lea.vmem [#allocation2], 160
      %1057 = vst.msk [vmem:[%s1056] sm:$0xff] %vm342, %v1052
      %1058 = vst.msk [vmem:[%s1056 + $0x8] sm:$0xff] %vm342, %v1053
      %1059 = vst.msk [vmem:[%s1056 + $0x10] sm:$0xff] %vm342, %v1054
      %1060 = vst.msk [vmem:[%s1056 + $0x18] sm:$0xff] %vm342, %v1055
      %v1061 = vadd.f32 %v940, %v1052
      %v1062 = vadd.f32 %v941, %v1053
      %v1063 = vadd.f32 %v942, %v1054
      %v1064 = vadd.f32 %v943, %v1055
      %v1065 = vsel %vm342, %v1052, 0.0
      %v1066 = vsel %vm342, %v1053, 0.0
      %v1067 = vadd.f32 %v1065, %v1066
      %v1068 = vsel %vm342, %v1054, 0.0
      %v1069 = vadd.f32 %v1067, %v1068
      %v1070 = vsel %vm342, %v1055, 0.0
      %v1071 = vadd.f32 %v1069, %v1070
      %v1072 = vrot.slane %v1071, 4
      %v1073 = vadd.f32 %v1071, %v1072
      %v1074 = vrot.slane %v1073, 2
      %v1075 = vadd.f32 %v1073, %v1074
      %v1076 = vrot.slane %v1075, 1
      %v1077 = vadd.f32 %v1075, %v1076
      %s1078 = scalar_lea.vmem %s328, 48
      %v1079 = vld [vmem:[%s1078] sm:$0xff]
      %1080 = vmatprep.subr.mxu0 0.0
      %1081 = vmatpush1.msra.mxu0 %v1079
      %1082 = vmatprep.subr.mxu0 0.0
      %1083 = vmatpush1.msra.mxu0 0.0
      %1084 = vmatprep.subr.mxu0 0.0
      %1085 = vmatpush1.msra.mxu0 0.0
      %1086 = vmatprep.subr.mxu0 0.0
      %1087 = vmatpush1.msra.mxu0 0.0
      %1088 = vmatprep.subr.mxu0 0.0
      %1089 = vmatpush1.msra.mxu0 0.0
      %1090 = vmatprep.subr.mxu0 0.0
      %1091 = vmatpush1.msra.mxu0 0.0
      %1092 = vmatprep.subr.mxu0 0.0
      %1093 = vmatpush1.msra.mxu0 0.0
      %1094 = vmatprep.subr.mxu0 0.0
      %1095 = vmatpush1.msra.mxu0 0.0
      %1096 = vmatprep.subr.mxu0 0.0
      %1097 = vmatpush1.msra.mxu0 0.0
      %1098 = vmatprep.subr.mxu0 0.0
      %1099 = vmatpush1.msra.mxu0 0.0
      %1100 = vmatprep.subr.mxu0 0.0
      %1101 = vmatpush1.msra.mxu0 0.0
      %1102 = vmatprep.subr.mxu0 0.0
      %1103 = vmatpush1.msra.mxu0 0.0
      %1104 = vmatprep.subr.mxu0 0.0
      %1105 = vmatpush1.msra.mxu0 0.0
      %1106 = vmatprep.subr.mxu0 0.0
      %1107 = vmatpush1.msra.mxu0 0.0
      %1108 = vmatprep.subr.mxu0 0.0
      %1109 = vmatpush1.msra.mxu0 0.0
      %1110 = vmatprep.subr.mxu0 0.0
      %1111 = vmatpush1.msra.mxu0 0.0
      %1112 = vmatprep.subr.mxu0 0.0
      %1113 = vmatpush1.msra.mxu0 0.0
      %1114 = vmatprep.subr.mxu0 0.0
      %1115 = vmatpush1.msra.mxu0 0.0
      %1116 = vmatprep.subr.mxu0 0.0
      %1117 = vmatpush1.msra.mxu0 0.0
      %1118 = vmatprep.subr.mxu0 0.0
      %1119 = vmatpush1.msra.mxu0 0.0
      %1120 = vmatprep.subr.mxu0 0.0
      %1121 = vmatpush1.msra.mxu0 0.0
      %1122 = vmatprep.subr.mxu0 0.0
      %1123 = vmatpush1.msra.mxu0 0.0
      %1124 = vmatprep.subr.mxu0 0.0
      %1125 = vmatpush1.msra.mxu0 0.0
      %1126 = vmatprep.subr.mxu0 0.0
      %1127 = vmatpush1.msra.mxu0 0.0
      %1128 = vmatprep.subr.mxu0 0.0
      %1129 = vmatpush1.msra.mxu0 0.0
      %1130 = vmatprep.subr.mxu0 0.0
      %1131 = vmatpush1.msra.mxu0 0.0
      %1132 = vmatprep.subr.mxu0 0.0
      %1133 = vmatpush1.msra.mxu0 0.0
      %1134 = vmatprep.subr.mxu0 0.0
      %1135 = vmatpush1.msra.mxu0 0.0
      %1136 = vmatprep.subr.mxu0 0.0
      %1137 = vmatpush1.msra.mxu0 0.0
      %1138 = vmatprep.subr.mxu0 0.0
      %1139 = vmatpush1.msra.mxu0 0.0
      %1140 = vmatprep.subr.mxu0 0.0
      %1141 = vmatpush1.msra.mxu0 0.0
      %1142 = vmatprep.subr.mxu0 0.0
      %1143 = vmatpush1.msra.mxu0 0.0
      %1144 = vmatprep.mubr.f32.mxu0 0.0
      %1145 = vmatmul.mubr.f32.gmra.mrb[0].mxu0 %v344
      %v1146 = vpop.f32.mrb[0].mxu0
      %v1147 = vadd.f32 0.0, %v1146
      %v1148 = vpop.f32.mrb[0].mxu0
      %1149 = vmatprep.mubr.f32.mxu0 0.0
      %1150 = vmatmul.mubr.f32.gmra.mrb[0].mxu0 %v347
      %v1151 = vpop.f32.mrb[0].mxu0
      %v1152 = vadd.f32 0.0, %v1151
      %v1153 = vpop.f32.mrb[0].mxu0
      %1154 = vmatprep.mubr.f32.mxu0 0.0
      %1155 = vmatmul.mubr.f32.gmra.mrb[0].mxu0 %v350
      %v1156 = vpop.f32.mrb[0].mxu0
      %v1157 = vadd.f32 0.0, %v1156
      %v1158 = vpop.f32.mrb[0].mxu0
      %1159 = vmatprep.mubr.f32.mxu0 0.0
      %1160 = vmatmul.mubr.f32.gmra.mrb[0].mxu0 %v353
      %v1161 = vpop.f32.mrb[0].mxu0
      %v1162 = vadd.f32 0.0, %v1161
      %v1163 = vpop.f32.mrb[0].mxu0
      %1164 = vdwg.mxu0
      %vm1165 = vcmp.ge.f32.partialorder %v1147, 0.0
      %vm1166 = vcmp.ge.f32.partialorder %v1152, 0.0
      %vm1167 = vcmp.ge.f32.partialorder %v1157, 0.0
      %vm1168 = vcmp.ge.f32.partialorder %v1162, 0.0
      %v1169 = vmul.f32 %v1147, 0.1
      %v1170 = vmul.f32 %v1152, 0.1
      %v1171 = vmul.f32 %v1157, 0.1
      %v1172 = vmul.f32 %v1162, 0.1
      %v1173 = vsel %vm1165, %v1147, %v1169
      %v1174 = vsel %vm1166, %v1152, %v1170
      %v1175 = vsel %vm1167, %v1157, %v1171
      %v1176 = vsel %vm1168, %v1162, %v1172
      %s1177 = scalar_lea.vmem [#allocation2], 192
      %1178 = vst.msk [vmem:[%s1177] sm:$0xff] %vm342, %v1173
      %1179 = vst.msk [vmem:[%s1177 + $0x8] sm:$0xff] %vm342, %v1174
      %1180 = vst.msk [vmem:[%s1177 + $0x10] sm:$0xff] %vm342, %v1175
      %1181 = vst.msk [vmem:[%s1177 + $0x18] sm:$0xff] %vm342, %v1176
      %v1182 = vadd.f32 %v1061, %v1173
      %v1183 = vadd.f32 %v1062, %v1174
      %v1184 = vadd.f32 %v1063, %v1175
      %v1185 = vadd.f32 %v1064, %v1176
      %v1186 = vsel %vm342, %v1173, 0.0
      %v1187 = vsel %vm342, %v1174, 0.0
      %v1188 = vadd.f32 %v1186, %v1187
      %v1189 = vsel %vm342, %v1175, 0.0
      %v1190 = vadd.f32 %v1188, %v1189
      %v1191 = vsel %vm342, %v1176, 0.0
      %v1192 = vadd.f32 %v1190, %v1191
      %v1193 = vrot.slane %v1192, 4
      %v1194 = vadd.f32 %v1192, %v1193
      %v1195 = vrot.slane %v1194, 2
      %v1196 = vadd.f32 %v1194, %v1195
      %v1197 = vrot.slane %v1196, 1
      %v1198 = vadd.f32 %v1196, %v1197
      %s1199 = scalar_lea.vmem %s328, 56
      %v1200 = vld [vmem:[%s1199] sm:$0xff]
      %1201 = vmatprep.subr.mxu0 0.0
      %1202 = vmatpush1.msra.mxu0 %v1200
      %1203 = vmatprep.subr.mxu0 0.0
      %1204 = vmatpush1.msra.mxu0 0.0
      %1205 = vmatprep.subr.mxu0 0.0
      %1206 = vmatpush1.msra.mxu0 0.0
      %1207 = vmatprep.subr.mxu0 0.0
      %1208 = vmatpush1.msra.mxu0 0.0
      %1209 = vmatprep.subr.mxu0 0.0
      %1210 = vmatpush1.msra.mxu0 0.0
      %1211 = vmatprep.subr.mxu0 0.0
      %1212 = vmatpush1.msra.mxu0 0.0
      %1213 = vmatprep.subr.mxu0 0.0
      %1214 = vmatpush1.msra.mxu0 0.0
      %1215 = vmatprep.subr.mxu0 0.0
      %1216 = vmatpush1.msra.mxu0 0.0
      %1217 = vmatprep.subr.mxu0 0.0
      %1218 = vmatpush1.msra.mxu0 0.0
      %1219 = vmatprep.subr.mxu0 0.0
      %1220 = vmatpush1.msra.mxu0 0.0
      %1221 = vmatprep.subr.mxu0 0.0
      %1222 = vmatpush1.msra.mxu0 0.0
      %1223 = vmatprep.subr.mxu0 0.0
      %1224 = vmatpush1.msra.mxu0 0.0
      %1225 = vmatprep.subr.mxu0 0.0
      %1226 = vmatpush1.msra.mxu0 0.0
      %1227 = vmatprep.subr.mxu0 0.0
      %1228 = vmatpush1.msra.mxu0 0.0
      %1229 = vmatprep.subr.mxu0 0.0
      %1230 = vmatpush1.msra.mxu0 0.0
      %1231 = vmatprep.subr.mxu0 0.0
      %1232 = vmatpush1.msra.mxu0 0.0
      %1233 = vmatprep.subr.mxu0 0.0
      %1234 = vmatpush1.msra.mxu0 0.0
      %1235 = vmatprep.subr.mxu0 0.0
      %1236 = vmatpush1.msra.mxu0 0.0
      %1237 = vmatprep.subr.mxu0 0.0
      %1238 = vmatpush1.msra.mxu0 0.0
      %1239 = vmatprep.subr.mxu0 0.0
      %1240 = vmatpush1.msra.mxu0 0.0
      %1241 = vmatprep.subr.mxu0 0.0
      %1242 = vmatpush1.msra.mxu0 0.0
      %1243 = vmatprep.subr.mxu0 0.0
      %1244 = vmatpush1.msra.mxu0 0.0
      %1245 = vmatprep.subr.mxu0 0.0
      %1246 = vmatpush1.msra.mxu0 0.0
      %1247 = vmatprep.subr.mxu0 0.0
      %1248 = vmatpush1.msra.mxu0 0.0
      %1249 = vmatprep.subr.mxu0 0.0
      %1250 = vmatpush1.msra.mxu0 0.0
      %1251 = vmatprep.subr.mxu0 0.0
      %1252 = vmatpush1.msra.mxu0 0.0
      %1253 = vmatprep.subr.mxu0 0.0
      %1254 = vmatpush1.msra.mxu0 0.0
      %1255 = vmatprep.subr.mxu0 0.0
      %1256 = vmatpush1.msra.mxu0 0.0
      %1257 = vmatprep.subr.mxu0 0.0
      %1258 = vmatpush1.msra.mxu0 0.0
      %1259 = vmatprep.subr.mxu0 0.0
      %1260 = vmatpush1.msra.mxu0 0.0
      %1261 = vmatprep.subr.mxu0 0.0
      %1262 = vmatpush1.msra.mxu0 0.0
      %1263 = vmatprep.subr.mxu0 0.0
      %1264 = vmatpush1.msra.mxu0 0.0
      %1265 = vmatprep.mubr.f32.mxu0 0.0
      %1266 = vmatmul.mubr.f32.gmra.mrb[0].mxu0 %v344
      %v1267 = vpop.f32.mrb[0].mxu0
      %v1268 = vadd.f32 0.0, %v1267
      %v1269 = vpop.f32.mrb[0].mxu0
      %1270 = vmatprep.mubr.f32.mxu0 0.0
      %1271 = vmatmul.mubr.f32.gmra.mrb[0].mxu0 %v347
      %v1272 = vpop.f32.mrb[0].mxu0
      %v1273 = vadd.f32 0.0, %v1272
      %v1274 = vpop.f32.mrb[0].mxu0
      %1275 = vmatprep.mubr.f32.mxu0 0.0
      %1276 = vmatmul.mubr.f32.gmra.mrb[0].mxu0 %v350
      %v1277 = vpop.f32.mrb[0].mxu0
      %v1278 = vadd.f32 0.0, %v1277
      %v1279 = vpop.f32.mrb[0].mxu0
      %1280 = vmatprep.mubr.f32.mxu0 0.0
      %1281 = vmatmul.mubr.f32.gmra.mrb[0].mxu0 %v353
      %v1282 = vpop.f32.mrb[0].mxu0
      %v1283 = vadd.f32 0.0, %v1282
      %v1284 = vpop.f32.mrb[0].mxu0
      %1285 = vdwg.mxu0
      %vm1286 = vcmp.ge.f32.partialorder %v1268, 0.0
      %vm1287 = vcmp.ge.f32.partialorder %v1273, 0.0
      %vm1288 = vcmp.ge.f32.partialorder %v1278, 0.0
      %vm1289 = vcmp.ge.f32.partialorder %v1283, 0.0
      %v1290 = vmul.f32 %v1268, 0.1
      %v1291 = vmul.f32 %v1273, 0.1
      %v1292 = vmul.f32 %v1278, 0.1
      %v1293 = vmul.f32 %v1283, 0.1
      %v1294 = vsel %vm1286, %v1268, %v1290
      %v1295 = vsel %vm1287, %v1273, %v1291
      %v1296 = vsel %vm1288, %v1278, %v1292
      %v1297 = vsel %vm1289, %v1283, %v1293
      %s1298 = scalar_lea.vmem [#allocation2], 224
      %1299 = vst.msk [vmem:[%s1298] sm:$0xff] %vm342, %v1294
      %1300 = vst.msk [vmem:[%s1298 + $0x8] sm:$0xff] %vm342, %v1295
      %1301 = vst.msk [vmem:[%s1298 + $0x10] sm:$0xff] %vm342, %v1296
      %1302 = vst.msk [vmem:[%s1298 + $0x18] sm:$0xff] %vm342, %v1297
      %v1303 = vadd.f32 %v1182, %v1294
      %v1304 = vadd.f32 %v1183, %v1295
      %v1305 = vadd.f32 %v1184, %v1296
      %v1306 = vadd.f32 %v1185, %v1297
      %v1307 = vsel %vm342, %v1294, 0.0
      %v1308 = vsel %vm342, %v1295, 0.0
      %v1309 = vadd.f32 %v1307, %v1308
      %v1310 = vsel %vm342, %v1296, 0.0
      %v1311 = vadd.f32 %v1309, %v1310
      %v1312 = vsel %vm342, %v1297, 0.0
      %v1313 = vadd.f32 %v1311, %v1312
      %v1314 = vrot.slane %v1313, 4
      %v1315 = vadd.f32 %v1313, %v1314
      %v1316 = vrot.slane %v1315, 2
      %v1317 = vadd.f32 %v1315, %v1316
      %v1318 = vrot.slane %v1317, 1
      %v1319 = vadd.f32 %v1317, %v1318
      %v1320 = vmul.f32 %v1303, 0.125
      %v1321 = vmul.f32 %v1304, 0.125
      %v1322 = vmul.f32 %v1305, 0.125
      %v1323 = vmul.f32 %v1306, 0.125
      %vm1324 = vcmask 1040384
      %v1325 = vsel %vm1324, %v472, %v593
      %vm1326 = vcmask 1041408
      %v1327 = vsel %vm1326, %v1325, %v714
      %vm1328 = vcmask 1042432
      %v1329 = vsel %vm1328, %v1327, %v835
      %vm1330 = vcmask 1043456
      %v1331 = vsel %vm1330, %v1329, %v956
      %vm1332 = vcmask 1044480
      %v1333 = vsel %vm1332, %v1331, %v1077
      %vm1334 = vcmask 1045504
      %v1335 = vsel %vm1334, %v1333, %v1198
      %vm1336 = vcmask 1046528
      %v1337 = vsel %vm1336, %v1335, %v1319
      %v1338 = vmul.f32 %v1337, 0.03125
      %v1339 = vld [vmem:[%s2] sm:$0xff]
      %v1340 = vld [vmem:[%s2 + $0x8] sm:$0xff]
      %v1341 = vld [vmem:[%s2 + $0x10] sm:$0xff]
      %v1342 = vld [vmem:[%s2 + $0x18] sm:$0xff]
      %v1343 = vld [vmem:[%s3] sm:$0xff]
      %v1344 = vld [vmem:[%s3 + $0x8] sm:$0xff]
      %v1345 = vld [vmem:[%s3 + $0x10] sm:$0xff]
      %v1346 = vld [vmem:[%s3 + $0x18] sm:$0xff]
      %v1348 = vsel %vm342, %v1343, 0
      %v1351 = vsel %vm342, %v1344, 0
      %v1354 = vsel %vm342, %v1345, 0
      %v1357 = vsel %vm342, %v1346, 0
      %1359 = vmatprep.subr.mxu0 0.0
      %1360 = vmatpush1.msra.mxu0 %v1338
      %1361 = vmatprep.subr.mxu0 0.0
      %1362 = vmatpush1.msra.mxu0 0.0
      %1363 = vmatprep.subr.mxu0 0.0
      %1364 = vmatpush1.msra.mxu0 0.0
      %1365 = vmatprep.subr.mxu0 0.0
      %1366 = vmatpush1.msra.mxu0 0.0
      %1367 = vmatprep.subr.mxu0 0.0
      %1368 = vmatpush1.msra.mxu0 0.0
      %1369 = vmatprep.subr.mxu0 0.0
      %1370 = vmatpush1.msra.mxu0 0.0
      %1371 = vmatprep.subr.mxu0 0.0
      %1372 = vmatpush1.msra.mxu0 0.0
      %1373 = vmatprep.subr.mxu0 0.0
      %1374 = vmatpush1.msra.mxu0 0.0
      %1375 = vmatprep.subr.mxu0 0.0
      %1376 = vmatpush1.msra.mxu0 0.0
      %1377 = vmatprep.subr.mxu0 0.0
      %1378 = vmatpush1.msra.mxu0 0.0
      %1379 = vmatprep.subr.mxu0 0.0
      %1380 = vmatpush1.msra.mxu0 0.0
      %1381 = vmatprep.subr.mxu0 0.0
      %1382 = vmatpush1.msra.mxu0 0.0
      %1383 = vmatprep.subr.mxu0 0.0
      %1384 = vmatpush1.msra.mxu0 0.0
      %1385 = vmatprep.subr.mxu0 0.0
      %1386 = vmatpush1.msra.mxu0 0.0
      %1387 = vmatprep.subr.mxu0 0.0
      %1388 = vmatpush1.msra.mxu0 0.0
      %1389 = vmatprep.subr.mxu0 0.0
      %1390 = vmatpush1.msra.mxu0 0.0
      %1391 = vmatprep.subr.mxu0 0.0
      %1392 = vmatpush1.msra.mxu0 0.0
      %1393 = vmatprep.subr.mxu0 0.0
      %1394 = vmatpush1.msra.mxu0 0.0
      %1395 = vmatprep.subr.mxu0 0.0
      %1396 = vmatpush1.msra.mxu0 0.0
      %1397 = vmatprep.subr.mxu0 0.0
      %1398 = vmatpush1.msra.mxu0 0.0
      %1399 = vmatprep.subr.mxu0 0.0
      %1400 = vmatpush1.msra.mxu0 0.0
      %1401 = vmatprep.subr.mxu0 0.0
      %1402 = vmatpush1.msra.mxu0 0.0
      %1403 = vmatprep.subr.mxu0 0.0
      %1404 = vmatpush1.msra.mxu0 0.0
      %1405 = vmatprep.subr.mxu0 0.0
      %1406 = vmatpush1.msra.mxu0 0.0
      %1407 = vmatprep.subr.mxu0 0.0
      %1408 = vmatpush1.msra.mxu0 0.0
      %1409 = vmatprep.subr.mxu0 0.0
      %1410 = vmatpush1.msra.mxu0 0.0
      %1411 = vmatprep.subr.mxu0 0.0
      %1412 = vmatpush1.msra.mxu0 0.0
      %1413 = vmatprep.subr.mxu0 0.0
      %1414 = vmatpush1.msra.mxu0 0.0
      %1415 = vmatprep.subr.mxu0 0.0
      %1416 = vmatpush1.msra.mxu0 0.0
      %1417 = vmatprep.subr.mxu0 0.0
      %1418 = vmatpush1.msra.mxu0 0.0
      %1419 = vmatprep.subr.mxu0 0.0
      %1420 = vmatpush1.msra.mxu0 0.0
      %1421 = vmatprep.subr.mxu0 0.0
      %1422 = vmatpush1.msra.mxu0 0.0
      %1423 = vmatprep.mubr.f32.mxu0 0.0
      %1424 = vmatmul.mubr.f32.gmra.mrb[0].mxu0 %v1348
      %v1425 = vpop.f32.mrb[0].mxu0
      %v1426 = vadd.f32 0.0, %v1425
      %v1427 = vpop.f32.mrb[0].mxu0
      %1428 = vmatprep.mubr.f32.mxu0 0.0
      %1429 = vmatmul.mubr.f32.gmra.mrb[0].mxu0 %v1351
      %v1430 = vpop.f32.mrb[0].mxu0
      %v1431 = vadd.f32 0.0, %v1430
      %v1432 = vpop.f32.mrb[0].mxu0
      %1433 = vmatprep.mubr.f32.mxu0 0.0
      %1434 = vmatmul.mubr.f32.gmra.mrb[0].mxu0 %v1354
      %v1435 = vpop.f32.mrb[0].mxu0
      %v1436 = vadd.f32 0.0, %v1435
      %v1437 = vpop.f32.mrb[0].mxu0
      %1438 = vmatprep.mubr.f32.mxu0 0.0
      %1439 = vmatmul.mubr.f32.gmra.mrb[0].mxu0 %v1357
      %v1440 = vpop.f32.mrb[0].mxu0
      %v1441 = vadd.f32 0.0, %v1440
      %v1442 = vpop.f32.mrb[0].mxu0
      %1443 = vdwg.mxu0
      %vm1444 = vcmask 261120
      %v1446 = vsel %vm1444, %v1339, 0
      %v1449 = vsel %vm1444, %v1340, 0
      %v1452 = vsel %vm1444, %v1341, 0
      %v1455 = vsel %vm1444, %v1342, 0
      %1457 = vmatprep.subr.mxu0 0.0
      %1458 = vmatpush1.msra.mxu0 %v1320
      %1459 = vmatprep.subr.mxu0 0.0
      %1460 = vmatpush1.msra.mxu0 %v1321
      %1461 = vmatprep.subr.mxu0 0.0
      %1462 = vmatpush1.msra.mxu0 %v1322
      %1463 = vmatprep.subr.mxu0 0.0
      %1464 = vmatpush1.msra.mxu0 %v1323
      %1465 = vmatprep.subr.mxu0 0.0
      %1466 = vmatpush1.msra.mxu0 0.0
      %1467 = vmatprep.subr.mxu0 0.0
      %1468 = vmatpush1.msra.mxu0 0.0
      %1469 = vmatprep.subr.mxu0 0.0
      %1470 = vmatpush1.msra.mxu0 0.0
      %1471 = vmatprep.subr.mxu0 0.0
      %1472 = vmatpush1.msra.mxu0 0.0
      %1473 = vmatprep.subr.mxu0 0.0
      %1474 = vmatpush1.msra.mxu0 0.0
      %1475 = vmatprep.subr.mxu0 0.0
      %1476 = vmatpush1.msra.mxu0 0.0
      %1477 = vmatprep.subr.mxu0 0.0
      %1478 = vmatpush1.msra.mxu0 0.0
      %1479 = vmatprep.subr.mxu0 0.0
      %1480 = vmatpush1.msra.mxu0 0.0
      %1481 = vmatprep.subr.mxu0 0.0
      %1482 = vmatpush1.msra.mxu0 0.0
      %1483 = vmatprep.subr.mxu0 0.0
      %1484 = vmatpush1.msra.mxu0 0.0
      %1485 = vmatprep.subr.mxu0 0.0
      %1486 = vmatpush1.msra.mxu0 0.0
      %1487 = vmatprep.subr.mxu0 0.0
      %1488 = vmatpush1.msra.mxu0 0.0
      %1489 = vmatprep.subr.mxu0 0.0
      %1490 = vmatpush1.msra.mxu0 0.0
      %1491 = vmatprep.subr.mxu0 0.0
      %1492 = vmatpush1.msra.mxu0 0.0
      %1493 = vmatprep.subr.mxu0 0.0
      %1494 = vmatpush1.msra.mxu0 0.0
      %1495 = vmatprep.subr.mxu0 0.0
      %1496 = vmatpush1.msra.mxu0 0.0
      %1497 = vmatprep.subr.mxu0 0.0
      %1498 = vmatpush1.msra.mxu0 0.0
      %1499 = vmatprep.subr.mxu0 0.0
      %1500 = vmatpush1.msra.mxu0 0.0
      %1501 = vmatprep.subr.mxu0 0.0
      %1502 = vmatpush1.msra.mxu0 0.0
      %1503 = vmatprep.subr.mxu0 0.0
      %1504 = vmatpush1.msra.mxu0 0.0
      %1505 = vmatprep.subr.mxu0 0.0
      %1506 = vmatpush1.msra.mxu0 0.0
      %1507 = vmatprep.subr.mxu0 0.0
      %1508 = vmatpush1.msra.mxu0 0.0
      %1509 = vmatprep.subr.mxu0 0.0
      %1510 = vmatpush1.msra.mxu0 0.0
      %1511 = vmatprep.subr.mxu0 0.0
      %1512 = vmatpush1.msra.mxu0 0.0
      %1513 = vmatprep.subr.mxu0 0.0
      %1514 = vmatpush1.msra.mxu0 0.0
      %1515 = vmatprep.subr.mxu0 0.0
      %1516 = vmatpush1.msra.mxu0 0.0
      %1517 = vmatprep.subr.mxu0 0.0
      %1518 = vmatpush1.msra.mxu0 0.0
      %1519 = vmatprep.subr.mxu0 0.0
      %1520 = vmatpush1.msra.mxu0 0.0
      %1521 = vmatprep.mubr.f32.mxu0 0.0
      %1522 = vmatmul.mubr.f32.gmra.mrb[0].mxu0 %v1446
      %v1523 = vpop.f32.mrb[0].mxu0
      %v1524 = vadd.f32 %v1426, %v1523
      %v1525 = vpop.f32.mrb[0].mxu0
      %1526 = vmatprep.mubr.f32.mxu0 0.0
      %1527 = vmatmul.mubr.f32.gmra.mrb[0].mxu0 %v1449
      %v1528 = vpop.f32.mrb[0].mxu0
      %v1529 = vadd.f32 %v1431, %v1528
      %v1530 = vpop.f32.mrb[0].mxu0
      %1531 = vmatprep.mubr.f32.mxu0 0.0
      %1532 = vmatmul.mubr.f32.gmra.mrb[0].mxu0 %v1452
      %v1533 = vpop.f32.mrb[0].mxu0
      %v1534 = vadd.f32 %v1436, %v1533
      %v1535 = vpop.f32.mrb[0].mxu0
      %1536 = vmatprep.mubr.f32.mxu0 0.0
      %1537 = vmatmul.mubr.f32.gmra.mrb[0].mxu0 %v1455
      %v1538 = vpop.f32.mrb[0].mxu0
      %v1539 = vadd.f32 %v1441, %v1538
      %v1540 = vpop.f32.mrb[0].mxu0
      %1541 = vdwg.mxu0
      %vm1542 = vcmp.ge.f32.partialorder %v1524, 0.0
      %vm1543 = vcmp.ge.f32.partialorder %v1529, 0.0
      %vm1544 = vcmp.ge.f32.partialorder %v1534, 0.0
      %vm1545 = vcmp.ge.f32.partialorder %v1539, 0.0
      %v1546 = vmul.f32 %v1524, 0.1
      %v1547 = vmul.f32 %v1529, 0.1
      %v1548 = vmul.f32 %v1534, 0.1
      %v1549 = vmul.f32 %v1539, 0.1
      %v1550 = vsel %vm1542, %v1524, %v1546
      %v1551 = vsel %vm1543, %v1529, %v1547
      %v1552 = vsel %vm1544, %v1534, %v1548
      %v1553 = vsel %vm1545, %v1539, %v1549
      %v1554 = vld [vmem:[%s4] sm:$0xff]
      %v1555 = vld [vmem:[%s5] sm:$0xff]
      %v1557 = vsel %vm342, %v1555, 0
      %1559 = vmatprep.subr.mxu0 0.0
      %1560 = vmatpush1.msra.mxu0 %v1338
      %1561 = vmatprep.subr.mxu0 0.0
      %1562 = vmatpush1.msra.mxu0 0.0
      %1563 = vmatprep.subr.mxu0 0.0
      %1564 = vmatpush1.msra.mxu0 0.0
      %1565 = vmatprep.subr.mxu0 0.0
      %1566 = vmatpush1.msra.mxu0 0.0
      %1567 = vmatprep.subr.mxu0 0.0
      %1568 = vmatpush1.msra.mxu0 0.0
      %1569 = vmatprep.subr.mxu0 0.0
      %1570 = vmatpush1.msra.mxu0 0.0
      %1571 = vmatprep.subr.mxu0 0.0
      %1572 = vmatpush1.msra.mxu0 0.0
      %1573 = vmatprep.subr.mxu0 0.0
      %1574 = vmatpush1.msra.mxu0 0.0
      %1575 = vmatprep.subr.mxu0 0.0
      %1576 = vmatpush1.msra.mxu0 0.0
      %1577 = vmatprep.subr.mxu0 0.0
      %1578 = vmatpush1.msra.mxu0 0.0
      %1579 = vmatprep.subr.mxu0 0.0
      %1580 = vmatpush1.msra.mxu0 0.0
      %1581 = vmatprep.subr.mxu0 0.0
      %1582 = vmatpush1.msra.mxu0 0.0
      %1583 = vmatprep.subr.mxu0 0.0
      %1584 = vmatpush1.msra.mxu0 0.0
      %1585 = vmatprep.subr.mxu0 0.0
      %1586 = vmatpush1.msra.mxu0 0.0
      %1587 = vmatprep.subr.mxu0 0.0
      %1588 = vmatpush1.msra.mxu0 0.0
      %1589 = vmatprep.subr.mxu0 0.0
      %1590 = vmatpush1.msra.mxu0 0.0
      %1591 = vmatprep.subr.mxu0 0.0
      %1592 = vmatpush1.msra.mxu0 0.0
      %1593 = vmatprep.subr.mxu0 0.0
      %1594 = vmatpush1.msra.mxu0 0.0
      %1595 = vmatprep.subr.mxu0 0.0
      %1596 = vmatpush1.msra.mxu0 0.0
      %1597 = vmatprep.subr.mxu0 0.0
      %1598 = vmatpush1.msra.mxu0 0.0
      %1599 = vmatprep.subr.mxu0 0.0
      %1600 = vmatpush1.msra.mxu0 0.0
      %1601 = vmatprep.subr.mxu0 0.0
      %1602 = vmatpush1.msra.mxu0 0.0
      %1603 = vmatprep.subr.mxu0 0.0
      %1604 = vmatpush1.msra.mxu0 0.0
      %1605 = vmatprep.subr.mxu0 0.0
      %1606 = vmatpush1.msra.mxu0 0.0
      %1607 = vmatprep.subr.mxu0 0.0
      %1608 = vmatpush1.msra.mxu0 0.0
      %1609 = vmatprep.subr.mxu0 0.0
      %1610 = vmatpush1.msra.mxu0 0.0
      %1611 = vmatprep.subr.mxu0 0.0
      %1612 = vmatpush1.msra.mxu0 0.0
      %1613 = vmatprep.subr.mxu0 0.0
      %1614 = vmatpush1.msra.mxu0 0.0
      %1615 = vmatprep.subr.mxu0 0.0
      %1616 = vmatpush1.msra.mxu0 0.0
      %1617 = vmatprep.subr.mxu0 0.0
      %1618 = vmatpush1.msra.mxu0 0.0
      %1619 = vmatprep.subr.mxu0 0.0
      %1620 = vmatpush1.msra.mxu0 0.0
      %1621 = vmatprep.subr.mxu0 0.0
      %1622 = vmatpush1.msra.mxu0 0.0
      %1623 = vmatprep.mubr.f32.mxu0 0.0
      %1624 = vmatmul.mubr.f32.gmra.mrb[0].mxu0 %v1557
      %v1625 = vpop.f32.mrb[0].mxu0
      %v1626 = vadd.f32 0.0, %v1625
      %v1627 = vpop.f32.mrb[0].mxu0
      %1628 = vdwg.mxu0
      %v1630 = vsel %vm1444, %v1554, 0
      %1632 = vmatprep.subr.mxu0 0.0
      %1633 = vmatpush1.msra.mxu0 %v1320
      %1634 = vmatprep.subr.mxu0 0.0
      %1635 = vmatpush1.msra.mxu0 %v1321
      %1636 = vmatprep.subr.mxu0 0.0
      %1637 = vmatpush1.msra.mxu0 %v1322
      %1638 = vmatprep.subr.mxu0 0.0
      %1639 = vmatpush1.msra.mxu0 %v1323
      %1640 = vmatprep.subr.mxu0 0.0
      %1641 = vmatpush1.msra.mxu0 0.0
      %1642 = vmatprep.subr.mxu0 0.0
      %1643 = vmatpush1.msra.mxu0 0.0
      %1644 = vmatprep.subr.mxu0 0.0
      %1645 = vmatpush1.msra.mxu0 0.0
      %1646 = vmatprep.subr.mxu0 0.0
      %1647 = vmatpush1.msra.mxu0 0.0
      %1648 = vmatprep.subr.mxu0 0.0
      %1649 = vmatpush1.msra.mxu0 0.0
      %1650 = vmatprep.subr.mxu0 0.0
      %1651 = vmatpush1.msra.mxu0 0.0
      %1652 = vmatprep.subr.mxu0 0.0
      %1653 = vmatpush1.msra.mxu0 0.0
      %1654 = vmatprep.subr.mxu0 0.0
      %1655 = vmatpush1.msra.mxu0 0.0
      %1656 = vmatprep.subr.mxu0 0.0
      %1657 = vmatpush1.msra.mxu0 0.0
      %1658 = vmatprep.subr.mxu0 0.0
      %1659 = vmatpush1.msra.mxu0 0.0
      %1660 = vmatprep.subr.mxu0 0.0
      %1661 = vmatpush1.msra.mxu0 0.0
      %1662 = vmatprep.subr.mxu0 0.0
      %1663 = vmatpush1.msra.mxu0 0.0
      %1664 = vmatprep.subr.mxu0 0.0
      %1665 = vmatpush1.msra.mxu0 0.0
      %1666 = vmatprep.subr.mxu0 0.0
      %1667 = vmatpush1.msra.mxu0 0.0
      %1668 = vmatprep.subr.mxu0 0.0
      %1669 = vmatpush1.msra.mxu0 0.0
      %1670 = vmatprep.subr.mxu0 0.0
      %1671 = vmatpush1.msra.mxu0 0.0
      %1672 = vmatprep.subr.mxu0 0.0
      %1673 = vmatpush1.msra.mxu0 0.0
      %1674 = vmatprep.subr.mxu0 0.0
      %1675 = vmatpush1.msra.mxu0 0.0
      %1676 = vmatprep.subr.mxu0 0.0
      %1677 = vmatpush1.msra.mxu0 0.0
      %1678 = vmatprep.subr.mxu0 0.0
      %1679 = vmatpush1.msra.mxu0 0.0
      %1680 = vmatprep.subr.mxu0 0.0
      %1681 = vmatpush1.msra.mxu0 0.0
      %1682 = vmatprep.subr.mxu0 0.0
      %1683 = vmatpush1.msra.mxu0 0.0
      %1684 = vmatprep.subr.mxu0 0.0
      %1685 = vmatpush1.msra.mxu0 0.0
      %1686 = vmatprep.subr.mxu0 0.0
      %1687 = vmatpush1.msra.mxu0 0.0
      %1688 = vmatprep.subr.mxu0 0.0
      %1689 = vmatpush1.msra.mxu0 0.0
      %1690 = vmatprep.subr.mxu0 0.0
      %1691 = vmatpush1.msra.mxu0 0.0
      %1692 = vmatprep.subr.mxu0 0.0
      %1693 = vmatpush1.msra.mxu0 0.0
      %1694 = vmatprep.subr.mxu0 0.0
      %1695 = vmatpush1.msra.mxu0 0.0
      %1696 = vmatprep.mubr.f32.mxu0 0.0
      %1697 = vmatmul.mubr.f32.gmra.mrb[0].mxu0 %v1630
      %v1698 = vpop.f32.mrb[0].mxu0
      %v1699 = vadd.f32 %v1626, %v1698
      %v1700 = vpop.f32.mrb[0].mxu0
      %1701 = vdwg.mxu0
      %vm1702 = vcmp.ge.f32.partialorder %v1699, 0.0
      %v1703 = vmul.f32 %v1699, 0.1
      %v1704 = vsel %vm1702, %v1699, %v1703
      %v1705 = vld [vmem:[%s6] sm:$0xff]
      %v1706 = vld [vmem:[%s6 + $0x8] sm:$0xff]
      %v1707 = vld [vmem:[%s6 + $0x10] sm:$0xff]
      %v1708 = vld [vmem:[%s6 + $0x18] sm:$0xff]
      %v1710 = vsel %vm1444, %v1705, 0
      %v1713 = vsel %vm1444, %v1706, 0
      %v1716 = vsel %vm1444, %v1707, 0
      %v1719 = vsel %vm1444, %v1708, 0
      %1721 = vmatprep.subr.mxu0 0.0
      %1722 = vmatpush1.msra.mxu0 %v1550
      %1723 = vmatprep.subr.mxu0 0.0
      %1724 = vmatpush1.msra.mxu0 %v1551
      %1725 = vmatprep.subr.mxu0 0.0
      %1726 = vmatpush1.msra.mxu0 %v1552
      %1727 = vmatprep.subr.mxu0 0.0
      %1728 = vmatpush1.msra.mxu0 %v1553
      %1729 = vmatprep.subr.mxu0 0.0
      %1730 = vmatpush1.msra.mxu0 0.0
      %1731 = vmatprep.subr.mxu0 0.0
      %1732 = vmatpush1.msra.mxu0 0.0
      %1733 = vmatprep.subr.mxu0 0.0
      %1734 = vmatpush1.msra.mxu0 0.0
      %1735 = vmatprep.subr.mxu0 0.0
      %1736 = vmatpush1.msra.mxu0 0.0
      %1737 = vmatprep.subr.mxu0 0.0
      %1738 = vmatpush1.msra.mxu0 0.0
      %1739 = vmatprep.subr.mxu0 0.0
      %1740 = vmatpush1.msra.mxu0 0.0
      %1741 = vmatprep.subr.mxu0 0.0
      %1742 = vmatpush1.msra.mxu0 0.0
      %1743 = vmatprep.subr.mxu0 0.0
      %1744 = vmatpush1.msra.mxu0 0.0
      %1745 = vmatprep.subr.mxu0 0.0
      %1746 = vmatpush1.msra.mxu0 0.0
      %1747 = vmatprep.subr.mxu0 0.0
      %1748 = vmatpush1.msra.mxu0 0.0
      %1749 = vmatprep.subr.mxu0 0.0
      %1750 = vmatpush1.msra.mxu0 0.0
      %1751 = vmatprep.subr.mxu0 0.0
      %1752 = vmatpush1.msra.mxu0 0.0
      %1753 = vmatprep.subr.mxu0 0.0
      %1754 = vmatpush1.msra.mxu0 0.0
      %1755 = vmatprep.subr.mxu0 0.0
      %1756 = vmatpush1.msra.mxu0 0.0
      %1757 = vmatprep.subr.mxu0 0.0
      %1758 = vmatpush1.msra.mxu0 0.0
      %1759 = vmatprep.subr.mxu0 0.0
      %1760 = vmatpush1.msra.mxu0 0.0
      %1761 = vmatprep.subr.mxu0 0.0
      %1762 = vmatpush1.msra.mxu0 0.0
      %1763 = vmatprep.subr.mxu0 0.0
      %1764 = vmatpush1.msra.mxu0 0.0
      %1765 = vmatprep.subr.mxu0 0.0
      %1766 = vmatpush1.msra.mxu0 0.0
      %1767 = vmatprep.subr.mxu0 0.0
      %1768 = vmatpush1.msra.mxu0 0.0
      %1769 = vmatprep.subr.mxu0 0.0
      %1770 = vmatpush1.msra.mxu0 0.0
      %1771 = vmatprep.subr.mxu0 0.0
      %1772 = vmatpush1.msra.mxu0 0.0
      %1773 = vmatprep.subr.mxu0 0.0
      %1774 = vmatpush1.msra.mxu0 0.0
      %1775 = vmatprep.subr.mxu0 0.0
      %1776 = vmatpush1.msra.mxu0 0.0
      %1777 = vmatprep.subr.mxu0 0.0
      %1778 = vmatpush1.msra.mxu0 0.0
      %1779 = vmatprep.subr.mxu0 0.0
      %1780 = vmatpush1.msra.mxu0 0.0
      %1781 = vmatprep.subr.mxu0 0.0
      %1782 = vmatpush1.msra.mxu0 0.0
      %1783 = vmatprep.subr.mxu0 0.0
      %1784 = vmatpush1.msra.mxu0 0.0
      %1785 = vmatprep.mubr.f32.mxu0 0.0
      %1786 = vmatmul.mubr.f32.gmra.mrb[0].mxu0 %v1710
      %v1787 = vpop.f32.mrb[0].mxu0
      %v1788 = vadd.f32 0.0, %v1787
      %v1789 = vpop.f32.mrb[0].mxu0
      %1790 = vmatprep.mubr.f32.mxu0 0.0
      %1791 = vmatmul.mubr.f32.gmra.mrb[0].mxu0 %v1713
      %v1792 = vpop.f32.mrb[0].mxu0
      %v1793 = vadd.f32 0.0, %v1792
      %v1794 = vpop.f32.mrb[0].mxu0
      %1795 = vmatprep.mubr.f32.mxu0 0.0
      %1796 = vmatmul.mubr.f32.gmra.mrb[0].mxu0 %v1716
      %v1797 = vpop.f32.mrb[0].mxu0
      %v1798 = vadd.f32 0.0, %v1797
      %v1799 = vpop.f32.mrb[0].mxu0
      %1800 = vmatprep.mubr.f32.mxu0 0.0
      %1801 = vmatmul.mubr.f32.gmra.mrb[0].mxu0 %v1719
      %v1802 = vpop.f32.mrb[0].mxu0
      %v1803 = vadd.f32 0.0, %v1802
      %v1804 = vpop.f32.mrb[0].mxu0
      %1805 = vdwg.mxu0
      %v1806 = vsub.f32 0.0, %v1788
      %v1807 = vsub.f32 0.0, %v1793
      %v1808 = vsub.f32 0.0, %v1798
      %v1809 = vsub.f32 0.0, %v1803
      %v1810 = vmul.f32 %v1806, 1.442695
      %v1811 = vpow.pop %v1810
      %v1812 = vmul.f32 %v1807, 1.442695
      %v1813 = vpow.pop %v1812
      %v1814 = vmul.f32 %v1808, 1.442695
      %v1815 = vpow.pop %v1814
      %v1816 = vmul.f32 %v1809, 1.442695
      %v1817 = vpow.pop %v1816
      %v1818 = vadd.f32 %v1811, 1.0
      %v1819 = vadd.f32 %v1813, 1.0
      %v1820 = vadd.f32 %v1815, 1.0
      %v1821 = vadd.f32 %v1817, 1.0
      %v1822 = vrcp.pop %v1818
      %v1823 = vmul.f32 1.0, %v1822
      %v1824 = vrcp.pop %v1819
      %v1825 = vmul.f32 1.0, %v1824
      %v1826 = vrcp.pop %v1820
      %v1827 = vmul.f32 1.0, %v1826
      %v1828 = vrcp.pop %v1821
      %v1829 = vmul.f32 1.0, %v1828
      %v1830 = vld [vmem:[%s7] sm:$0xff]
      %v1832 = vsel %vm342, %v1830, 0
      %1834 = vmatprep.subr.mxu0 0.0
      %1835 = vmatpush1.msra.mxu0 %v1704
      %1836 = vmatprep.subr.mxu0 0.0
      %1837 = vmatpush1.msra.mxu0 0.0
      %1838 = vmatprep.subr.mxu0 0.0
      %1839 = vmatpush1.msra.mxu0 0.0
      %1840 = vmatprep.subr.mxu0 0.0
      %1841 = vmatpush1.msra.mxu0 0.0
      %1842 = vmatprep.subr.mxu0 0.0
      %1843 = vmatpush1.msra.mxu0 0.0
      %1844 = vmatprep.subr.mxu0 0.0
      %1845 = vmatpush1.msra.mxu0 0.0
      %1846 = vmatprep.subr.mxu0 0.0
      %1847 = vmatpush1.msra.mxu0 0.0
      %1848 = vmatprep.subr.mxu0 0.0
      %1849 = vmatpush1.msra.mxu0 0.0
      %1850 = vmatprep.subr.mxu0 0.0
      %1851 = vmatpush1.msra.mxu0 0.0
      %1852 = vmatprep.subr.mxu0 0.0
      %1853 = vmatpush1.msra.mxu0 0.0
      %1854 = vmatprep.subr.mxu0 0.0
      %1855 = vmatpush1.msra.mxu0 0.0
      %1856 = vmatprep.subr.mxu0 0.0
      %1857 = vmatpush1.msra.mxu0 0.0
      %1858 = vmatprep.subr.mxu0 0.0
      %1859 = vmatpush1.msra.mxu0 0.0
      %1860 = vmatprep.subr.mxu0 0.0
      %1861 = vmatpush1.msra.mxu0 0.0
      %1862 = vmatprep.subr.mxu0 0.0
      %1863 = vmatpush1.msra.mxu0 0.0
      %1864 = vmatprep.subr.mxu0 0.0
      %1865 = vmatpush1.msra.mxu0 0.0
      %1866 = vmatprep.subr.mxu0 0.0
      %1867 = vmatpush1.msra.mxu0 0.0
      %1868 = vmatprep.subr.mxu0 0.0
      %1869 = vmatpush1.msra.mxu0 0.0
      %1870 = vmatprep.subr.mxu0 0.0
      %1871 = vmatpush1.msra.mxu0 0.0
      %1872 = vmatprep.subr.mxu0 0.0
      %1873 = vmatpush1.msra.mxu0 0.0
      %1874 = vmatprep.subr.mxu0 0.0
      %1875 = vmatpush1.msra.mxu0 0.0
      %1876 = vmatprep.subr.mxu0 0.0
      %1877 = vmatpush1.msra.mxu0 0.0
      %1878 = vmatprep.subr.mxu0 0.0
      %1879 = vmatpush1.msra.mxu0 0.0
      %1880 = vmatprep.subr.mxu0 0.0
      %1881 = vmatpush1.msra.mxu0 0.0
      %1882 = vmatprep.subr.mxu0 0.0
      %1883 = vmatpush1.msra.mxu0 0.0
      %1884 = vmatprep.subr.mxu0 0.0
      %1885 = vmatpush1.msra.mxu0 0.0
      %1886 = vmatprep.subr.mxu0 0.0
      %1887 = vmatpush1.msra.mxu0 0.0
      %1888 = vmatprep.subr.mxu0 0.0
      %1889 = vmatpush1.msra.mxu0 0.0
      %1890 = vmatprep.subr.mxu0 0.0
      %1891 = vmatpush1.msra.mxu0 0.0
      %1892 = vmatprep.subr.mxu0 0.0
      %1893 = vmatpush1.msra.mxu0 0.0
      %1894 = vmatprep.subr.mxu0 0.0
      %1895 = vmatpush1.msra.mxu0 0.0
      %1896 = vmatprep.subr.mxu0 0.0
      %1897 = vmatpush1.msra.mxu0 0.0
      %1898 = vmatprep.mubr.f32.mxu0 0.0
      %1899 = vmatmul.mubr.f32.gmra.mrb[0].mxu0 %v1832
      %v1900 = vpop.f32.mrb[0].mxu0
      %v1901 = vadd.f32 0.0, %v1900
      %v1902 = vpop.f32.mrb[0].mxu0
      %1903 = vdwg.mxu0
      %v1904 = vsub.f32 0.0, %v1901
      %v1905 = vmul.f32 %v1904, 1.442695
      %v1906 = vpow.pop %v1905
      %v1907 = vadd.f32 %v1906, 1.0
      %v1908 = vrcp.pop %v1907
      %v1909 = vmul.f32 1.0, %v1908
      %v1910 = vld [vmem:[#allocation2] sm:$0xff]
      %v1911 = vld [vmem:[#allocation2 + $0x8] sm:$0xff]
      %v1912 = vld [vmem:[#allocation2 + $0x10] sm:$0xff]
      %v1913 = vld [vmem:[#allocation2 + $0x18] sm:$0xff]
      %v1914 = vlaneseq
      %v1915 = vshrl.u32 %v1914, 7
      %v1916 = vsub.s32 0, %v1915
      %v1917 = vrot.slane %v1909, %v1916
      %v1918 = vmul.f32 %v1910, %v1917
      %v1919 = vmul.f32 %v1911, %v1917
      %v1920 = vmul.f32 %v1912, %v1917
      %v1921 = vmul.f32 %v1913, %v1917
      %v1922 = vadd.f32 %v1918, 0.0
      %v1923 = vadd.f32 %v1919, 0.0
      %v1924 = vadd.f32 %v1920, 0.0
      %v1925 = vadd.f32 %v1921, 0.0
      %v1926 = vld [vmem:[%s572] sm:$0xff]
      %v1927 = vld [vmem:[%s572 + $0x8] sm:$0xff]
      %v1928 = vld [vmem:[%s572 + $0x10] sm:$0xff]
      %v1929 = vld [vmem:[%s572 + $0x18] sm:$0xff]
      %v1930 = vlaneseq
      %v1931 = vshrl.u32 %v1930, 7
      %v1932 = vsub.s32 1, %v1931
      %v1933 = vrot.slane %v1909, %v1932
      %v1934 = vmul.f32 %v1926, %v1933
      %v1935 = vmul.f32 %v1927, %v1933
      %v1936 = vmul.f32 %v1928, %v1933
      %v1937 = vmul.f32 %v1929, %v1933
      %v1938 = vadd.f32 %v1922, %v1934
      %v1939 = vadd.f32 %v1923, %v1935
      %v1940 = vadd.f32 %v1924, %v1936
      %v1941 = vadd.f32 %v1925, %v1937
      %v1942 = vld [vmem:[%s693] sm:$0xff]
      %v1943 = vld [vmem:[%s693 + $0x8] sm:$0xff]
      %v1944 = vld [vmem:[%s693 + $0x10] sm:$0xff]
      %v1945 = vld [vmem:[%s693 + $0x18] sm:$0xff]
      %v1946 = vlaneseq
      %v1947 = vshrl.u32 %v1946, 7
      %v1948 = vsub.s32 2, %v1947
      %v1949 = vrot.slane %v1909, %v1948
      %v1950 = vmul.f32 %v1942, %v1949
      %v1951 = vmul.f32 %v1943, %v1949
      %v1952 = vmul.f32 %v1944, %v1949
      %v1953 = vmul.f32 %v1945, %v1949
      %v1954 = vadd.f32 %v1938, %v1950
      %v1955 = vadd.f32 %v1939, %v1951
      %v1956 = vadd.f32 %v1940, %v1952
      %v1957 = vadd.f32 %v1941, %v1953
      %v1958 = vld [vmem:[%s814] sm:$0xff]
      %v1959 = vld [vmem:[%s814 + $0x8] sm:$0xff]
      %v1960 = vld [vmem:[%s814 + $0x10] sm:$0xff]
      %v1961 = vld [vmem:[%s814 + $0x18] sm:$0xff]
      %v1962 = vlaneseq
      %v1963 = vshrl.u32 %v1962, 7
      %v1964 = vsub.s32 3, %v1963
      %v1965 = vrot.slane %v1909, %v1964
      %v1966 = vmul.f32 %v1958, %v1965
      %v1967 = vmul.f32 %v1959, %v1965
      %v1968 = vmul.f32 %v1960, %v1965
      %v1969 = vmul.f32 %v1961, %v1965
      %v1970 = vadd.f32 %v1954, %v1966
      %v1971 = vadd.f32 %v1955, %v1967
      %v1972 = vadd.f32 %v1956, %v1968
      %v1973 = vadd.f32 %v1957, %v1969
      %v1974 = vld [vmem:[%s935] sm:$0xff]
      %v1975 = vld [vmem:[%s935 + $0x8] sm:$0xff]
      %v1976 = vld [vmem:[%s935 + $0x10] sm:$0xff]
      %v1977 = vld [vmem:[%s935 + $0x18] sm:$0xff]
      %v1978 = vlaneseq
      %v1979 = vshrl.u32 %v1978, 7
      %v1980 = vsub.s32 4, %v1979
      %v1981 = vrot.slane %v1909, %v1980
      %v1982 = vmul.f32 %v1974, %v1981
      %v1983 = vmul.f32 %v1975, %v1981
      %v1984 = vmul.f32 %v1976, %v1981
      %v1985 = vmul.f32 %v1977, %v1981
      %v1986 = vadd.f32 %v1970, %v1982
      %v1987 = vadd.f32 %v1971, %v1983
      %v1988 = vadd.f32 %v1972, %v1984
      %v1989 = vadd.f32 %v1973, %v1985
      %v1990 = vld [vmem:[%s1056] sm:$0xff]
      %v1991 = vld [vmem:[%s1056 + $0x8] sm:$0xff]
      %v1992 = vld [vmem:[%s1056 + $0x10] sm:$0xff]
      %v1993 = vld [vmem:[%s1056 + $0x18] sm:$0xff]
      %v1994 = vlaneseq
      %v1995 = vshrl.u32 %v1994, 7
      %v1996 = vsub.s32 5, %v1995
      %v1997 = vrot.slane %v1909, %v1996
      %v1998 = vmul.f32 %v1990, %v1997
      %v1999 = vmul.f32 %v1991, %v1997
      %v2000 = vmul.f32 %v1992, %v1997
      %v2001 = vmul.f32 %v1993, %v1997
      %v2002 = vadd.f32 %v1986, %v1998
      %v2003 = vadd.f32 %v1987, %v1999
      %v2004 = vadd.f32 %v1988, %v2000
      %v2005 = vadd.f32 %v1989, %v2001
      %v2006 = vld [vmem:[%s1177] sm:$0xff]
      %v2007 = vld [vmem:[%s1177 + $0x8] sm:$0xff]
      %v2008 = vld [vmem:[%s1177 + $0x10] sm:$0xff]
      %v2009 = vld [vmem:[%s1177 + $0x18] sm:$0xff]
      %v2010 = vlaneseq
      %v2011 = vshrl.u32 %v2010, 7
      %v2012 = vsub.s32 6, %v2011
      %v2013 = vrot.slane %v1909, %v2012
      %v2014 = vmul.f32 %v2006, %v2013
      %v2015 = vmul.f32 %v2007, %v2013
      %v2016 = vmul.f32 %v2008, %v2013
      %v2017 = vmul.f32 %v2009, %v2013
      %v2018 = vadd.f32 %v2002, %v2014
      %v2019 = vadd.f32 %v2003, %v2015
      %v2020 = vadd.f32 %v2004, %v2016
      %v2021 = vadd.f32 %v2005, %v2017
      %v2022 = vld [vmem:[%s1298] sm:$0xff]
      %v2023 = vld [vmem:[%s1298 + $0x8] sm:$0xff]
      %v2024 = vld [vmem:[%s1298 + $0x10] sm:$0xff]
      %v2025 = vld [vmem:[%s1298 + $0x18] sm:$0xff]
      %v2026 = vlaneseq
      %v2027 = vshrl.u32 %v2026, 7
      %v2028 = vsub.s32 7, %v2027
      %v2029 = vrot.slane %v1909, %v2028
      %v2030 = vmul.f32 %v2022, %v2029
      %v2031 = vmul.f32 %v2023, %v2029
      %v2032 = vmul.f32 %v2024, %v2029
      %v2033 = vmul.f32 %v2025, %v2029
      %v2034 = vadd.f32 %v2018, %v2030
      %v2035 = vadd.f32 %v2019, %v2031
      %v2036 = vadd.f32 %v2020, %v2032
      %v2037 = vadd.f32 %v2021, %v2033
      %v2038 = vmul.f32 %v1823, %v2034
      %v2039 = vmul.f32 %v1825, %v2035
      %v2040 = vmul.f32 %v1827, %v2036
      %v2041 = vmul.f32 %v1829, %v2037
      %v2042 = vmul.f32 %v2038, 0.125
      %v2043 = vmul.f32 %v2039, 0.125
      %v2044 = vmul.f32 %v2040, 0.125
      %v2045 = vmul.f32 %v2041, 0.125
      %2046 = vst.msk [vmem:[%s336] sm:$0xff] %vm342, %v2042
      %2047 = vst.msk [vmem:[%s336 + $0x8] sm:$0xff] %vm342, %v2043
      %2048 = vst.msk [vmem:[%s336 + $0x10] sm:$0xff] %vm342, %v2044
      %2049 = vst.msk [vmem:[%s336 + $0x18] sm:$0xff] %vm342, %v2045
      %p2050 = scmp.lt.s32.totalorder %s23, 1
      %s2051 = scalar_select %p2050, %s23, 1
      %p2052 = scmp.lt.s32.totalorder %s24, 0
      %s2053 = scalar_select %p2052, %s24, 0
      %s2054 = smul.addr %s2051, 4
      %s2055 = sadd.s32 %s2053, %s2054
      %s2056 = smul.addr %s2055, 8
      %s2057 = scalar_lea.vmem %s8, %s2056
      // Predicated region
      $region53: #{pointconvw_forward.3} parent=51 // pred_check
        %p2058 = pneg %p226
      $region54: #{pointconvw_forward.3} parent=51 // pred_check_branch
        %2060 = sbr.rel (%p2058) target = $region56
      $region55: #{pointconvw_forward.3} parent=51 // pred_region
        _
      $region56: #{pointconvw_forward.3} parent=51 // pred_fallthru
        _
    $region52: #{pointconvw_forward.3} parent=5 // pred_fallthru
      _
    %p2061 = scmp.le.s32.totalorder 2, %s14
    // Predicated region
    $region57: #{pointconvw_forward.3} parent=5 // pred_check
      %p2062 = pneg %p2061
    $region58: #{pointconvw_forward.3} parent=5 // pred_check_branch
      %2064 = sbr.rel (%p2062) target = $region60
    $region59: #{pointconvw_forward.3} parent=5 // pred_region
      %s2065 = ssub.s32 %s14, 2
      // Predicated region
      $region61: #{pointconvw_forward.3} parent=59 // pred_check
        %p2066 = pneg %p232
      $region62: #{pointconvw_forward.3} parent=59 // pred_check_branch
        %2068 = sbr.rel (%p2066) target = $region64
      $region63: #{pointconvw_forward.3} parent=59 // pred_region
        %p2069 = scmp.lt.s32.totalorder %s25, 1
        %s2070 = scalar_select %p2069, %s25, 1
        %p2071 = scmp.lt.s32.totalorder %s26, 0
        %s2072 = scalar_select %p2071, %s26, 0
        %s2073 = smul.addr %s2070, 4
        %s2074 = sadd.s32 %s2072, %s2073
        %s2075 = smul.addr %s2074, 8
        %s2076 = scalar_lea.vmem %s8, %s2075
      $region64: #{pointconvw_forward.3} parent=59 // pred_fallthru
        _
    $region60: #{pointconvw_forward.3} parent=5 // pred_fallthru
      _
  $region6: #{pointconvw_forward.3} parent=0 // loop_footer
    %s18 = sadd.s32 1, %s14
  $region7: #{pointconvw_forward.3} parent=0 // loop_footer_branch
    %13 = sbr.rel target = $region3
  $region8: #{pointconvw_forward.3} parent=0 // loop_exit
    _

</llo_original>
